<compile_context>
chip_gen: v7x
topology: tpu7x:2x2x1
jax: 0.10.0
libtpu: 0.0.40
codegen_flags: <defaults>
</compile_context>

<pallas_src>
import jax
import jax.numpy as jnp
from jax.experimental import pallas as pl
from jax.experimental.pallas import tpu as pltpu


# ---------------------------------------------------------------------------
# Kernels
# ---------------------------------------------------------------------------
def stage1_kernel(x_ref, prev_ref, wx_ref, w3p_ref, bz_ref, z_ref, stats_ref):
    """Per row-tile: z_k = prev_k @ w3p + x @ wx[k] + bz[k] for the 4 phases,
    plus per-tile per-channel (sum, sum-of-squares) partials for BN."""
    cout = z_ref.shape[-1]
    x = x_ref[...]                                   # (TM, Cin)
    w3p = w3p_ref[...]                               # (Cout, Cout)
    ssum = jnp.zeros((1, cout), jnp.float32)
    ssq = jnp.zeros((1, cout), jnp.float32)
    for k in range(4):                               # phase = kh*2 + kw (unrolled)
        zk = (jnp.dot(prev_ref[k], w3p, preferred_element_type=jnp.float32)
              + jnp.dot(x, wx_ref[k], preferred_element_type=jnp.float32)
              + bz_ref[k])                           # (TM, Cout) f32
        z_ref[k] = zk
        ssum = ssum + jnp.sum(zk, axis=0, keepdims=True)
        ssq = ssq + jnp.sum(zk * zk, axis=0, keepdims=True)
    stats_ref[...] = jnp.concatenate([ssum, ssq], axis=0)[None]   # (1, 2, Cout)


def bn_relu_kernel(z_ref, scale_ref, shift_ref, o_ref):
    """Elementwise y = relu(z * scale + shift) on a (4, TM, Cout) tile."""
    y = z_ref[...] * scale_ref[...] + shift_ref[...]
    o_ref[...] = jnp.maximum(y, 0.0).astype(o_ref.dtype)


# ---------------------------------------------------------------------------
# Wrapper
# ---------------------------------------------------------------------------
def _pick_row_tile(rows, target):
    """Largest divisor of `rows` that is <= target and a multiple of 8
    (sublane requirement), falling back to the full extent."""
    if rows <= target:
        return rows
    best = None
    d = 1
    while d * d <= rows:
        if rows % d == 0:
            for t in (d, rows // d):
                if t <= target and t % 8 == 0 and (best is None or t > best):
                    best = t
        d += 1
    return best if best is not None else rows


def deup_cat_forward(x_nchw, prev_nchw, params, *, row_tile=512,
                     matmul_dtype=jnp.float32, eps=1e-5):
    """x_nchw: (N, Cin, H, W); prev_nchw: (N, Cout, 2H, 2W). Returns NCHW."""
    w1, b1, w2, b2, w3p, w3y, b3, gamma, beta = params
    N, Cin, H, W = x_nchw.shape
    Cout = w1.shape[1]
    R = N * H * W                       # input-resolution pixels
    m_total = 4 * R                     # output pixels = N * 2H * 2W

    # ---- fold conv1 + conv2 + (y-half of conv3) into one matrix per phase --
    wx = jnp.einsum('ci,kio,od->kcd', w1, w2, w3y)                  # (4, Cin, Cout)
    bz = (jnp.einsum('bi,kio->kbo', b1, w2) + b2[None]) @ w3y + b3[None]  # (4, 1, Cout)

    # ---- channels-last, phase-major, flattened rows -------------------------
    x2 = jnp.transpose(x_nchw, (0, 2, 3, 1)).reshape(R, Cin)
    prevp = (prev_nchw.reshape(N, Cout, H, 2, W, 2)
             .transpose(3, 5, 0, 2, 4, 1)            # (kh, kw, n, h, w, c)
             .reshape(4, R, Cout))

    mm = matmul_dtype
    x2 = x2.astype(mm)
    prevp = prevp.astype(mm)
    wx_c = wx.astype(mm)
    w3p_c = w3p.astype(mm)
    bz = bz.astype(jnp.float32)

    tm = _pick_row_tile(R, row_tile)
    n_tiles = R // tm
    cparams = pltpu.CompilerParams(dimension_semantics=("parallel",),
                                   vmem_limit_bytes=32 * 1024 * 1024)

    def full(shape):  # whole-array (weight-like) operand, same block every step
        return pl.BlockSpec(shape, lambda i, _s=shape: (0,) * len(_s))

    # ---- pass 1: fused matmuls + per-tile BN partial stats ------------------
    z, stats = pl.pallas_call(
        stage1_kernel,
        grid=(n_tiles,),
        in_specs=[
            pl.BlockSpec((tm, Cin), lambda i: (i, 0)),        # x rows
            pl.BlockSpec((4, tm, Cout), lambda i: (0, i, 0)), # prev (phase-major)
            full((4, Cin, Cout)),                             # wx
            full((Cout, Cout)),                               # w3p
            full((4, 1, Cout)),                               # bz
        ],
        out_specs=[
            pl.BlockSpec((4, tm, Cout), lambda i: (0, i, 0)), # z
            pl.BlockSpec((1, 2, Cout), lambda i: (i, 0, 0)),  # per-tile stats
        ],
        out_shape=[
            jax.ShapeDtypeStruct((4, R, Cout), jnp.float32),
            jax.ShapeDtypeStruct((n_tiles, 2, Cout), jnp.float32),
        ],
        compiler_params=cparams,
    )(x2, prevp, wx_c, w3p_c, bz)

    # ---- finish BN statistics (tiny XLA reduction) --------------------------
    s = jnp.sum(stats, axis=0)                                   # (2, Cout)
    mean = s[0] / m_total
    var = jnp.maximum(s[1] / m_total - mean * mean, 0.0)         # biased variance
    inv = jax.lax.rsqrt(var + eps)
    scale = (gamma[0] * inv).reshape(1, Cout).astype(jnp.float32)
    shift = (beta[0] - mean * gamma[0] * inv).reshape(1, Cout).astype(jnp.float32)

    # ---- pass 2: normalize + ReLU -------------------------------------------
    out_p = pl.pallas_call(
        bn_relu_kernel,
        grid=(n_tiles,),
        in_specs=[
            pl.BlockSpec((4, tm, Cout), lambda i: (0, i, 0)),
            full((1, Cout)),
            full((1, Cout)),
        ],
        out_specs=pl.BlockSpec((4, tm, Cout), lambda i: (0, i, 0)),
        out_shape=jax.ShapeDtypeStruct((4, R, Cout), jnp.float32),
        compiler_params=cparams,
    )(z, scale, shift)

    # (kh, kw, n, h, w, c) -> (n, c, 2h+kh, 2w+kw)   [back to NCHW]
    out = (out_p.reshape(2, 2, N, H, W, Cout)
           .transpose(2, 5, 3, 0, 4, 1)
           .reshape(N, Cout, 2 * H, 2 * W))
    return out


# ---------------------------------------------------------------------------
# Pure-JAX reference (same math, independent construction path)
# ---------------------------------------------------------------------------
def ref_forward(x_nchw, prev_nchw, params):
    w1, b1, w2, b2, w3p, w3y, b3, gamma, beta = params
    x = jnp.transpose(x_nchw, (0, 2, 3, 1)).astype(jnp.float32)
    prev = jnp.transpose(prev_nchw, (0, 2, 3, 1)).astype(jnp.float32)
    x1 = jnp.einsum('nhwc,cd->nhwd', x, w1) + b1[0]
    N, H, W, Cout = x1.shape
    up = jnp.zeros((N, 2 * H, 2 * W, Cout), jnp.float32)
    for kh in range(2):
        for kw in range(2):
            yk = jnp.einsum('nhwc,cd->nhwd', x1, w2[2 * kh + kw]) + b2[0]
            up = up.at[:, kh::2, kw::2, :].set(yk)
    z = (jnp.einsum('nhwc,cd->nhwd', prev, w3p)
         + jnp.einsum('nhwc,cd->nhwd', up, w3y) + b3[0])
    mean = jnp.mean(z, axis=(0, 1, 2), keepdims=True)
    var = jnp.mean((z - mean) ** 2, axis=(0, 1, 2), keepdims=True)
    zn = (z - mean) * jax.lax.rsqrt(var + 1e-5) * gamma[0] + beta[0]
    zn = jnp.maximum(zn, 0.0)
    return jnp.transpose(zn, (0, 3, 1, 2))


def make_params(key, cin, cout):
    ks = jax.random.split(key, 9)
    # 1x1 conv weights stored transposed: (Cin, Cout) so y = x @ W
    w1 = jax.random.normal(ks[0], (cin, cout), jnp.float32) * 0.1
    b1 = jax.random.normal(ks[1], (1, cout), jnp.float32) * 0.1
    # ConvTranspose2d weight: torch (Cin=cout, Cout=cout, 2, 2) reordered to
    # (k=kh*2+kw, Cin, Cout)
    w2 = jax.random.normal(ks[2], (4, cout, cout), jnp.float32) * 0.1
    b2 = jax.random.normal(ks[3], (1, cout), jnp.float32) * 0.1
    # conv3 weight split along the concat axis: (prev block, y block)
    w3p = jax.random.normal(ks[4], (cout, cout), jnp.float32) * 0.1
    w3y = jax.random.normal(ks[5], (cout, cout), jnp.float32) * 0.1
    b3 = jax.random.normal(ks[6], (1, cout), jnp.float32) * 0.1
    gamma = 1.0 + 0.1 * jax.random.normal(ks[7], (1, cout), jnp.float32)
    beta = 0.1 * jax.random.normal(ks[8], (1, cout), jnp.float32)
    return (w1, b1, w2, b2, w3p, w3y, b3, gamma, beta)


if __name__ == "__main__":
    N, Cin, Cout, H, W = 2, 8, 16, 16, 16

    key = jax.random.PRNGKey(0)
    kx, kp, kparams = jax.random.split(key, 3)
    x = jax.random.normal(kx, (N, Cin, H, W), jnp.float32)               # NCHW
    prev = jax.random.normal(kp, (N, Cout, 2 * H, 2 * W), jnp.float32)   # NCHW
    params = make_params(kparams, Cin, Cout)

    ref = jax.block_until_ready(ref_forward(x, prev, params))

    # f32 MXU path (exact check); row_tile=128 -> 4 grid steps at these shapes.
    out = jax.block_until_ready(
        deup_cat_forward(x, prev, params, row_tile=128,
                         matmul_dtype=jnp.float32))
    assert out.shape == (N, Cout, 2 * H, 2 * W), out.shape
    assert jnp.allclose(out, ref, atol=5e-4, rtol=5e-4), \
        float(jnp.max(jnp.abs(out - ref)))

    # bf16-operand MXU path (v6e/v7x fast path); f32 accumulation + f32 BN.
    out_bf16 = jax.block_until_ready(
        deup_cat_forward(x, prev, params, row_tile=128,
                         matmul_dtype=jnp.bfloat16))
    assert jnp.allclose(out_bf16, ref, atol=1e-1, rtol=1e-1), \
        float(jnp.max(jnp.abs(out_bf16 - ref)))

    print("KERNEL_OK")
</pallas_src>

<mosaic_0001>
module attributes {stable_mosaic.version = 11 : i64} {
  func.func @stage1_kernel(%arg0: i32, %arg1: memref<128x8xf32, #tpu.memory_space<vmem>>, %arg2: memref<4x128x16xf32, #tpu.memory_space<vmem>>, %arg3: memref<4x8x16xf32, #tpu.memory_space<vmem>>, %arg4: memref<16x16xf32, #tpu.memory_space<vmem>>, %arg5: memref<4x1x16xf32, #tpu.memory_space<vmem>>, %arg6: memref<4x128x16xf32, #tpu.memory_space<vmem>>, %arg7: memref<1x2x16xf32, #tpu.memory_space<vmem>>) attributes {dimension_semantics = [#tpu.dimension_semantics<parallel>], iteration_bounds = array<i64: 4>, scalar_prefetch = 0 : i64, scratch_operands = 0 : i64, tpu.core_type = #tpu.core_type<tc>, window_params = [{transform_indices = @transform_0, window_bounds = array<i64: 128, 8>}, {transform_indices = @transform_1, window_bounds = array<i64: 4, 128, 16>}, {pipeline_mode = #tpu.pipeline_mode<synchronous>, transform_indices = @transform_2, window_bounds = array<i64: 4, 8, 16>}, {pipeline_mode = #tpu.pipeline_mode<synchronous>, transform_indices = @transform_3, window_bounds = array<i64: 16, 16>}, {pipeline_mode = #tpu.pipeline_mode<synchronous>, transform_indices = @transform_4, window_bounds = array<i64: 4, 1, 16>}, {transform_indices = @transform_5, window_bounds = array<i64: 4, 128, 16>}, {transform_indices = @transform_6, window_bounds = array<i64: 1, 2, 16>}]} {
    %c0 = arith.constant 0 : index
    %c0_0 = arith.constant 0 : index
    %0 = vector.load %arg1[%c0, %c0_0] : memref<128x8xf32, #tpu.memory_space<vmem>>, vector<128x8xf32>
    %c0_1 = arith.constant 0 : index
    %c0_2 = arith.constant 0 : index
    %1 = vector.load %arg4[%c0_1, %c0_2] : memref<16x16xf32, #tpu.memory_space<vmem>>, vector<16x16xf32>
    %cst = arith.constant 0.000000e+00 : f32
    %2 = vector.broadcast %cst : f32 to vector<1x16xf32>
    %cst_3 = arith.constant 0.000000e+00 : f32
    %3 = vector.broadcast %cst_3 : f32 to vector<1x16xf32>
    %c0_4 = arith.constant 0 : index
    %c0_5 = arith.constant 0 : index
    %c0_6 = arith.constant 0 : index
    %4 = vector.load %arg2[%c0_4, %c0_5, %c0_6] : memref<4x128x16xf32, #tpu.memory_space<vmem>>, vector<1x128x16xf32>
    %5 = vector.shape_cast %4 : vector<1x128x16xf32> to vector<128x16xf32>
    %cst_7 = arith.constant dense<0.000000e+00> : vector<128x16xf32>
    %6 = tpu.matmul %5, %1, %cst_7 {dimension_numbers = #tpu.dot_dimension_numbers<[1], [0], [0], [1], [0, 0, 1, 1], [], []>} : vector<128x16xf32>, vector<16x16xf32>, vector<128x16xf32> -> vector<128x16xf32>
    %c0_8 = arith.constant 0 : index
    %c0_9 = arith.constant 0 : index
    %c0_10 = arith.constant 0 : index
    %7 = vector.load %arg3[%c0_8, %c0_9, %c0_10] : memref<4x8x16xf32, #tpu.memory_space<vmem>>, vector<1x8x16xf32>
    %8 = vector.shape_cast %7 : vector<1x8x16xf32> to vector<8x16xf32>
    %cst_11 = arith.constant dense<0.000000e+00> : vector<128x16xf32>
    %9 = tpu.matmul %0, %8, %cst_11 {dimension_numbers = #tpu.dot_dimension_numbers<[1], [0], [0], [1], [0, 0, 1, 1], [], []>} : vector<128x8xf32>, vector<8x16xf32>, vector<128x16xf32> -> vector<128x16xf32>
    %10 = arith.addf %6, %9 : vector<128x16xf32>
    %c0_12 = arith.constant 0 : index
    %c0_13 = arith.constant 0 : index
    %c0_14 = arith.constant 0 : index
    %11 = vector.load %arg5[%c0_12, %c0_13, %c0_14] : memref<4x1x16xf32, #tpu.memory_space<vmem>>, vector<1x1x16xf32>
    %12 = vector.shape_cast %11 : vector<1x1x16xf32> to vector<1x16xf32>
    %13 = vector.broadcast %12 : vector<1x16xf32> to vector<128x16xf32>
    %14 = arith.addf %10, %13 : vector<128x16xf32>
    %c0_15 = arith.constant 0 : index
    %c0_16 = arith.constant 0 : index
    %c0_17 = arith.constant 0 : index
    %15 = vector.load %arg6[%c0_15, %c0_16, %c0_17] : memref<4x128x16xf32, #tpu.memory_space<vmem>>, vector<1x128x16xf32>
    %16 = vector.shape_cast %15 : vector<1x128x16xf32> to vector<128x16xf32>
    %17 = vector.shape_cast %14 : vector<128x16xf32> to vector<1x128x16xf32>
    tpu.vector_store %arg6[%c0_15, %c0_16, %c0_17], %17 {strides = array<i32>} : memref<4x128x16xf32, #tpu.memory_space<vmem>>, vector<1x128x16xf32>,
    %cst_18 = arith.constant dense<0.000000e+00> : vector<16xf32>
    %18 = vector.multi_reduction <add>, %14, %cst_18 [0] : vector<128x16xf32> to vector<16xf32>
    %19 = vector.shape_cast %18 : vector<16xf32> to vector<1x16xf32>
    %20 = arith.addf %2, %19 : vector<1x16xf32>
    %21 = arith.mulf %14, %14 : vector<128x16xf32>
    %cst_19 = arith.constant dense<0.000000e+00> : vector<16xf32>
    %22 = vector.multi_reduction <add>, %21, %cst_19 [0] : vector<128x16xf32> to vector<16xf32>
    %23 = vector.shape_cast %22 : vector<16xf32> to vector<1x16xf32>
    %24 = arith.addf %3, %23 : vector<1x16xf32>
    %c1 = arith.constant 1 : index
    %c0_20 = arith.constant 0 : index
    %c0_21 = arith.constant 0 : index
    %25 = vector.load %arg2[%c1, %c0_20, %c0_21] : memref<4x128x16xf32, #tpu.memory_space<vmem>>, vector<1x128x16xf32>
    %26 = vector.shape_cast %25 : vector<1x128x16xf32> to vector<128x16xf32>
    %cst_22 = arith.constant dense<0.000000e+00> : vector<128x16xf32>
    %27 = tpu.matmul %26, %1, %cst_22 {dimension_numbers = #tpu.dot_dimension_numbers<[1], [0], [0], [1], [0, 0, 1, 1], [], []>} : vector<128x16xf32>, vector<16x16xf32>, vector<128x16xf32> -> vector<128x16xf32>
    %c1_23 = arith.constant 1 : index
    %c0_24 = arith.constant 0 : index
    %c0_25 = arith.constant 0 : index
    %28 = vector.load %arg3[%c1_23, %c0_24, %c0_25] : memref<4x8x16xf32, #tpu.memory_space<vmem>>, vector<1x8x16xf32>
    %29 = vector.shape_cast %28 : vector<1x8x16xf32> to vector<8x16xf32>
    %cst_26 = arith.constant dense<0.000000e+00> : vector<128x16xf32>
    %30 = tpu.matmul %0, %29, %cst_26 {dimension_numbers = #tpu.dot_dimension_numbers<[1], [0], [0], [1], [0, 0, 1, 1], [], []>} : vector<128x8xf32>, vector<8x16xf32>, vector<128x16xf32> -> vector<128x16xf32>
    %31 = arith.addf %27, %30 : vector<128x16xf32>
    %c1_27 = arith.constant 1 : index
    %c0_28 = arith.constant 0 : index
    %c0_29 = arith.constant 0 : index
    %32 = vector.load %arg5[%c1_27, %c0_28, %c0_29] : memref<4x1x16xf32, #tpu.memory_space<vmem>>, vector<1x1x16xf32>
    %33 = vector.shape_cast %32 : vector<1x1x16xf32> to vector<1x16xf32>
    %34 = vector.broadcast %33 : vector<1x16xf32> to vector<128x16xf32>
    %35 = arith.addf %31, %34 : vector<128x16xf32>
    %c1_30 = arith.constant 1 : index
    %c0_31 = arith.constant 0 : index
    %c0_32 = arith.constant 0 : index
    %36 = vector.load %arg6[%c1_30, %c0_31, %c0_32] : memref<4x128x16xf32, #tpu.memory_space<vmem>>, vector<1x128x16xf32>
    %37 = vector.shape_cast %36 : vector<1x128x16xf32> to vector<128x16xf32>
    %38 = vector.shape_cast %35 : vector<128x16xf32> to vector<1x128x16xf32>
    tpu.vector_store %arg6[%c1_30, %c0_31, %c0_32], %38 {strides = array<i32>} : memref<4x128x16xf32, #tpu.memory_space<vmem>>, vector<1x128x16xf32>,
    %cst_33 = arith.constant dense<0.000000e+00> : vector<16xf32>
    %39 = vector.multi_reduction <add>, %35, %cst_33 [0] : vector<128x16xf32> to vector<16xf32>
    %40 = vector.shape_cast %39 : vector<16xf32> to vector<1x16xf32>
    %41 = arith.addf %20, %40 : vector<1x16xf32>
    %42 = arith.mulf %35, %35 : vector<128x16xf32>
    %cst_34 = arith.constant dense<0.000000e+00> : vector<16xf32>
    %43 = vector.multi_reduction <add>, %42, %cst_34 [0] : vector<128x16xf32> to vector<16xf32>
    %44 = vector.shape_cast %43 : vector<16xf32> to vector<1x16xf32>
    %45 = arith.addf %24, %44 : vector<1x16xf32>
    %c2 = arith.constant 2 : index
    %c0_35 = arith.constant 0 : index
    %c0_36 = arith.constant 0 : index
    %46 = vector.load %arg2[%c2, %c0_35, %c0_36] : memref<4x128x16xf32, #tpu.memory_space<vmem>>, vector<1x128x16xf32>
    %47 = vector.shape_cast %46 : vector<1x128x16xf32> to vector<128x16xf32>
    %cst_37 = arith.constant dense<0.000000e+00> : vector<128x16xf32>
    %48 = tpu.matmul %47, %1, %cst_37 {dimension_numbers = #tpu.dot_dimension_numbers<[1], [0], [0], [1], [0, 0, 1, 1], [], []>} : vector<128x16xf32>, vector<16x16xf32>, vector<128x16xf32> -> vector<128x16xf32>
    %c2_38 = arith.constant 2 : index
    %c0_39 = arith.constant 0 : index
    %c0_40 = arith.constant 0 : index
    %49 = vector.load %arg3[%c2_38, %c0_39, %c0_40] : memref<4x8x16xf32, #tpu.memory_space<vmem>>, vector<1x8x16xf32>
    %50 = vector.shape_cast %49 : vector<1x8x16xf32> to vector<8x16xf32>
    %cst_41 = arith.constant dense<0.000000e+00> : vector<128x16xf32>
    %51 = tpu.matmul %0, %50, %cst_41 {dimension_numbers = #tpu.dot_dimension_numbers<[1], [0], [0], [1], [0, 0, 1, 1], [], []>} : vector<128x8xf32>, vector<8x16xf32>, vector<128x16xf32> -> vector<128x16xf32>
    %52 = arith.addf %48, %51 : vector<128x16xf32>
    %c2_42 = arith.constant 2 : index
    %c0_43 = arith.constant 0 : index
    %c0_44 = arith.constant 0 : index
    %53 = vector.load %arg5[%c2_42, %c0_43, %c0_44] : memref<4x1x16xf32, #tpu.memory_space<vmem>>, vector<1x1x16xf32>
    %54 = vector.shape_cast %53 : vector<1x1x16xf32> to vector<1x16xf32>
    %55 = vector.broadcast %54 : vector<1x16xf32> to vector<128x16xf32>
    %56 = arith.addf %52, %55 : vector<128x16xf32>
    %c2_45 = arith.constant 2 : index
    %c0_46 = arith.constant 0 : index
    %c0_47 = arith.constant 0 : index
    %57 = vector.load %arg6[%c2_45, %c0_46, %c0_47] : memref<4x128x16xf32, #tpu.memory_space<vmem>>, vector<1x128x16xf32>
    %58 = vector.shape_cast %57 : vector<1x128x16xf32> to vector<128x16xf32>
    %59 = vector.shape_cast %56 : vector<128x16xf32> to vector<1x128x16xf32>
    tpu.vector_store %arg6[%c2_45, %c0_46, %c0_47], %59 {strides = array<i32>} : memref<4x128x16xf32, #tpu.memory_space<vmem>>, vector<1x128x16xf32>,
    %cst_48 = arith.constant dense<0.000000e+00> : vector<16xf32>
    %60 = vector.multi_reduction <add>, %56, %cst_48 [0] : vector<128x16xf32> to vector<16xf32>
    %61 = vector.shape_cast %60 : vector<16xf32> to vector<1x16xf32>
    %62 = arith.addf %41, %61 : vector<1x16xf32>
    %63 = arith.mulf %56, %56 : vector<128x16xf32>
    %cst_49 = arith.constant dense<0.000000e+00> : vector<16xf32>
    %64 = vector.multi_reduction <add>, %63, %cst_49 [0] : vector<128x16xf32> to vector<16xf32>
    %65 = vector.shape_cast %64 : vector<16xf32> to vector<1x16xf32>
    %66 = arith.addf %45, %65 : vector<1x16xf32>
    %c3 = arith.constant 3 : index
    %c0_50 = arith.constant 0 : index
    %c0_51 = arith.constant 0 : index
    %67 = vector.load %arg2[%c3, %c0_50, %c0_51] : memref<4x128x16xf32, #tpu.memory_space<vmem>>, vector<1x128x16xf32>
    %68 = vector.shape_cast %67 : vector<1x128x16xf32> to vector<128x16xf32>
    %cst_52 = arith.constant dense<0.000000e+00> : vector<128x16xf32>
    %69 = tpu.matmul %68, %1, %cst_52 {dimension_numbers = #tpu.dot_dimension_numbers<[1], [0], [0], [1], [0, 0, 1, 1], [], []>} : vector<128x16xf32>, vector<16x16xf32>, vector<128x16xf32> -> vector<128x16xf32>
    %c3_53 = arith.constant 3 : index
    %c0_54 = arith.constant 0 : index
    %c0_55 = arith.constant 0 : index
    %70 = vector.load %arg3[%c3_53, %c0_54, %c0_55] : memref<4x8x16xf32, #tpu.memory_space<vmem>>, vector<1x8x16xf32>
    %71 = vector.shape_cast %70 : vector<1x8x16xf32> to vector<8x16xf32>
    %cst_56 = arith.constant dense<0.000000e+00> : vector<128x16xf32>
    %72 = tpu.matmul %0, %71, %cst_56 {dimension_numbers = #tpu.dot_dimension_numbers<[1], [0], [0], [1], [0, 0, 1, 1], [], []>} : vector<128x8xf32>, vector<8x16xf32>, vector<128x16xf32> -> vector<128x16xf32>
    %73 = arith.addf %69, %72 : vector<128x16xf32>
    %c3_57 = arith.constant 3 : index
    %c0_58 = arith.constant 0 : index
    %c0_59 = arith.constant 0 : index
    %74 = vector.load %arg5[%c3_57, %c0_58, %c0_59] : memref<4x1x16xf32, #tpu.memory_space<vmem>>, vector<1x1x16xf32>
    %75 = vector.shape_cast %74 : vector<1x1x16xf32> to vector<1x16xf32>
    %76 = vector.broadcast %75 : vector<1x16xf32> to vector<128x16xf32>
    %77 = arith.addf %73, %76 : vector<128x16xf32>
    %c3_60 = arith.constant 3 : index
    %c0_61 = arith.constant 0 : index
    %c0_62 = arith.constant 0 : index
    %78 = vector.load %arg6[%c3_60, %c0_61, %c0_62] : memref<4x128x16xf32, #tpu.memory_space<vmem>>, vector<1x128x16xf32>
    %79 = vector.shape_cast %78 : vector<1x128x16xf32> to vector<128x16xf32>
    %80 = vector.shape_cast %77 : vector<128x16xf32> to vector<1x128x16xf32>
    tpu.vector_store %arg6[%c3_60, %c0_61, %c0_62], %80 {strides = array<i32>} : memref<4x128x16xf32, #tpu.memory_space<vmem>>, vector<1x128x16xf32>,
    %cst_63 = arith.constant dense<0.000000e+00> : vector<16xf32>
    %81 = vector.multi_reduction <add>, %77, %cst_63 [0] : vector<128x16xf32> to vector<16xf32>
    %82 = vector.shape_cast %81 : vector<16xf32> to vector<1x16xf32>
    %83 = arith.addf %62, %82 : vector<1x16xf32>
    %84 = arith.mulf %77, %77 : vector<128x16xf32>
    %cst_64 = arith.constant dense<0.000000e+00> : vector<16xf32>
    %85 = vector.multi_reduction <add>, %84, %cst_64 [0] : vector<128x16xf32> to vector<16xf32>
    %86 = vector.shape_cast %85 : vector<16xf32> to vector<1x16xf32>
    %87 = arith.addf %66, %86 : vector<1x16xf32>
    %88 = tpu.concatenate %83, %87 in 0 : vector<1x16xf32>, vector<1x16xf32> -> vector<2x16xf32>
    %89 = vector.shape_cast %88 : vector<2x16xf32> to vector<1x2x16xf32>
    %c0_65 = arith.constant 0 : index
    %c0_66 = arith.constant 0 : index
    %c0_67 = arith.constant 0 : index
    %90 = vector.load %arg7[%c0_65, %c0_66, %c0_67] : memref<1x2x16xf32, #tpu.memory_space<vmem>>, vector<1x2x16xf32>
    tpu.vector_store %arg7[%c0_65, %c0_66, %c0_67], %89 {strides = array<i32>} : memref<1x2x16xf32, #tpu.memory_space<vmem>>, vector<1x2x16xf32>,
    return
  }
  func.func @transform_0(%arg0: i32) -> (i32, i32) {
    %c0_i32 = arith.constant 0 : i32
    %c0_i32_0 = arith.constant 0 : i32
    return %arg0, %c0_i32 : i32, i32
  }
  func.func @transform_1(%arg0: i32) -> (i32, i32, i32) {
    %c0_i32 = arith.constant 0 : i32
    %c0_i32_0 = arith.constant 0 : i32
    %c0_i32_1 = arith.constant 0 : i32
    return %c0_i32, %arg0, %c0_i32_0 : i32, i32, i32
  }
  func.func @transform_2(%arg0: i32) -> (i32, i32, i32) {
    %c0_i32 = arith.constant 0 : i32
    %c0_i32_0 = arith.constant 0 : i32
    %c0_i32_1 = arith.constant 0 : i32
    %c0_i32_2 = arith.constant 0 : i32
    return %c0_i32, %c0_i32_0, %c0_i32_1 : i32, i32, i32
  }
  func.func @transform_3(%arg0: i32) -> (i32, i32) {
    %c0_i32 = arith.constant 0 : i32
    %c0_i32_0 = arith.constant 0 : i32
    %c0_i32_1 = arith.constant 0 : i32
    return %c0_i32, %c0_i32_0 : i32, i32
  }
  func.func @transform_4(%arg0: i32) -> (i32, i32, i32) {
    %c0_i32 = arith.constant 0 : i32
    %c0_i32_0 = arith.constant 0 : i32
    %c0_i32_1 = arith.constant 0 : i32
    %c0_i32_2 = arith.constant 0 : i32
    return %c0_i32, %c0_i32_0, %c0_i32_1 : i32, i32, i32
  }
  func.func @transform_5(%arg0: i32) -> (i32, i32, i32) {
    %c0_i32 = arith.constant 0 : i32
    %c0_i32_0 = arith.constant 0 : i32
    %c0_i32_1 = arith.constant 0 : i32
    return %c0_i32, %arg0, %c0_i32_0 : i32, i32, i32
  }
  func.func @transform_6(%arg0: i32) -> (i32, i32, i32) {
    %c0_i32 = arith.constant 0 : i32
    %c0_i32_0 = arith.constant 0 : i32
    %c0_i32_1 = arith.constant 0 : i32
    return %arg0, %c0_i32, %c0_i32_0 : i32, i32, i32
  }
}

</mosaic_0001>

<llo_original>
// kernel: tpu_custom_call.1
$region0: #{tpu_custom_call.1}
  #allocation0 [shape = 'u32[]', space=smem, size = 0x4, offset = 0x4, fixed_abs, tag = 'smem constant byte address 0x4 - core index']
  #allocation1 [shape = 'u32[144,128]{1,0:T(1,128)}', space=vmem, size = 0x12000, scoped, tag = 'internal scratch']
  %s0 = inlined_call_operand.vmem [shape: f32[512,8], index: 0, kind: input, shape index: {}]
  %s1 = inlined_call_operand.vmem [shape: f32[4,512,16], index: 1, kind: input, shape index: {}]
  %s2 = inlined_call_operand.vmem [shape: f32[4,8,16], index: 2, kind: input, shape index: {}]
  %s3 = inlined_call_operand.vmem [shape: f32[16,16], index: 3, kind: input, shape index: {}]
  %s4 = inlined_call_operand.vmem [shape: f32[4,1,16], index: 4, kind: input, shape index: {}]
  %s5 = inlined_call_operand.vmem [shape: f32[4,512,16], index: 5, kind: output, shape index: {0}]
  %s6 = inlined_call_operand.hbm [shape: f32[4,2,16], index: 6, kind: output, shape index: {1}]
  %7 = xla_tuple %s5, %s6
  %s8 = sld [smem:[#allocation0]]
  $region133: #{tpu_custom_call.1} parent=0
    _
  %s10 = ssub.s32 1, %s8
  %s11 = scalar_select 0, %s10, %s8
  $region1: #{tpu_custom_call.1} parent=0
    #allocation2 [shape = 'u8[524288]{0}', space=vmem, size = 0x80000, scoped, tag = 'input window, operand 1']
    #allocation3 [shape = 'u8[524288]{0}', space=vmem, size = 0x80000, scoped, tag = 'output window, operand 0']
    #allocation4 [shape = 'u8[2048]{0}', space=vmem, size = 0x800, scoped, tag = 'output window, operand 1']
    #allocation5 [shape = 's32[2]{0}', space=sflag, size = 0x8, scoped, tag = 'scoped memory for tpu_custom_call.1']
    %12 = vsyncpa [#allocation5], 0
    %s13 = scalar_lea.sflag [#allocation5], 1
    %14 = vsyncpa %s13, 0
    loop: start=0, step=1, limit=6
    $region2: #{tpu_custom_call.1} parent=1 // loop_pre_header
      _
    $region3: #{tpu_custom_call.1} parent=1 // loop_header
      %s16 = sphi 0, %s20
      %p17 = scmp.ge.s32.totalorder %s16, 6
      %s26 = sphi 0, %s28
      %s29 = sphi 0, %s26
      %s30 = sphi 0, %s29
      %s46 = sphi 0, %s30
      %s52 = sphi 0, %s54
      %s55 = sphi 0, %s52
      %s56 = sphi 0, %s55
      %s72 = sphi 0, %s56
      %s76 = sphi 0, %s76
      %s78 = sphi 0, %s76
      %s79 = sphi 0, %s78
      %s93 = sphi 0, %s79
      %s97 = sphi 0, %s97
      %s99 = sphi 0, %s97
      %s100 = sphi 0, %s99
      %s114 = sphi 0, %s100
      %s118 = sphi 0, %s118
      %s120 = sphi 0, %s118
      %s121 = sphi 0, %s120
      %s135 = sphi 0, %s121
      %s141 = sphi 0, %s143
      %s144 = sphi 0, %s141
      %s145 = sphi 0, %s144
      %s161 = sphi 0, %s145
      %s167 = sphi 0, %s169
      %s170 = sphi 0, %s167
      %s171 = sphi 0, %s170
      %s187 = sphi 0, %s171
    $region4: #{tpu_custom_call.1} parent=1 // loop_header_branch
      %19 = sbr.rel (%p17) target = $region8
    $region5: #{tpu_custom_call.1} parent=1 // loop_body
      %s21 = ssub.s32 %s16, 1
      %s22 = ssub.s32 %s16, 2
      %s23 = sadd.s32 %s16, 1
      %s24 = ssub.s32 %s16, %s23
      %p25 = scmp.eq.s32.totalorder %s24, 0
      %s27 = sadd.s32 %s26, 1
      %s28 = scalar_select %p25, %s26, %s27
      %p31 = pneg %p25
      %p32 = scmp.eq.s32.totalorder %s16, 3
      %p33 = por %p31, %p32
      %p34 = scmp.ne.s32.totalorder %s26, %s29
      %p35 = scmp.eq.s32.totalorder %s16, 0
      %p36 = por %p34, %p35
      %p37 = scmp.ne.s32.totalorder %s26, %s29
      %p38 = scmp.eq.s32.totalorder %s21, 3
      %p39 = por %p37, %p38
      %p40 = scmp.ne.s32.totalorder %s29, %s30
      %p41 = scmp.eq.s32.totalorder %s21, 0
      %p42 = por %p40, %p41
      %p43 = scmp.ne.s32.totalorder %s29, %s30
      %p44 = scmp.eq.s32.totalorder %s22, 3
      %p45 = por %p43, %p44
      %p47 = scmp.ne.s32.totalorder %s30, %s46
      %p48 = scmp.eq.s32.totalorder %s22, 0
      %p49 = por %p47, %p48
      %s50 = ssub.s32 %s16, %s23
      %p51 = scmp.eq.s32.totalorder %s50, 0
      %s53 = sadd.s32 %s52, 1
      %s54 = scalar_select %p51, %s52, %s53
      %p57 = pneg %p51
      %p58 = scmp.eq.s32.totalorder %s16, 3
      %p59 = por %p57, %p58
      %p60 = scmp.ne.s32.totalorder %s52, %s55
      %p61 = scmp.eq.s32.totalorder %s16, 0
      %p62 = por %p60, %p61
      %p63 = scmp.ne.s32.totalorder %s52, %s55
      %p64 = scmp.eq.s32.totalorder %s21, 3
      %p65 = por %p63, %p64
      %p66 = scmp.ne.s32.totalorder %s55, %s56
      %p67 = scmp.eq.s32.totalorder %s21, 0
      %p68 = por %p66, %p67
      %p69 = scmp.ne.s32.totalorder %s55, %s56
      %p70 = scmp.eq.s32.totalorder %s22, 3
      %p71 = por %p69, %p70
      %p73 = scmp.ne.s32.totalorder %s56, %s72
      %p74 = scmp.eq.s32.totalorder %s22, 0
      %p75 = por %p73, %p74
      %s77 = sadd.s32 %s76, 1
      %p80 = scmp.eq.s32.totalorder %s16, 3
      %p81 = scmp.ne.s32.totalorder %s76, %s78
      %p82 = scmp.eq.s32.totalorder %s16, 0
      %p83 = por %p81, %p82
      %p84 = scmp.ne.s32.totalorder %s76, %s78
      %p85 = scmp.eq.s32.totalorder %s21, 3
      %p86 = por %p84, %p85
      %p87 = scmp.ne.s32.totalorder %s78, %s79
      %p88 = scmp.eq.s32.totalorder %s21, 0
      %p89 = por %p87, %p88
      %p90 = scmp.ne.s32.totalorder %s78, %s79
      %p91 = scmp.eq.s32.totalorder %s22, 3
      %p92 = por %p90, %p91
      %p94 = scmp.ne.s32.totalorder %s79, %s93
      %p95 = scmp.eq.s32.totalorder %s22, 0
      %p96 = por %p94, %p95
      %s98 = sadd.s32 %s97, 1
      %p101 = scmp.eq.s32.totalorder %s16, 3
      %p102 = scmp.ne.s32.totalorder %s97, %s99
      %p103 = scmp.eq.s32.totalorder %s16, 0
      %p104 = por %p102, %p103
      %p105 = scmp.ne.s32.totalorder %s97, %s99
      %p106 = scmp.eq.s32.totalorder %s21, 3
      %p107 = por %p105, %p106
      %p108 = scmp.ne.s32.totalorder %s99, %s100
      %p109 = scmp.eq.s32.totalorder %s21, 0
      %p110 = por %p108, %p109
      %p111 = scmp.ne.s32.totalorder %s99, %s100
      %p112 = scmp.eq.s32.totalorder %s22, 3
      %p113 = por %p111, %p112
      %p115 = scmp.ne.s32.totalorder %s100, %s114
      %p116 = scmp.eq.s32.totalorder %s22, 0
      %p117 = por %p115, %p116
      %s119 = sadd.s32 %s118, 1
      %p122 = scmp.eq.s32.totalorder %s16, 3
      %p123 = scmp.ne.s32.totalorder %s118, %s120
      %p124 = scmp.eq.s32.totalorder %s16, 0
      %p125 = por %p123, %p124
      %p126 = scmp.ne.s32.totalorder %s118, %s120
      %p127 = scmp.eq.s32.totalorder %s21, 3
      %p128 = por %p126, %p127
      %p129 = scmp.ne.s32.totalorder %s120, %s121
      %p130 = scmp.eq.s32.totalorder %s21, 0
      %p131 = por %p129, %p130
      %p132 = scmp.ne.s32.totalorder %s120, %s121
      %p133 = scmp.eq.s32.totalorder %s22, 3
      %p134 = por %p132, %p133
      %p136 = scmp.ne.s32.totalorder %s121, %s135
      %p137 = scmp.eq.s32.totalorder %s22, 0
      %p138 = por %p136, %p137
      %s139 = ssub.s32 %s16, %s23
      %p140 = scmp.eq.s32.totalorder %s139, 0
      %s142 = sadd.s32 %s141, 1
      %s143 = scalar_select %p140, %s141, %s142
      %p146 = pneg %p140
      %p147 = scmp.eq.s32.totalorder %s16, 3
      %p148 = por %p146, %p147
      %p149 = scmp.ne.s32.totalorder %s141, %s144
      %p150 = scmp.eq.s32.totalorder %s16, 0
      %p151 = por %p149, %p150
      %p152 = scmp.ne.s32.totalorder %s141, %s144
      %p153 = scmp.eq.s32.totalorder %s21, 3
      %p154 = por %p152, %p153
      %p155 = scmp.ne.s32.totalorder %s144, %s145
      %p156 = scmp.eq.s32.totalorder %s21, 0
      %p157 = por %p155, %p156
      %p158 = scmp.ne.s32.totalorder %s144, %s145
      %p159 = scmp.eq.s32.totalorder %s22, 3
      %p160 = por %p158, %p159
      %p162 = scmp.ne.s32.totalorder %s145, %s161
      %p163 = scmp.eq.s32.totalorder %s22, 0
      %p164 = por %p162, %p163
      %s165 = ssub.s32 %s16, %s23
      %p166 = scmp.eq.s32.totalorder %s165, 0
      %s168 = sadd.s32 %s167, 1
      %s169 = scalar_select %p166, %s167, %s168
      %p172 = pneg %p166
      %p173 = scmp.eq.s32.totalorder %s16, 3
      %p174 = por %p172, %p173
      %p175 = scmp.ne.s32.totalorder %s167, %s170
      %p176 = scmp.eq.s32.totalorder %s16, 0
      %p177 = por %p175, %p176
      %p178 = scmp.ne.s32.totalorder %s167, %s170
      %p179 = scmp.eq.s32.totalorder %s21, 3
      %p180 = por %p178, %p179
      %p181 = scmp.ne.s32.totalorder %s170, %s171
      %p182 = scmp.eq.s32.totalorder %s21, 0
      %p183 = por %p181, %p182
      %p184 = scmp.ne.s32.totalorder %s170, %s171
      %p185 = scmp.eq.s32.totalorder %s22, 3
      %p186 = por %p184, %p185
      %p188 = scmp.ne.s32.totalorder %s171, %s187
      %p189 = scmp.eq.s32.totalorder %s22, 0
      %p190 = por %p188, %p189
      %p191 = scmp.le.s32.totalorder 1, %s16
      %p192 = scmp.lt.s32.totalorder %s16, 5
      %p193 = pnand %p191, %p192
      %p194 = pneg %p193
      // Predicated region
      $region9: #{tpu_custom_call.1} parent=5 // pred_check
        _
      $region10: #{tpu_custom_call.1} parent=5 // pred_check_branch
        %196 = sbr.rel (%p193) target = $region12
      $region11: #{tpu_custom_call.1} parent=5 // pred_region
        %s197 = ssub.s32 %s16, 1
        // Predicated region
        $region13: #{tpu_custom_call.1} parent=11 // pred_check
          %p198 = pneg %p89
        $region14: #{tpu_custom_call.1} parent=11 // pred_check_branch
          %200 = sbr.rel (%p198) target = $region16
        $region15: #{tpu_custom_call.1} parent=11 // pred_region
          _
        $region16: #{tpu_custom_call.1} parent=11 // pred_fallthru
          _
        // Predicated region
        $region17: #{tpu_custom_call.1} parent=11 // pred_check
          %p201 = pneg %p110
        $region18: #{tpu_custom_call.1} parent=11 // pred_check_branch
          %203 = sbr.rel (%p201) target = $region20
        $region19: #{tpu_custom_call.1} parent=11 // pred_region
          _
        $region20: #{tpu_custom_call.1} parent=11 // pred_fallthru
          _
        // Predicated region
        $region21: #{tpu_custom_call.1} parent=11 // pred_check
          %p204 = pneg %p131
        $region22: #{tpu_custom_call.1} parent=11 // pred_check_branch
          %206 = sbr.rel (%p204) target = $region24
        $region23: #{tpu_custom_call.1} parent=11 // pred_region
          _
        $region24: #{tpu_custom_call.1} parent=11 // pred_fallthru
          _
      $region12: #{tpu_custom_call.1} parent=5 // pred_fallthru
        _
      %p207 = scmp.lt.s32.totalorder %s16, 4
      // Predicated region
      $region25: #{tpu_custom_call.1} parent=5 // pred_check
        %p208 = pneg %p207
      $region26: #{tpu_custom_call.1} parent=5 // pred_check_branch
        %210 = sbr.rel (%p208) target = $region28
      $region27: #{tpu_custom_call.1} parent=5 // pred_region
        // Predicated region
        $region29: #{tpu_custom_call.1} parent=27 // pred_check
          %p211 = pneg %p36
        $region30: #{tpu_custom_call.1} parent=27 // pred_check_branch
          %213 = sbr.rel (%p211) target = $region32
        $region31: #{tpu_custom_call.1} parent=27 // pred_region
          %s214 = smul.u32 16, %s16
          %p215 = scmp.lt.s32.totalorder %s214, 63
          %s216 = scalar_select %p215, %s214, 63
          %s217 = smul.addr %s216, 8
          %s218 = scalar_lea.vmem %s0, %s217
          %s219 = smul.u32 16, %s16
        $region32: #{tpu_custom_call.1} parent=27 // pred_fallthru
          _
        // Predicated region
        $region33: #{tpu_custom_call.1} parent=27 // pred_check
          %p220 = pneg %p62
        $region34: #{tpu_custom_call.1} parent=27 // pred_check_branch
          %222 = sbr.rel (%p220) target = $region36
        $region35: #{tpu_custom_call.1} parent=27 // pred_region
          %s223 = sand.u32 %s52, 1
          %s224 = sand.u32 %s52, 1
          %s225 = smul.addr %s224, 512
          %s226 = scalar_lea.vmem [#allocation2], %s225
          %s227 = smul.u32 16, %s16
          %s228 = smul.addr %s227, 8
          %s229 = scalar_lea.vmem %s1, %s228
          // Predicated region
          $region37: #{tpu_custom_call.1} parent=35 // pred_check
            _
          $region38: #{tpu_custom_call.1} parent=35 // pred_check_branch
            %231 = sbr.rel (0) target = $region40
          $region39: #{tpu_custom_call.1} parent=35 // pred_region
            // Predicated region
            $region41: #{tpu_custom_call.1} parent=39 // pred_check
              _
            $region42: #{tpu_custom_call.1} parent=39 // pred_check_branch
              %233 = sbr.rel (0) target = $region44
            $region43: #{tpu_custom_call.1} parent=39 // pred_region
              // Predicated region
              $region56: #{tpu_custom_call.1} parent=43 // pred_check
                _
              $region57: #{tpu_custom_call.1} parent=43 // pred_check_branch
                %374 = sbr.rel (0) target = $region59
              $region58: #{tpu_custom_call.1} parent=43 // pred_region
                loop: start=0, step=1, limit=1
                $region60: #{tpu_custom_call.1} parent=58 // loop_pre_header
                  _
                $region61: #{tpu_custom_call.1} parent=58 // loop_header
                  %s376 = sphi 0, %s380
                  %p377 = scmp.ge.s32.totalorder %s376, 1
                  %s381 = sphi %s229, %s229
                  %s382 = sphi %s226, %s226
                $region62: #{tpu_custom_call.1} parent=58 // loop_header_branch
                  %379 = sbr.rel (%p377) target = $region66
                $region63: #{tpu_custom_call.1} parent=58 // loop_body
                  %v383 = vld [vmem:[%s381] sm:$0xff]
                  %384 = vst [vmem:[%s382] sm:$0xff] %v383
                  %v385 = vld [vmem:[%s381 + $0x8] sm:$0xff]
                  %386 = vst [vmem:[%s382 + $0x8] sm:$0xff] %v385
                  %v387 = vld [vmem:[%s381 + $0x10] sm:$0xff]
                  %388 = vst [vmem:[%s382 + $0x10] sm:$0xff] %v387
                  %v389 = vld [vmem:[%s381 + $0x18] sm:$0xff]
                  %390 = vst [vmem:[%s382 + $0x18] sm:$0xff] %v389
                  %v391 = vld [vmem:[%s381 + $0x20] sm:$0xff]
                  %392 = vst [vmem:[%s382 + $0x20] sm:$0xff] %v391
                  %v393 = vld [vmem:[%s381 + $0x28] sm:$0xff]
                  %394 = vst [vmem:[%s382 + $0x28] sm:$0xff] %v393
                  %v395 = vld [vmem:[%s381 + $0x30] sm:$0xff]
                  %396 = vst [vmem:[%s382 + $0x30] sm:$0xff] %v395
                  %v397 = vld [vmem:[%s381 + $0x38] sm:$0xff]
                  %398 = vst [vmem:[%s382 + $0x38] sm:$0xff] %v397
                  %v399 = vld [vmem:[%s381 + $0x40] sm:$0xff]
                  %400 = vst [vmem:[%s382 + $0x40] sm:$0xff] %v399
                  %v401 = vld [vmem:[%s381 + $0x48] sm:$0xff]
                  %402 = vst [vmem:[%s382 + $0x48] sm:$0xff] %v401
                  %v403 = vld [vmem:[%s381 + $0x50] sm:$0xff]
                  %404 = vst [vmem:[%s382 + $0x50] sm:$0xff] %v403
                  %v405 = vld [vmem:[%s381 + $0x58] sm:$0xff]
                  %406 = vst [vmem:[%s382 + $0x58] sm:$0xff] %v405
                  %v407 = vld [vmem:[%s381 + $0x60] sm:$0xff]
                  %408 = vst [vmem:[%s382 + $0x60] sm:$0xff] %v407
                  %v409 = vld [vmem:[%s381 + $0x68] sm:$0xff]
                  %410 = vst [vmem:[%s382 + $0x68] sm:$0xff] %v409
                  %v411 = vld [vmem:[%s381 + $0x70] sm:$0xff]
                  %412 = vst [vmem:[%s382 + $0x70] sm:$0xff] %v411
                  %v413 = vld [vmem:[%s381 + $0x78] sm:$0xff]
                  %414 = vst [vmem:[%s382 + $0x78] sm:$0xff] %v413
                  %v415 = vld [vmem:[%s381 + $0x200] sm:$0xff]
                  %416 = vst [vmem:[%s382 + $0x80] sm:$0xff] %v415
                  %v417 = vld [vmem:[%s381 + $0x208] sm:$0xff]
                  %418 = vst [vmem:[%s382 + $0x88] sm:$0xff] %v417
                  %v419 = vld [vmem:[%s381 + $0x210] sm:$0xff]
                  %420 = vst [vmem:[%s382 + $0x90] sm:$0xff] %v419
                  %v421 = vld [vmem:[%s381 + $0x218] sm:$0xff]
                  %422 = vst [vmem:[%s382 + $0x98] sm:$0xff] %v421
                  %v423 = vld [vmem:[%s381 + $0x220] sm:$0xff]
                  %424 = vst [vmem:[%s382 + $0xa0] sm:$0xff] %v423
                  %v425 = vld [vmem:[%s381 + $0x228] sm:$0xff]
                  %426 = vst [vmem:[%s382 + $0xa8] sm:$0xff] %v425
                  %v427 = vld [vmem:[%s381 + $0x230] sm:$0xff]
                  %428 = vst [vmem:[%s382 + $0xb0] sm:$0xff] %v427
                  %v429 = vld [vmem:[%s381 + $0x238] sm:$0xff]
                  %430 = vst [vmem:[%s382 + $0xb8] sm:$0xff] %v429
                  %v431 = vld [vmem:[%s381 + $0x240] sm:$0xff]
                  %432 = vst [vmem:[%s382 + $0xc0] sm:$0xff] %v431
                  %v433 = vld [vmem:[%s381 + $0x248] sm:$0xff]
                  %434 = vst [vmem:[%s382 + $0xc8] sm:$0xff] %v433
                  %v435 = vld [vmem:[%s381 + $0x250] sm:$0xff]
                  %436 = vst [vmem:[%s382 + $0xd0] sm:$0xff] %v435
                  %v437 = vld [vmem:[%s381 + $0x258] sm:$0xff]
                  %438 = vst [vmem:[%s382 + $0xd8] sm:$0xff] %v437
                  %v439 = vld [vmem:[%s381 + $0x260] sm:$0xff]
                  %440 = vst [vmem:[%s382 + $0xe0] sm:$0xff] %v439
                  %v441 = vld [vmem:[%s381 + $0x268] sm:$0xff]
                  %442 = vst [vmem:[%s382 + $0xe8] sm:$0xff] %v441
                  %v443 = vld [vmem:[%s381 + $0x270] sm:$0xff]
                  %444 = vst [vmem:[%s382 + $0xf0] sm:$0xff] %v443
                  %v445 = vld [vmem:[%s381 + $0x278] sm:$0xff]
                  %446 = vst [vmem:[%s382 + $0xf8] sm:$0xff] %v445
                  %v447 = vld [vmem:[%s381 + $0x400] sm:$0xff]
                  %448 = vst [vmem:[%s382 + $0x100] sm:$0xff] %v447
                  %v449 = vld [vmem:[%s381 + $0x408] sm:$0xff]
                  %450 = vst [vmem:[%s382 + $0x108] sm:$0xff] %v449
                  %v451 = vld [vmem:[%s381 + $0x410] sm:$0xff]
                  %452 = vst [vmem:[%s382 + $0x110] sm:$0xff] %v451
                  %v453 = vld [vmem:[%s381 + $0x418] sm:$0xff]
                  %454 = vst [vmem:[%s382 + $0x118] sm:$0xff] %v453
                  %v455 = vld [vmem:[%s381 + $0x420] sm:$0xff]
                  %456 = vst [vmem:[%s382 + $0x120] sm:$0xff] %v455
                  %v457 = vld [vmem:[%s381 + $0x428] sm:$0xff]
                  %458 = vst [vmem:[%s382 + $0x128] sm:$0xff] %v457
                  %v459 = vld [vmem:[%s381 + $0x430] sm:$0xff]
                  %460 = vst [vmem:[%s382 + $0x130] sm:$0xff] %v459
                  %v461 = vld [vmem:[%s381 + $0x438] sm:$0xff]
                  %462 = vst [vmem:[%s382 + $0x138] sm:$0xff] %v461
                  %v463 = vld [vmem:[%s381 + $0x440] sm:$0xff]
                  %464 = vst [vmem:[%s382 + $0x140] sm:$0xff] %v463
                  %v465 = vld [vmem:[%s381 + $0x448] sm:$0xff]
                  %466 = vst [vmem:[%s382 + $0x148] sm:$0xff] %v465
                  %v467 = vld [vmem:[%s381 + $0x450] sm:$0xff]
                  %468 = vst [vmem:[%s382 + $0x150] sm:$0xff] %v467
                  %v469 = vld [vmem:[%s381 + $0x458] sm:$0xff]
                  %470 = vst [vmem:[%s382 + $0x158] sm:$0xff] %v469
                  %v471 = vld [vmem:[%s381 + $0x460] sm:$0xff]
                  %472 = vst [vmem:[%s382 + $0x160] sm:$0xff] %v471
                  %v473 = vld [vmem:[%s381 + $0x468] sm:$0xff]
                  %474 = vst [vmem:[%s382 + $0x168] sm:$0xff] %v473
                  %v475 = vld [vmem:[%s381 + $0x470] sm:$0xff]
                  %476 = vst [vmem:[%s382 + $0x170] sm:$0xff] %v475
                  %v477 = vld [vmem:[%s381 + $0x478] sm:$0xff]
                  %478 = vst [vmem:[%s382 + $0x178] sm:$0xff] %v477
                  %v479 = vld [vmem:[%s381 + $0x600] sm:$0xff]
                  %480 = vst [vmem:[%s382 + $0x180] sm:$0xff] %v479
                  %v481 = vld [vmem:[%s381 + $0x608] sm:$0xff]
                  %482 = vst [vmem:[%s382 + $0x188] sm:$0xff] %v481
                  %v483 = vld [vmem:[%s381 + $0x610] sm:$0xff]
                  %484 = vst [vmem:[%s382 + $0x190] sm:$0xff] %v483
                  %v485 = vld [vmem:[%s381 + $0x618] sm:$0xff]
                  %486 = vst [vmem:[%s382 + $0x198] sm:$0xff] %v485
                  %v487 = vld [vmem:[%s381 + $0x620] sm:$0xff]
                  %488 = vst [vmem:[%s382 + $0x1a0] sm:$0xff] %v487
                  %v489 = vld [vmem:[%s381 + $0x628] sm:$0xff]
                  %490 = vst [vmem:[%s382 + $0x1a8] sm:$0xff] %v489
                  %v491 = vld [vmem:[%s381 + $0x630] sm:$0xff]
                  %492 = vst [vmem:[%s382 + $0x1b0] sm:$0xff] %v491
                  %v493 = vld [vmem:[%s381 + $0x638] sm:$0xff]
                  %494 = vst [vmem:[%s382 + $0x1b8] sm:$0xff] %v493
                  %v495 = vld [vmem:[%s381 + $0x640] sm:$0xff]
                  %496 = vst [vmem:[%s382 + $0x1c0] sm:$0xff] %v495
                  %v497 = vld [vmem:[%s381 + $0x648] sm:$0xff]
                  %498 = vst [vmem:[%s382 + $0x1c8] sm:$0xff] %v497
                  %v499 = vld [vmem:[%s381 + $0x650] sm:$0xff]
                  %500 = vst [vmem:[%s382 + $0x1d0] sm:$0xff] %v499
                  %v501 = vld [vmem:[%s381 + $0x658] sm:$0xff]
                  %502 = vst [vmem:[%s382 + $0x1d8] sm:$0xff] %v501
                  %v503 = vld [vmem:[%s381 + $0x660] sm:$0xff]
                  %504 = vst [vmem:[%s382 + $0x1e0] sm:$0xff] %v503
                  %v505 = vld [vmem:[%s381 + $0x668] sm:$0xff]
                  %506 = vst [vmem:[%s382 + $0x1e8] sm:$0xff] %v505
                  %v507 = vld [vmem:[%s381 + $0x670] sm:$0xff]
                  %508 = vst [vmem:[%s382 + $0x1f0] sm:$0xff] %v507
                  %v509 = vld [vmem:[%s381 + $0x678] sm:$0xff]
                  %510 = vst [vmem:[%s382 + $0x1f8] sm:$0xff] %v509
                $region64: #{tpu_custom_call.1} parent=58 // loop_footer
                  %s380 = sadd.s32 1, %s376
                $region65: #{tpu_custom_call.1} parent=58 // loop_footer_branch
                  %375 = sbr.rel target = $region61
                $region66: #{tpu_custom_call.1} parent=58 // loop_exit
                  _
              $region59: #{tpu_custom_call.1} parent=43 // pred_fallthru
                _
              // Predicated region
              $region67: #{tpu_custom_call.1} parent=43 // pred_check
                _
              $region68: #{tpu_custom_call.1} parent=43 // pred_check_branch
                %512 = sbr.rel target = $region70
              $region69: #{tpu_custom_call.1} parent=43 // pred_region
                _
              $region70: #{tpu_custom_call.1} parent=43 // pred_fallthru
                _
            $region44: #{tpu_custom_call.1} parent=39 // pred_fallthru
              _
            // Predicated region
            $region45: #{tpu_custom_call.1} parent=39 // pred_check
              _
            $region46: #{tpu_custom_call.1} parent=39 // pred_check_branch
              %235 = sbr.rel target = $region48
            $region47: #{tpu_custom_call.1} parent=39 // pred_region
              loop: start=0, step=1, limit=1
              $region49: #{tpu_custom_call.1} parent=47 // loop_pre_header
                _
              $region50: #{tpu_custom_call.1} parent=47 // loop_header
                %s238 = sphi 0, %s242
                %p239 = scmp.ge.s32.totalorder %s238, 1
                %s243 = sphi %s229, %s229
                %s244 = sphi %s226, %s226
              $region51: #{tpu_custom_call.1} parent=47 // loop_header_branch
                %241 = sbr.rel (%p239) target = $region55
              $region52: #{tpu_custom_call.1} parent=47 // loop_body
                %v245 = vld [vmem:[%s243] sm:$0xff]
                %246 = vst [vmem:[%s244] sm:$0xff] %v245
                %v247 = vld [vmem:[%s243 + $0x8] sm:$0xff]
                %248 = vst [vmem:[%s244 + $0x8] sm:$0xff] %v247
                %v249 = vld [vmem:[%s243 + $0x10] sm:$0xff]
                %250 = vst [vmem:[%s244 + $0x10] sm:$0xff] %v249
                %v251 = vld [vmem:[%s243 + $0x18] sm:$0xff]
                %252 = vst [vmem:[%s244 + $0x18] sm:$0xff] %v251
                %v253 = vld [vmem:[%s243 + $0x20] sm:$0xff]
                %254 = vst [vmem:[%s244 + $0x20] sm:$0xff] %v253
                %v255 = vld [vmem:[%s243 + $0x28] sm:$0xff]
                %256 = vst [vmem:[%s244 + $0x28] sm:$0xff] %v255
                %v257 = vld [vmem:[%s243 + $0x30] sm:$0xff]
                %258 = vst [vmem:[%s244 + $0x30] sm:$0xff] %v257
                %v259 = vld [vmem:[%s243 + $0x38] sm:$0xff]
                %260 = vst [vmem:[%s244 + $0x38] sm:$0xff] %v259
                %v261 = vld [vmem:[%s243 + $0x40] sm:$0xff]
                %262 = vst [vmem:[%s244 + $0x40] sm:$0xff] %v261
                %v263 = vld [vmem:[%s243 + $0x48] sm:$0xff]
                %264 = vst [vmem:[%s244 + $0x48] sm:$0xff] %v263
                %v265 = vld [vmem:[%s243 + $0x50] sm:$0xff]
                %266 = vst [vmem:[%s244 + $0x50] sm:$0xff] %v265
                %v267 = vld [vmem:[%s243 + $0x58] sm:$0xff]
                %268 = vst [vmem:[%s244 + $0x58] sm:$0xff] %v267
                %v269 = vld [vmem:[%s243 + $0x60] sm:$0xff]
                %270 = vst [vmem:[%s244 + $0x60] sm:$0xff] %v269
                %v271 = vld [vmem:[%s243 + $0x68] sm:$0xff]
                %272 = vst [vmem:[%s244 + $0x68] sm:$0xff] %v271
                %v273 = vld [vmem:[%s243 + $0x70] sm:$0xff]
                %274 = vst [vmem:[%s244 + $0x70] sm:$0xff] %v273
                %v275 = vld [vmem:[%s243 + $0x78] sm:$0xff]
                %276 = vst [vmem:[%s244 + $0x78] sm:$0xff] %v275
                %v277 = vld [vmem:[%s243 + $0x200] sm:$0xff]
                %278 = vst [vmem:[%s244 + $0x80] sm:$0xff] %v277
                %v279 = vld [vmem:[%s243 + $0x208] sm:$0xff]
                %280 = vst [vmem:[%s244 + $0x88] sm:$0xff] %v279
                %v281 = vld [vmem:[%s243 + $0x210] sm:$0xff]
                %282 = vst [vmem:[%s244 + $0x90] sm:$0xff] %v281
                %v283 = vld [vmem:[%s243 + $0x218] sm:$0xff]
                %284 = vst [vmem:[%s244 + $0x98] sm:$0xff] %v283
                %v285 = vld [vmem:[%s243 + $0x220] sm:$0xff]
                %286 = vst [vmem:[%s244 + $0xa0] sm:$0xff] %v285
                %v287 = vld [vmem:[%s243 + $0x228] sm:$0xff]
                %288 = vst [vmem:[%s244 + $0xa8] sm:$0xff] %v287
                %v289 = vld [vmem:[%s243 + $0x230] sm:$0xff]
                %290 = vst [vmem:[%s244 + $0xb0] sm:$0xff] %v289
                %v291 = vld [vmem:[%s243 + $0x238] sm:$0xff]
                %292 = vst [vmem:[%s244 + $0xb8] sm:$0xff] %v291
                %v293 = vld [vmem:[%s243 + $0x240] sm:$0xff]
                %294 = vst [vmem:[%s244 + $0xc0] sm:$0xff] %v293
                %v295 = vld [vmem:[%s243 + $0x248] sm:$0xff]
                %296 = vst [vmem:[%s244 + $0xc8] sm:$0xff] %v295
                %v297 = vld [vmem:[%s243 + $0x250] sm:$0xff]
                %298 = vst [vmem:[%s244 + $0xd0] sm:$0xff] %v297
                %v299 = vld [vmem:[%s243 + $0x258] sm:$0xff]
                %300 = vst [vmem:[%s244 + $0xd8] sm:$0xff] %v299
                %v301 = vld [vmem:[%s243 + $0x260] sm:$0xff]
                %302 = vst [vmem:[%s244 + $0xe0] sm:$0xff] %v301
                %v303 = vld [vmem:[%s243 + $0x268] sm:$0xff]
                %304 = vst [vmem:[%s244 + $0xe8] sm:$0xff] %v303
                %v305 = vld [vmem:[%s243 + $0x270] sm:$0xff]
                %306 = vst [vmem:[%s244 + $0xf0] sm:$0xff] %v305
                %v307 = vld [vmem:[%s243 + $0x278] sm:$0xff]
                %308 = vst [vmem:[%s244 + $0xf8] sm:$0xff] %v307
                %v309 = vld [vmem:[%s243 + $0x400] sm:$0xff]
                %310 = vst [vmem:[%s244 + $0x100] sm:$0xff] %v309
                %v311 = vld [vmem:[%s243 + $0x408] sm:$0xff]
                %312 = vst [vmem:[%s244 + $0x108] sm:$0xff] %v311
                %v313 = vld [vmem:[%s243 + $0x410] sm:$0xff]
                %314 = vst [vmem:[%s244 + $0x110] sm:$0xff] %v313
                %v315 = vld [vmem:[%s243 + $0x418] sm:$0xff]
                %316 = vst [vmem:[%s244 + $0x118] sm:$0xff] %v315
                %v317 = vld [vmem:[%s243 + $0x420] sm:$0xff]
                %318 = vst [vmem:[%s244 + $0x120] sm:$0xff] %v317
                %v319 = vld [vmem:[%s243 + $0x428] sm:$0xff]
                %320 = vst [vmem:[%s244 + $0x128] sm:$0xff] %v319
                %v321 = vld [vmem:[%s243 + $0x430] sm:$0xff]
                %322 = vst [vmem:[%s244 + $0x130] sm:$0xff] %v321
                %v323 = vld [vmem:[%s243 + $0x438] sm:$0xff]
                %324 = vst [vmem:[%s244 + $0x138] sm:$0xff] %v323
                %v325 = vld [vmem:[%s243 + $0x440] sm:$0xff]
                %326 = vst [vmem:[%s244 + $0x140] sm:$0xff] %v325
                %v327 = vld [vmem:[%s243 + $0x448] sm:$0xff]
                %328 = vst [vmem:[%s244 + $0x148] sm:$0xff] %v327
                %v329 = vld [vmem:[%s243 + $0x450] sm:$0xff]
                %330 = vst [vmem:[%s244 + $0x150] sm:$0xff] %v329
                %v331 = vld [vmem:[%s243 + $0x458] sm:$0xff]
                %332 = vst [vmem:[%s244 + $0x158] sm:$0xff] %v331
                %v333 = vld [vmem:[%s243 + $0x460] sm:$0xff]
                %334 = vst [vmem:[%s244 + $0x160] sm:$0xff] %v333
                %v335 = vld [vmem:[%s243 + $0x468] sm:$0xff]
                %336 = vst [vmem:[%s244 + $0x168] sm:$0xff] %v335
                %v337 = vld [vmem:[%s243 + $0x470] sm:$0xff]
                %338 = vst [vmem:[%s244 + $0x170] sm:$0xff] %v337
                %v339 = vld [vmem:[%s243 + $0x478] sm:$0xff]
                %340 = vst [vmem:[%s244 + $0x178] sm:$0xff] %v339
                %v341 = vld [vmem:[%s243 + $0x600] sm:$0xff]
                %342 = vst [vmem:[%s244 + $0x180] sm:$0xff] %v341
                %v343 = vld [vmem:[%s243 + $0x608] sm:$0xff]
                %344 = vst [vmem:[%s244 + $0x188] sm:$0xff] %v343
                %v345 = vld [vmem:[%s243 + $0x610] sm:$0xff]
                %346 = vst [vmem:[%s244 + $0x190] sm:$0xff] %v345
                %v347 = vld [vmem:[%s243 + $0x618] sm:$0xff]
                %348 = vst [vmem:[%s244 + $0x198] sm:$0xff] %v347
                %v349 = vld [vmem:[%s243 + $0x620] sm:$0xff]
                %350 = vst [vmem:[%s244 + $0x1a0] sm:$0xff] %v349
                %v351 = vld [vmem:[%s243 + $0x628] sm:$0xff]
                %352 = vst [vmem:[%s244 + $0x1a8] sm:$0xff] %v351
                %v353 = vld [vmem:[%s243 + $0x630] sm:$0xff]
                %354 = vst [vmem:[%s244 + $0x1b0] sm:$0xff] %v353
                %v355 = vld [vmem:[%s243 + $0x638] sm:$0xff]
                %356 = vst [vmem:[%s244 + $0x1b8] sm:$0xff] %v355
                %v357 = vld [vmem:[%s243 + $0x640] sm:$0xff]
                %358 = vst [vmem:[%s244 + $0x1c0] sm:$0xff] %v357
                %v359 = vld [vmem:[%s243 + $0x648] sm:$0xff]
                %360 = vst [vmem:[%s244 + $0x1c8] sm:$0xff] %v359
                %v361 = vld [vmem:[%s243 + $0x650] sm:$0xff]
                %362 = vst [vmem:[%s244 + $0x1d0] sm:$0xff] %v361
                %v363 = vld [vmem:[%s243 + $0x658] sm:$0xff]
                %364 = vst [vmem:[%s244 + $0x1d8] sm:$0xff] %v363
                %v365 = vld [vmem:[%s243 + $0x660] sm:$0xff]
                %366 = vst [vmem:[%s244 + $0x1e0] sm:$0xff] %v365
                %v367 = vld [vmem:[%s243 + $0x668] sm:$0xff]
                %368 = vst [vmem:[%s244 + $0x1e8] sm:$0xff] %v367
                %v369 = vld [vmem:[%s243 + $0x670] sm:$0xff]
                %370 = vst [vmem:[%s244 + $0x1f0] sm:$0xff] %v369
                %v371 = vld [vmem:[%s243 + $0x678] sm:$0xff]
                %372 = vst [vmem:[%s244 + $0x1f8] sm:$0xff] %v371
              $region53: #{tpu_custom_call.1} parent=47 // loop_footer
                %s242 = sadd.s32 1, %s238
              $region54: #{tpu_custom_call.1} parent=47 // loop_footer_branch
                %237 = sbr.rel target = $region50
              $region55: #{tpu_custom_call.1} parent=47 // loop_exit
                _
            $region48: #{tpu_custom_call.1} parent=39 // pred_fallthru
              _
          $region40: #{tpu_custom_call.1} parent=35 // pred_fallthru
            _
          %513 = vnop
        $region36: #{tpu_custom_call.1} parent=27 // pred_fallthru
          _
      $region28: #{tpu_custom_call.1} parent=5 // pred_fallthru
        _
      %p514 = scmp.le.s32.totalorder 1, %s16
      %p515 = scmp.lt.s32.totalorder %s16, 5
      %p516 = pnand %p514, %p515
      %p517 = pneg %p516
      // Predicated region
      $region71: #{tpu_custom_call.1} parent=5 // pred_check
        _
      $region72: #{tpu_custom_call.1} parent=5 // pred_check_branch
        %519 = sbr.rel (%p516) target = $region74
      $region73: #{tpu_custom_call.1} parent=5 // pred_region
        %s520 = ssub.s32 %s16, 1
        %s521 = sand.u32 %s55, 1
        %s522 = sand.u32 %s55, 1
        %s523 = smul.addr %s522, 512
        %s524 = scalar_lea.vmem [#allocation2], %s523
        // Predicated region
        $region75: #{tpu_custom_call.1} parent=73 // pred_check
          %p525 = pneg %p68
        $region76: #{tpu_custom_call.1} parent=73 // pred_check_branch
          %527 = sbr.rel (%p525) target = $region78
        $region77: #{tpu_custom_call.1} parent=73 // pred_region
          _
        $region78: #{tpu_custom_call.1} parent=73 // pred_fallthru
          _
        %s528 = smul.u32 16, %s21
        %p529 = scmp.lt.s32.totalorder %s528, 63
        %s530 = scalar_select %p529, %s528, 63
        %s531 = smul.addr %s530, 8
        %s532 = scalar_lea.vmem %s0, %s531
        %p533 = pneg %p42
        %p534 = pneg %p39
        %s535 = sand.u32 %s55, 1
        %s536 = sand.u32 %s55, 1
        %s537 = smul.addr %s536, 512
        %s538 = scalar_lea.vmem [#allocation2], %s537
        %p539 = pneg %p68
        %p540 = pneg %p65
        %p541 = pneg %p89
        %p542 = pneg %p86
        %p543 = pneg %p110
        %p544 = pneg %p107
        %p545 = pneg %p131
        %p546 = pneg %p128
        %p547 = pneg %p157
        %p548 = pneg %p154
        %s549 = sand.u32 %s144, 1
        %s550 = sand.u32 %s144, 1
        %s551 = smul.addr %s550, 512
        %s552 = scalar_lea.vmem [#allocation3], %s551
        %p553 = pneg %p183
        %p554 = pneg %p180
        %s555 = sand.u32 %s170, 1
        %s556 = scalar_lea.sflag [#allocation5], %s555
        %s557 = sand.u32 %s170, 1
        %s558 = smul.addr %s557, 2
        %s559 = scalar_lea.vmem [#allocation4], %s558
        %s560 = smul.u32 16, %s21
        %p561 = scmp.lt.s32.totalorder %s560, 63
        %s562 = scalar_select %p561, %s560, 63
        %s563 = smul.addr %s562, 8
        %s564 = scalar_lea.vmem %s0, %s563
        %s565 = smul.u32 16, %s21
        %s566 = smul.u32 16, %s21
        %s567 = smul.u32 16, %s21
        %v568 = vld [vmem:[%s564] sm:$0xff]
        %v569 = vld [vmem:[%s564 + $0x8] sm:$0xff]
        %v570 = vld [vmem:[%s564 + $0x10] sm:$0xff]
        %v571 = vld [vmem:[%s564 + $0x18] sm:$0xff]
        %v572 = vld [vmem:[%s564 + $0x20] sm:$0xff]
        %v573 = vld [vmem:[%s564 + $0x28] sm:$0xff]
        %v574 = vld [vmem:[%s564 + $0x30] sm:$0xff]
        %v575 = vld [vmem:[%s564 + $0x38] sm:$0xff]
        %v576 = vld [vmem:[%s564 + $0x40] sm:$0xff]
        %v577 = vld [vmem:[%s564 + $0x48] sm:$0xff]
        %v578 = vld [vmem:[%s564 + $0x50] sm:$0xff]
        %v579 = vld [vmem:[%s564 + $0x58] sm:$0xff]
        %v580 = vld [vmem:[%s564 + $0x60] sm:$0xff]
        %v581 = vld [vmem:[%s564 + $0x68] sm:$0xff]
        %v582 = vld [vmem:[%s564 + $0x70] sm:$0xff]
        %v583 = vld [vmem:[%s564 + $0x78] sm:$0xff]
        %v584 = vld [vmem:[%s3] sm:$0xff]
        %v585 = vld [vmem:[%s3 + $0x8] sm:$0xff]
        %v586 = vld [vmem:[%s524] sm:$0xff]
        %v587 = vld [vmem:[%s524 + $0x8] sm:$0xff]
        %v588 = vld [vmem:[%s524 + $0x10] sm:$0xff]
        %v589 = vld [vmem:[%s524 + $0x18] sm:$0xff]
        %v590 = vld [vmem:[%s524 + $0x20] sm:$0xff]
        %v591 = vld [vmem:[%s524 + $0x28] sm:$0xff]
        %v592 = vld [vmem:[%s524 + $0x30] sm:$0xff]
        %v593 = vld [vmem:[%s524 + $0x38] sm:$0xff]
        %v594 = vld [vmem:[%s524 + $0x40] sm:$0xff]
        %v595 = vld [vmem:[%s524 + $0x48] sm:$0xff]
        %v596 = vld [vmem:[%s524 + $0x50] sm:$0xff]
        %v597 = vld [vmem:[%s524 + $0x58] sm:$0xff]
        %v598 = vld [vmem:[%s524 + $0x60] sm:$0xff]
        %v599 = vld [vmem:[%s524 + $0x68] sm:$0xff]
        %v600 = vld [vmem:[%s524 + $0x70] sm:$0xff]
        %v601 = vld [vmem:[%s524 + $0x78] sm:$0xff]
        %v602 = vld [vmem:[%s2] sm:$0xff]
        %vm603 = vcmask 64512
        %v605 = vsel %vm603, %v568, 0
        %v608 = vsel %vm603, %v569, 0
        %v611 = vsel %vm603, %v570, 0
        %v614 = vsel %vm603, %v571, 0
        %v617 = vsel %vm603, %v572, 0
        %v620 = vsel %vm603, %v573, 0
        %v623 = vsel %vm603, %v574, 0
        %v626 = vsel %vm603, %v575, 0
        %v629 = vsel %vm603, %v576, 0
        %v632 = vsel %vm603, %v577, 0
        %v635 = vsel %vm603, %v578, 0
        %v638 = vsel %vm603, %v579, 0
        %v641 = vsel %vm603, %v580, 0
        %v644 = vsel %vm603, %v581, 0
        %v647 = vsel %vm603, %v582, 0
        %v650 = vsel %vm603, %v583, 0
        %652 = vmatprep.subr.mxu0 0.0
        %653 = vmatpush1.msra.mxu0 %v602
        %654 = vmatprep.subr.mxu0 0.0
        %655 = vmatpush1.msra.mxu0 0.0
        %656 = vmatprep.subr.mxu0 0.0
        %657 = vmatpush1.msra.mxu0 0.0
        %658 = vmatprep.subr.mxu0 0.0
        %659 = vmatpush1.msra.mxu0 0.0
        %660 = vmatprep.subr.mxu0 0.0
        %661 = vmatpush1.msra.mxu0 0.0
        %662 = vmatprep.subr.mxu0 0.0
        %663 = vmatpush1.msra.mxu0 0.0
        %664 = vmatprep.subr.mxu0 0.0
        %665 = vmatpush1.msra.mxu0 0.0
        %666 = vmatprep.subr.mxu0 0.0
        %667 = vmatpush1.msra.mxu0 0.0
        %668 = vmatprep.subr.mxu0 0.0
        %669 = vmatpush1.msra.mxu0 0.0
        %670 = vmatprep.subr.mxu0 0.0
        %671 = vmatpush1.msra.mxu0 0.0
        %672 = vmatprep.subr.mxu0 0.0
        %673 = vmatpush1.msra.mxu0 0.0
        %674 = vmatprep.subr.mxu0 0.0
        %675 = vmatpush1.msra.mxu0 0.0
        %676 = vmatprep.subr.mxu0 0.0
        %677 = vmatpush1.msra.mxu0 0.0
        %678 = vmatprep.subr.mxu0 0.0
        %679 = vmatpush1.msra.mxu0 0.0
        %680 = vmatprep.subr.mxu0 0.0
        %681 = vmatpush1.msra.mxu0 0.0
        %682 = vmatprep.subr.mxu0 0.0
        %683 = vmatpush1.msra.mxu0 0.0
        %684 = vmatprep.subr.mxu0 0.0
        %685 = vmatpush1.msra.mxu0 0.0
        %686 = vmatprep.subr.mxu0 0.0
        %687 = vmatpush1.msra.mxu0 0.0
        %688 = vmatprep.subr.mxu0 0.0
        %689 = vmatpush1.msra.mxu0 0.0
        %690 = vmatprep.subr.mxu0 0.0
        %691 = vmatpush1.msra.mxu0 0.0
        %692 = vmatprep.subr.mxu0 0.0
        %693 = vmatpush1.msra.mxu0 0.0
        %694 = vmatprep.subr.mxu0 0.0
        %695 = vmatpush1.msra.mxu0 0.0
        %696 = vmatprep.subr.mxu0 0.0
        %697 = vmatpush1.msra.mxu0 0.0
        %698 = vmatprep.subr.mxu0 0.0
        %699 = vmatpush1.msra.mxu0 0.0
        %700 = vmatprep.subr.mxu0 0.0
        %701 = vmatpush1.msra.mxu0 0.0
        %702 = vmatprep.subr.mxu0 0.0
        %703 = vmatpush1.msra.mxu0 0.0
        %704 = vmatprep.subr.mxu0 0.0
        %705 = vmatpush1.msra.mxu0 0.0
        %706 = vmatprep.subr.mxu0 0.0
        %707 = vmatpush1.msra.mxu0 0.0
        %708 = vmatprep.subr.mxu0 0.0
        %709 = vmatpush1.msra.mxu0 0.0
        %710 = vmatprep.subr.mxu0 0.0
        %711 = vmatpush1.msra.mxu0 0.0
        %712 = vmatprep.subr.mxu0 0.0
        %713 = vmatpush1.msra.mxu0 0.0
        %714 = vmatprep.subr.mxu0 0.0
        %715 = vmatpush1.msra.mxu0 0.0
        %716 = vmatprep.mubr.f32.mxu0 0.0
        %717 = vmatmul.mubr.f32.gmra.mrb[0].mxu0 %v605
        %v718 = vpop.f32.mrb[0].mxu0
        %v719 = vadd.f32 0.0, %v718
        %v720 = vpop.f32.mrb[0].mxu0
        %721 = vmatprep.mubr.f32.mxu0 0.0
        %722 = vmatmul.mubr.f32.gmra.mrb[0].mxu0 %v608
        %v723 = vpop.f32.mrb[0].mxu0
        %v724 = vadd.f32 0.0, %v723
        %v725 = vpop.f32.mrb[0].mxu0
        %726 = vmatprep.mubr.f32.mxu0 0.0
        %727 = vmatmul.mubr.f32.gmra.mrb[0].mxu0 %v611
        %v728 = vpop.f32.mrb[0].mxu0
        %v729 = vadd.f32 0.0, %v728
        %v730 = vpop.f32.mrb[0].mxu0
        %731 = vmatprep.mubr.f32.mxu0 0.0
        %732 = vmatmul.mubr.f32.gmra.mrb[0].mxu0 %v614
        %v733 = vpop.f32.mrb[0].mxu0
        %v734 = vadd.f32 0.0, %v733
        %v735 = vpop.f32.mrb[0].mxu0
        %736 = vmatprep.mubr.f32.mxu0 0.0
        %737 = vmatmul.mubr.f32.gmra.mrb[0].mxu0 %v617
        %v738 = vpop.f32.mrb[0].mxu0
        %v739 = vadd.f32 0.0, %v738
        %v740 = vpop.f32.mrb[0].mxu0
        %741 = vmatprep.mubr.f32.mxu0 0.0
        %742 = vmatmul.mubr.f32.gmra.mrb[0].mxu0 %v620
        %v743 = vpop.f32.mrb[0].mxu0
        %v744 = vadd.f32 0.0, %v743
        %v745 = vpop.f32.mrb[0].mxu0
        %746 = vmatprep.mubr.f32.mxu0 0.0
        %747 = vmatmul.mubr.f32.gmra.mrb[0].mxu0 %v623
        %v748 = vpop.f32.mrb[0].mxu0
        %v749 = vadd.f32 0.0, %v748
        %v750 = vpop.f32.mrb[0].mxu0
        %751 = vmatprep.mubr.f32.mxu0 0.0
        %752 = vmatmul.mubr.f32.gmra.mrb[0].mxu0 %v626
        %v753 = vpop.f32.mrb[0].mxu0
        %v754 = vadd.f32 0.0, %v753
        %v755 = vpop.f32.mrb[0].mxu0
        %756 = vmatprep.mubr.f32.mxu0 0.0
        %757 = vmatmul.mubr.f32.gmra.mrb[0].mxu0 %v629
        %v758 = vpop.f32.mrb[0].mxu0
        %v759 = vadd.f32 0.0, %v758
        %v760 = vpop.f32.mrb[0].mxu0
        %761 = vmatprep.mubr.f32.mxu0 0.0
        %762 = vmatmul.mubr.f32.gmra.mrb[0].mxu0 %v632
        %v763 = vpop.f32.mrb[0].mxu0
        %v764 = vadd.f32 0.0, %v763
        %v765 = vpop.f32.mrb[0].mxu0
        %766 = vmatprep.mubr.f32.mxu0 0.0
        %767 = vmatmul.mubr.f32.gmra.mrb[0].mxu0 %v635
        %v768 = vpop.f32.mrb[0].mxu0
        %v769 = vadd.f32 0.0, %v768
        %v770 = vpop.f32.mrb[0].mxu0
        %771 = vmatprep.mubr.f32.mxu0 0.0
        %772 = vmatmul.mubr.f32.gmra.mrb[0].mxu0 %v638
        %v773 = vpop.f32.mrb[0].mxu0
        %v774 = vadd.f32 0.0, %v773
        %v775 = vpop.f32.mrb[0].mxu0
        %776 = vmatprep.mubr.f32.mxu0 0.0
        %777 = vmatmul.mubr.f32.gmra.mrb[0].mxu0 %v641
        %v778 = vpop.f32.mrb[0].mxu0
        %v779 = vadd.f32 0.0, %v778
        %v780 = vpop.f32.mrb[0].mxu0
        %781 = vmatprep.mubr.f32.mxu0 0.0
        %782 = vmatmul.mubr.f32.gmra.mrb[0].mxu0 %v644
        %v783 = vpop.f32.mrb[0].mxu0
        %v784 = vadd.f32 0.0, %v783
        %v785 = vpop.f32.mrb[0].mxu0
        %786 = vmatprep.mubr.f32.mxu0 0.0
        %787 = vmatmul.mubr.f32.gmra.mrb[0].mxu0 %v647
        %v788 = vpop.f32.mrb[0].mxu0
        %v789 = vadd.f32 0.0, %v788
        %v790 = vpop.f32.mrb[0].mxu0
        %791 = vmatprep.mubr.f32.mxu0 0.0
        %792 = vmatmul.mubr.f32.gmra.mrb[0].mxu0 %v650
        %v793 = vpop.f32.mrb[0].mxu0
        %v794 = vadd.f32 0.0, %v793
        %v795 = vpop.f32.mrb[0].mxu0
        %796 = vdwg.mxu0
        %vm797 = vcmask 130048
        %v799 = vsel %vm797, %v586, 0
        %v802 = vsel %vm797, %v587, 0
        %v805 = vsel %vm797, %v588, 0
        %v808 = vsel %vm797, %v589, 0
        %v811 = vsel %vm797, %v590, 0
        %v814 = vsel %vm797, %v591, 0
        %v817 = vsel %vm797, %v592, 0
        %v820 = vsel %vm797, %v593, 0
        %v823 = vsel %vm797, %v594, 0
        %v826 = vsel %vm797, %v595, 0
        %v829 = vsel %vm797, %v596, 0
        %v832 = vsel %vm797, %v597, 0
        %v835 = vsel %vm797, %v598, 0
        %v838 = vsel %vm797, %v599, 0
        %v841 = vsel %vm797, %v600, 0
        %v844 = vsel %vm797, %v601, 0
        %846 = vmatprep.subr.mxu0 0.0
        %847 = vmatpush1.msra.mxu0 %v584
        %848 = vmatprep.subr.mxu0 0.0
        %849 = vmatpush1.msra.mxu0 %v585
        %850 = vmatprep.subr.mxu0 0.0
        %851 = vmatpush1.msra.mxu0 0.0
        %852 = vmatprep.subr.mxu0 0.0
        %853 = vmatpush1.msra.mxu0 0.0
        %854 = vmatprep.subr.mxu0 0.0
        %855 = vmatpush1.msra.mxu0 0.0
        %856 = vmatprep.subr.mxu0 0.0
        %857 = vmatpush1.msra.mxu0 0.0
        %858 = vmatprep.subr.mxu0 0.0
        %859 = vmatpush1.msra.mxu0 0.0
        %860 = vmatprep.subr.mxu0 0.0
        %861 = vmatpush1.msra.mxu0 0.0
        %862 = vmatprep.subr.mxu0 0.0
        %863 = vmatpush1.msra.mxu0 0.0
        %864 = vmatprep.subr.mxu0 0.0
        %865 = vmatpush1.msra.mxu0 0.0
        %866 = vmatprep.subr.mxu0 0.0
        %867 = vmatpush1.msra.mxu0 0.0
        %868 = vmatprep.subr.mxu0 0.0
        %869 = vmatpush1.msra.mxu0 0.0
        %870 = vmatprep.subr.mxu0 0.0
        %871 = vmatpush1.msra.mxu0 0.0
        %872 = vmatprep.subr.mxu0 0.0
        %873 = vmatpush1.msra.mxu0 0.0
        %874 = vmatprep.subr.mxu0 0.0
        %875 = vmatpush1.msra.mxu0 0.0
        %876 = vmatprep.subr.mxu0 0.0
        %877 = vmatpush1.msra.mxu0 0.0
        %878 = vmatprep.subr.mxu0 0.0
        %879 = vmatpush1.msra.mxu0 0.0
        %880 = vmatprep.subr.mxu0 0.0
        %881 = vmatpush1.msra.mxu0 0.0
        %882 = vmatprep.subr.mxu0 0.0
        %883 = vmatpush1.msra.mxu0 0.0
        %884 = vmatprep.subr.mxu0 0.0
        %885 = vmatpush1.msra.mxu0 0.0
        %886 = vmatprep.subr.mxu0 0.0
        %887 = vmatpush1.msra.mxu0 0.0
        %888 = vmatprep.subr.mxu0 0.0
        %889 = vmatpush1.msra.mxu0 0.0
        %890 = vmatprep.subr.mxu0 0.0
        %891 = vmatpush1.msra.mxu0 0.0
        %892 = vmatprep.subr.mxu0 0.0
        %893 = vmatpush1.msra.mxu0 0.0
        %894 = vmatprep.subr.mxu0 0.0
        %895 = vmatpush1.msra.mxu0 0.0
        %896 = vmatprep.subr.mxu0 0.0
        %897 = vmatpush1.msra.mxu0 0.0
        %898 = vmatprep.subr.mxu0 0.0
        %899 = vmatpush1.msra.mxu0 0.0
        %900 = vmatprep.subr.mxu0 0.0
        %901 = vmatpush1.msra.mxu0 0.0
        %902 = vmatprep.subr.mxu0 0.0
        %903 = vmatpush1.msra.mxu0 0.0
        %904 = vmatprep.subr.mxu0 0.0
        %905 = vmatpush1.msra.mxu0 0.0
        %906 = vmatprep.subr.mxu0 0.0
        %907 = vmatpush1.msra.mxu0 0.0
        %908 = vmatprep.subr.mxu0 0.0
        %909 = vmatpush1.msra.mxu0 0.0
        %910 = vmatprep.mubr.f32.mxu0 0.0
        %911 = vmatmul.mubr.f32.gmra.mrb[0].mxu0 %v799
        %v912 = vpop.f32.mrb[0].mxu0
        %v913 = vadd.f32 %v719, %v912
        %v914 = vpop.f32.mrb[0].mxu0
        %915 = vmatprep.mubr.f32.mxu0 0.0
        %916 = vmatmul.mubr.f32.gmra.mrb[0].mxu0 %v802
        %v917 = vpop.f32.mrb[0].mxu0
        %v918 = vadd.f32 %v724, %v917
        %v919 = vpop.f32.mrb[0].mxu0
        %920 = vmatprep.mubr.f32.mxu0 0.0
        %921 = vmatmul.mubr.f32.gmra.mrb[0].mxu0 %v805
        %v922 = vpop.f32.mrb[0].mxu0
        %v923 = vadd.f32 %v729, %v922
        %v924 = vpop.f32.mrb[0].mxu0
        %925 = vmatprep.mubr.f32.mxu0 0.0
        %926 = vmatmul.mubr.f32.gmra.mrb[0].mxu0 %v808
        %v927 = vpop.f32.mrb[0].mxu0
        %v928 = vadd.f32 %v734, %v927
        %v929 = vpop.f32.mrb[0].mxu0
        %930 = vmatprep.mubr.f32.mxu0 0.0
        %931 = vmatmul.mubr.f32.gmra.mrb[0].mxu0 %v811
        %v932 = vpop.f32.mrb[0].mxu0
        %v933 = vadd.f32 %v739, %v932
        %v934 = vpop.f32.mrb[0].mxu0
        %935 = vmatprep.mubr.f32.mxu0 0.0
        %936 = vmatmul.mubr.f32.gmra.mrb[0].mxu0 %v814
        %v937 = vpop.f32.mrb[0].mxu0
        %v938 = vadd.f32 %v744, %v937
        %v939 = vpop.f32.mrb[0].mxu0
        %940 = vmatprep.mubr.f32.mxu0 0.0
        %941 = vmatmul.mubr.f32.gmra.mrb[0].mxu0 %v817
        %v942 = vpop.f32.mrb[0].mxu0
        %v943 = vadd.f32 %v749, %v942
        %v944 = vpop.f32.mrb[0].mxu0
        %945 = vmatprep.mubr.f32.mxu0 0.0
        %946 = vmatmul.mubr.f32.gmra.mrb[0].mxu0 %v820
        %v947 = vpop.f32.mrb[0].mxu0
        %v948 = vadd.f32 %v754, %v947
        %v949 = vpop.f32.mrb[0].mxu0
        %950 = vmatprep.mubr.f32.mxu0 0.0
        %951 = vmatmul.mubr.f32.gmra.mrb[0].mxu0 %v823
        %v952 = vpop.f32.mrb[0].mxu0
        %v953 = vadd.f32 %v759, %v952
        %v954 = vpop.f32.mrb[0].mxu0
        %955 = vmatprep.mubr.f32.mxu0 0.0
        %956 = vmatmul.mubr.f32.gmra.mrb[0].mxu0 %v826
        %v957 = vpop.f32.mrb[0].mxu0
        %v958 = vadd.f32 %v764, %v957
        %v959 = vpop.f32.mrb[0].mxu0
        %960 = vmatprep.mubr.f32.mxu0 0.0
        %961 = vmatmul.mubr.f32.gmra.mrb[0].mxu0 %v829
        %v962 = vpop.f32.mrb[0].mxu0
        %v963 = vadd.f32 %v769, %v962
        %v964 = vpop.f32.mrb[0].mxu0
        %965 = vmatprep.mubr.f32.mxu0 0.0
        %966 = vmatmul.mubr.f32.gmra.mrb[0].mxu0 %v832
        %v967 = vpop.f32.mrb[0].mxu0
        %v968 = vadd.f32 %v774, %v967
        %v969 = vpop.f32.mrb[0].mxu0
        %970 = vmatprep.mubr.f32.mxu0 0.0
        %971 = vmatmul.mubr.f32.gmra.mrb[0].mxu0 %v835
        %v972 = vpop.f32.mrb[0].mxu0
        %v973 = vadd.f32 %v779, %v972
        %v974 = vpop.f32.mrb[0].mxu0
        %975 = vmatprep.mubr.f32.mxu0 0.0
        %976 = vmatmul.mubr.f32.gmra.mrb[0].mxu0 %v838
        %v977 = vpop.f32.mrb[0].mxu0
        %v978 = vadd.f32 %v784, %v977
        %v979 = vpop.f32.mrb[0].mxu0
        %980 = vmatprep.mubr.f32.mxu0 0.0
        %981 = vmatmul.mubr.f32.gmra.mrb[0].mxu0 %v841
        %v982 = vpop.f32.mrb[0].mxu0
        %v983 = vadd.f32 %v789, %v982
        %v984 = vpop.f32.mrb[0].mxu0
        %985 = vmatprep.mubr.f32.mxu0 0.0
        %986 = vmatmul.mubr.f32.gmra.mrb[0].mxu0 %v844
        %v987 = vpop.f32.mrb[0].mxu0
        %v988 = vadd.f32 %v794, %v987
        %v989 = vpop.f32.mrb[0].mxu0
        %990 = vdwg.mxu0
        %v991 = vld [vmem:[%s4] sm:$0x1]
        %v993 = vlaneseq
        %v994 = vshrl.u32 %v993, 7
        %v995 = vsub.s32 0, %v994
        %v996 = vrot.slane %v991, %v995
        %v998 = vadd.f32 %v913, %v996
        %v999 = vadd.f32 %v918, %v996
        %v1000 = vadd.f32 %v923, %v996
        %v1001 = vadd.f32 %v928, %v996
        %v1002 = vadd.f32 %v933, %v996
        %v1003 = vadd.f32 %v938, %v996
        %v1004 = vadd.f32 %v943, %v996
        %v1005 = vadd.f32 %v948, %v996
        %v1006 = vadd.f32 %v953, %v996
        %v1007 = vadd.f32 %v958, %v996
        %v1008 = vadd.f32 %v963, %v996
        %v1009 = vadd.f32 %v968, %v996
        %v1010 = vadd.f32 %v973, %v996
        %v1011 = vadd.f32 %v978, %v996
        %v1012 = vadd.f32 %v983, %v996
        %v1013 = vadd.f32 %v988, %v996
        %1014 = vst.msk [vmem:[%s552] sm:$0xff] %vm797, %v998
        %1015 = vst.msk [vmem:[%s552 + $0x8] sm:$0xff] %vm797, %v999
        %1016 = vst.msk [vmem:[%s552 + $0x10] sm:$0xff] %vm797, %v1000
        %1017 = vst.msk [vmem:[%s552 + $0x18] sm:$0xff] %vm797, %v1001
        %1018 = vst.msk [vmem:[%s552 + $0x20] sm:$0xff] %vm797, %v1002
        %1019 = vst.msk [vmem:[%s552 + $0x28] sm:$0xff] %vm797, %v1003
        %1020 = vst.msk [vmem:[%s552 + $0x30] sm:$0xff] %vm797, %v1004
        %1021 = vst.msk [vmem:[%s552 + $0x38] sm:$0xff] %vm797, %v1005
        %1022 = vst.msk [vmem:[%s552 + $0x40] sm:$0xff] %vm797, %v1006
        %1023 = vst.msk [vmem:[%s552 + $0x48] sm:$0xff] %vm797, %v1007
        %1024 = vst.msk [vmem:[%s552 + $0x50] sm:$0xff] %vm797, %v1008
        %1025 = vst.msk [vmem:[%s552 + $0x58] sm:$0xff] %vm797, %v1009
        %1026 = vst.msk [vmem:[%s552 + $0x60] sm:$0xff] %vm797, %v1010
        %1027 = vst.msk [vmem:[%s552 + $0x68] sm:$0xff] %vm797, %v1011
        %1028 = vst.msk [vmem:[%s552 + $0x70] sm:$0xff] %vm797, %v1012
        %1029 = vst.msk [vmem:[%s552 + $0x78] sm:$0xff] %vm797, %v1013
        %v1030 = vsel %vm797, %v998, 0.0
        %v1031 = vsel %vm797, %v999, 0.0
        %v1032 = vadd.f32 %v1030, %v1031
        %v1033 = vsel %vm797, %v1000, 0.0
        %v1034 = vadd.f32 %v1032, %v1033
        %v1035 = vsel %vm797, %v1001, 0.0
        %v1036 = vadd.f32 %v1034, %v1035
        %v1037 = vsel %vm797, %v1002, 0.0
        %v1038 = vadd.f32 %v1036, %v1037
        %v1039 = vsel %vm797, %v1003, 0.0
        %v1040 = vadd.f32 %v1038, %v1039
        %v1041 = vsel %vm797, %v1004, 0.0
        %v1042 = vadd.f32 %v1040, %v1041
        %v1043 = vsel %vm797, %v1005, 0.0
        %v1044 = vadd.f32 %v1042, %v1043
        %v1045 = vsel %vm797, %v1006, 0.0
        %v1046 = vadd.f32 %v1044, %v1045
        %v1047 = vsel %vm797, %v1007, 0.0
        %v1048 = vadd.f32 %v1046, %v1047
        %v1049 = vsel %vm797, %v1008, 0.0
        %v1050 = vadd.f32 %v1048, %v1049
        %v1051 = vsel %vm797, %v1009, 0.0
        %v1052 = vadd.f32 %v1050, %v1051
        %v1053 = vsel %vm797, %v1010, 0.0
        %v1054 = vadd.f32 %v1052, %v1053
        %v1055 = vsel %vm797, %v1011, 0.0
        %v1056 = vadd.f32 %v1054, %v1055
        %v1057 = vsel %vm797, %v1012, 0.0
        %v1058 = vadd.f32 %v1056, %v1057
        %v1059 = vsel %vm797, %v1013, 0.0
        %v1060 = vadd.f32 %v1058, %v1059
        %v1061 = vrot.slane %v1060, 4
        %v1062 = vadd.f32 %v1060, %v1061
        %v1063 = vrot.slane %v1062, 2
        %v1064 = vadd.f32 %v1062, %v1063
        %v1065 = vrot.slane %v1064, 1
        %v1066 = vadd.f32 %v1064, %v1065
        %v1067 = vadd.f32 %v1066, 0.0
        %v1068 = vmul.f32 %v998, %v998
        %v1069 = vmul.f32 %v999, %v999
        %v1070 = vmul.f32 %v1000, %v1000
        %v1071 = vmul.f32 %v1001, %v1001
        %v1072 = vmul.f32 %v1002, %v1002
        %v1073 = vmul.f32 %v1003, %v1003
        %v1074 = vmul.f32 %v1004, %v1004
        %v1075 = vmul.f32 %v1005, %v1005
        %v1076 = vmul.f32 %v1006, %v1006
        %v1077 = vmul.f32 %v1007, %v1007
        %v1078 = vmul.f32 %v1008, %v1008
        %v1079 = vmul.f32 %v1009, %v1009
        %v1080 = vmul.f32 %v1010, %v1010
        %v1081 = vmul.f32 %v1011, %v1011
        %v1082 = vmul.f32 %v1012, %v1012
        %v1083 = vmul.f32 %v1013, %v1013
        %v1084 = vsel %vm797, %v1068, 0.0
        %v1085 = vsel %vm797, %v1069, 0.0
        %v1086 = vadd.f32 %v1084, %v1085
        %v1087 = vsel %vm797, %v1070, 0.0
        %v1088 = vadd.f32 %v1086, %v1087
        %v1089 = vsel %vm797, %v1071, 0.0
        %v1090 = vadd.f32 %v1088, %v1089
        %v1091 = vsel %vm797, %v1072, 0.0
        %v1092 = vadd.f32 %v1090, %v1091
        %v1093 = vsel %vm797, %v1073, 0.0
        %v1094 = vadd.f32 %v1092, %v1093
        %v1095 = vsel %vm797, %v1074, 0.0
        %v1096 = vadd.f32 %v1094, %v1095
        %v1097 = vsel %vm797, %v1075, 0.0
        %v1098 = vadd.f32 %v1096, %v1097
        %v1099 = vsel %vm797, %v1076, 0.0
        %v1100 = vadd.f32 %v1098, %v1099
        %v1101 = vsel %vm797, %v1077, 0.0
        %v1102 = vadd.f32 %v1100, %v1101
        %v1103 = vsel %vm797, %v1078, 0.0
        %v1104 = vadd.f32 %v1102, %v1103
        %v1105 = vsel %vm797, %v1079, 0.0
        %v1106 = vadd.f32 %v1104, %v1105
        %v1107 = vsel %vm797, %v1080, 0.0
        %v1108 = vadd.f32 %v1106, %v1107
        %v1109 = vsel %vm797, %v1081, 0.0
        %v1110 = vadd.f32 %v1108, %v1109
        %v1111 = vsel %vm797, %v1082, 0.0
        %v1112 = vadd.f32 %v1110, %v1111
        %v1113 = vsel %vm797, %v1083, 0.0
        %v1114 = vadd.f32 %v1112, %v1113
        %v1115 = vrot.slane %v1114, 4
        %v1116 = vadd.f32 %v1114, %v1115
        %v1117 = vrot.slane %v1116, 2
        %v1118 = vadd.f32 %v1116, %v1117
        %v1119 = vrot.slane %v1118, 1
        %v1120 = vadd.f32 %v1118, %v1119
        %v1121 = vadd.f32 %v1120, 0.0
        %s1122 = scalar_lea.vmem %s524, 128 [#allocation2]
        %v1123 = vld [vmem:[%s1122] sm:$0xff]
        %v1124 = vld [vmem:[%s1122 + $0x8] sm:$0xff]
        %v1125 = vld [vmem:[%s1122 + $0x10] sm:$0xff]
        %v1126 = vld [vmem:[%s1122 + $0x18] sm:$0xff]
        %v1127 = vld [vmem:[%s1122 + $0x20] sm:$0xff]
        %v1128 = vld [vmem:[%s1122 + $0x28] sm:$0xff]
        %v1129 = vld [vmem:[%s1122 + $0x30] sm:$0xff]
        %v1130 = vld [vmem:[%s1122 + $0x38] sm:$0xff]
        %v1131 = vld [vmem:[%s1122 + $0x40] sm:$0xff]
        %v1132 = vld [vmem:[%s1122 + $0x48] sm:$0xff]
        %v1133 = vld [vmem:[%s1122 + $0x50] sm:$0xff]
        %v1134 = vld [vmem:[%s1122 + $0x58] sm:$0xff]
        %v1135 = vld [vmem:[%s1122 + $0x60] sm:$0xff]
        %v1136 = vld [vmem:[%s1122 + $0x68] sm:$0xff]
        %v1137 = vld [vmem:[%s1122 + $0x70] sm:$0xff]
        %v1138 = vld [vmem:[%s1122 + $0x78] sm:$0xff]
        %s1139 = scalar_lea.vmem %s2, 8
        %v1140 = vld [vmem:[%s1139] sm:$0xff]
        %1141 = vmatprep.subr.mxu0 0.0
        %1142 = vmatpush1.msra.mxu0 %v1140
        %1143 = vmatprep.subr.mxu0 0.0
        %1144 = vmatpush1.msra.mxu0 0.0
        %1145 = vmatprep.subr.mxu0 0.0
        %1146 = vmatpush1.msra.mxu0 0.0
        %1147 = vmatprep.subr.mxu0 0.0
        %1148 = vmatpush1.msra.mxu0 0.0
        %1149 = vmatprep.subr.mxu0 0.0
        %1150 = vmatpush1.msra.mxu0 0.0
        %1151 = vmatprep.subr.mxu0 0.0
        %1152 = vmatpush1.msra.mxu0 0.0
        %1153 = vmatprep.subr.mxu0 0.0
        %1154 = vmatpush1.msra.mxu0 0.0
        %1155 = vmatprep.subr.mxu0 0.0
        %1156 = vmatpush1.msra.mxu0 0.0
        %1157 = vmatprep.subr.mxu0 0.0
        %1158 = vmatpush1.msra.mxu0 0.0
        %1159 = vmatprep.subr.mxu0 0.0
        %1160 = vmatpush1.msra.mxu0 0.0
        %1161 = vmatprep.subr.mxu0 0.0
        %1162 = vmatpush1.msra.mxu0 0.0
        %1163 = vmatprep.subr.mxu0 0.0
        %1164 = vmatpush1.msra.mxu0 0.0
        %1165 = vmatprep.subr.mxu0 0.0
        %1166 = vmatpush1.msra.mxu0 0.0
        %1167 = vmatprep.subr.mxu0 0.0
        %1168 = vmatpush1.msra.mxu0 0.0
        %1169 = vmatprep.subr.mxu0 0.0
        %1170 = vmatpush1.msra.mxu0 0.0
        %1171 = vmatprep.subr.mxu0 0.0
        %1172 = vmatpush1.msra.mxu0 0.0
        %1173 = vmatprep.subr.mxu0 0.0
        %1174 = vmatpush1.msra.mxu0 0.0
        %1175 = vmatprep.subr.mxu0 0.0
        %1176 = vmatpush1.msra.mxu0 0.0
        %1177 = vmatprep.subr.mxu0 0.0
        %1178 = vmatpush1.msra.mxu0 0.0
        %1179 = vmatprep.subr.mxu0 0.0
        %1180 = vmatpush1.msra.mxu0 0.0
        %1181 = vmatprep.subr.mxu0 0.0
        %1182 = vmatpush1.msra.mxu0 0.0
        %1183 = vmatprep.subr.mxu0 0.0
        %1184 = vmatpush1.msra.mxu0 0.0
        %1185 = vmatprep.subr.mxu0 0.0
        %1186 = vmatpush1.msra.mxu0 0.0
        %1187 = vmatprep.subr.mxu0 0.0
        %1188 = vmatpush1.msra.mxu0 0.0
        %1189 = vmatprep.subr.mxu0 0.0
        %1190 = vmatpush1.msra.mxu0 0.0
        %1191 = vmatprep.subr.mxu0 0.0
        %1192 = vmatpush1.msra.mxu0 0.0
        %1193 = vmatprep.subr.mxu0 0.0
        %1194 = vmatpush1.msra.mxu0 0.0
        %1195 = vmatprep.subr.mxu0 0.0
        %1196 = vmatpush1.msra.mxu0 0.0
        %1197 = vmatprep.subr.mxu0 0.0
        %1198 = vmatpush1.msra.mxu0 0.0
        %1199 = vmatprep.subr.mxu0 0.0
        %1200 = vmatpush1.msra.mxu0 0.0
        %1201 = vmatprep.subr.mxu0 0.0
        %1202 = vmatpush1.msra.mxu0 0.0
        %1203 = vmatprep.subr.mxu0 0.0
        %1204 = vmatpush1.msra.mxu0 0.0
        %1205 = vmatprep.mubr.f32.mxu0 0.0
        %1206 = vmatmul.mubr.f32.gmra.mrb[0].mxu0 %v605
        %v1207 = vpop.f32.mrb[0].mxu0
        %v1208 = vadd.f32 0.0, %v1207
        %v1209 = vpop.f32.mrb[0].mxu0
        %1210 = vmatprep.mubr.f32.mxu0 0.0
        %1211 = vmatmul.mubr.f32.gmra.mrb[0].mxu0 %v608
        %v1212 = vpop.f32.mrb[0].mxu0
        %v1213 = vadd.f32 0.0, %v1212
        %v1214 = vpop.f32.mrb[0].mxu0
        %1215 = vmatprep.mubr.f32.mxu0 0.0
        %1216 = vmatmul.mubr.f32.gmra.mrb[0].mxu0 %v611
        %v1217 = vpop.f32.mrb[0].mxu0
        %v1218 = vadd.f32 0.0, %v1217
        %v1219 = vpop.f32.mrb[0].mxu0
        %1220 = vmatprep.mubr.f32.mxu0 0.0
        %1221 = vmatmul.mubr.f32.gmra.mrb[0].mxu0 %v614
        %v1222 = vpop.f32.mrb[0].mxu0
        %v1223 = vadd.f32 0.0, %v1222
        %v1224 = vpop.f32.mrb[0].mxu0
        %1225 = vmatprep.mubr.f32.mxu0 0.0
        %1226 = vmatmul.mubr.f32.gmra.mrb[0].mxu0 %v617
        %v1227 = vpop.f32.mrb[0].mxu0
        %v1228 = vadd.f32 0.0, %v1227
        %v1229 = vpop.f32.mrb[0].mxu0
        %1230 = vmatprep.mubr.f32.mxu0 0.0
        %1231 = vmatmul.mubr.f32.gmra.mrb[0].mxu0 %v620
        %v1232 = vpop.f32.mrb[0].mxu0
        %v1233 = vadd.f32 0.0, %v1232
        %v1234 = vpop.f32.mrb[0].mxu0
        %1235 = vmatprep.mubr.f32.mxu0 0.0
        %1236 = vmatmul.mubr.f32.gmra.mrb[0].mxu0 %v623
        %v1237 = vpop.f32.mrb[0].mxu0
        %v1238 = vadd.f32 0.0, %v1237
        %v1239 = vpop.f32.mrb[0].mxu0
        %1240 = vmatprep.mubr.f32.mxu0 0.0
        %1241 = vmatmul.mubr.f32.gmra.mrb[0].mxu0 %v626
        %v1242 = vpop.f32.mrb[0].mxu0
        %v1243 = vadd.f32 0.0, %v1242
        %v1244 = vpop.f32.mrb[0].mxu0
        %1245 = vmatprep.mubr.f32.mxu0 0.0
        %1246 = vmatmul.mubr.f32.gmra.mrb[0].mxu0 %v629
        %v1247 = vpop.f32.mrb[0].mxu0
        %v1248 = vadd.f32 0.0, %v1247
        %v1249 = vpop.f32.mrb[0].mxu0
        %1250 = vmatprep.mubr.f32.mxu0 0.0
        %1251 = vmatmul.mubr.f32.gmra.mrb[0].mxu0 %v632
        %v1252 = vpop.f32.mrb[0].mxu0
        %v1253 = vadd.f32 0.0, %v1252
        %v1254 = vpop.f32.mrb[0].mxu0
        %1255 = vmatprep.mubr.f32.mxu0 0.0
        %1256 = vmatmul.mubr.f32.gmra.mrb[0].mxu0 %v635
        %v1257 = vpop.f32.mrb[0].mxu0
        %v1258 = vadd.f32 0.0, %v1257
        %v1259 = vpop.f32.mrb[0].mxu0
        %1260 = vmatprep.mubr.f32.mxu0 0.0
        %1261 = vmatmul.mubr.f32.gmra.mrb[0].mxu0 %v638
        %v1262 = vpop.f32.mrb[0].mxu0
        %v1263 = vadd.f32 0.0, %v1262
        %v1264 = vpop.f32.mrb[0].mxu0
        %1265 = vmatprep.mubr.f32.mxu0 0.0
        %1266 = vmatmul.mubr.f32.gmra.mrb[0].mxu0 %v641
        %v1267 = vpop.f32.mrb[0].mxu0
        %v1268 = vadd.f32 0.0, %v1267
        %v1269 = vpop.f32.mrb[0].mxu0
        %1270 = vmatprep.mubr.f32.mxu0 0.0
        %1271 = vmatmul.mubr.f32.gmra.mrb[0].mxu0 %v644
        %v1272 = vpop.f32.mrb[0].mxu0
        %v1273 = vadd.f32 0.0, %v1272
        %v1274 = vpop.f32.mrb[0].mxu0
        %1275 = vmatprep.mubr.f32.mxu0 0.0
        %1276 = vmatmul.mubr.f32.gmra.mrb[0].mxu0 %v647
        %v1277 = vpop.f32.mrb[0].mxu0
        %v1278 = vadd.f32 0.0, %v1277
        %v1279 = vpop.f32.mrb[0].mxu0
        %1280 = vmatprep.mubr.f32.mxu0 0.0
        %1281 = vmatmul.mubr.f32.gmra.mrb[0].mxu0 %v650
        %v1282 = vpop.f32.mrb[0].mxu0
        %v1283 = vadd.f32 0.0, %v1282
        %v1284 = vpop.f32.mrb[0].mxu0
        %1285 = vdwg.mxu0
        %v1287 = vsel %vm797, %v1123, 0
        %v1290 = vsel %vm797, %v1124, 0
        %v1293 = vsel %vm797, %v1125, 0
        %v1296 = vsel %vm797, %v1126, 0
        %v1299 = vsel %vm797, %v1127, 0
        %v1302 = vsel %vm797, %v1128, 0
        %v1305 = vsel %vm797, %v1129, 0
        %v1308 = vsel %vm797, %v1130, 0
        %v1311 = vsel %vm797, %v1131, 0
        %v1314 = vsel %vm797, %v1132, 0
        %v1317 = vsel %vm797, %v1133, 0
        %v1320 = vsel %vm797, %v1134, 0
        %v1323 = vsel %vm797, %v1135, 0
        %v1326 = vsel %vm797, %v1136, 0
        %v1329 = vsel %vm797, %v1137, 0
        %v1332 = vsel %vm797, %v1138, 0
        %1334 = vmatprep.subr.mxu0 0.0
        %1335 = vmatpush1.msra.mxu0 %v584
        %1336 = vmatprep.subr.mxu0 0.0
        %1337 = vmatpush1.msra.mxu0 %v585
        %1338 = vmatprep.subr.mxu0 0.0
        %1339 = vmatpush1.msra.mxu0 0.0
        %1340 = vmatprep.subr.mxu0 0.0
        %1341 = vmatpush1.msra.mxu0 0.0
        %1342 = vmatprep.subr.mxu0 0.0
        %1343 = vmatpush1.msra.mxu0 0.0
        %1344 = vmatprep.subr.mxu0 0.0
        %1345 = vmatpush1.msra.mxu0 0.0
        %1346 = vmatprep.subr.mxu0 0.0
        %1347 = vmatpush1.msra.mxu0 0.0
        %1348 = vmatprep.subr.mxu0 0.0
        %1349 = vmatpush1.msra.mxu0 0.0
        %1350 = vmatprep.subr.mxu0 0.0
        %1351 = vmatpush1.msra.mxu0 0.0
        %1352 = vmatprep.subr.mxu0 0.0
        %1353 = vmatpush1.msra.mxu0 0.0
        %1354 = vmatprep.subr.mxu0 0.0
        %1355 = vmatpush1.msra.mxu0 0.0
        %1356 = vmatprep.subr.mxu0 0.0
        %1357 = vmatpush1.msra.mxu0 0.0
        %1358 = vmatprep.subr.mxu0 0.0
        %1359 = vmatpush1.msra.mxu0 0.0
        %1360 = vmatprep.subr.mxu0 0.0
        %1361 = vmatpush1.msra.mxu0 0.0
        %1362 = vmatprep.subr.mxu0 0.0
        %1363 = vmatpush1.msra.mxu0 0.0
        %1364 = vmatprep.subr.mxu0 0.0
        %1365 = vmatpush1.msra.mxu0 0.0
        %1366 = vmatprep.subr.mxu0 0.0
        %1367 = vmatpush1.msra.mxu0 0.0
        %1368 = vmatprep.subr.mxu0 0.0
        %1369 = vmatpush1.msra.mxu0 0.0
        %1370 = vmatprep.subr.mxu0 0.0
        %1371 = vmatpush1.msra.mxu0 0.0
        %1372 = vmatprep.subr.mxu0 0.0
        %1373 = vmatpush1.msra.mxu0 0.0
        %1374 = vmatprep.subr.mxu0 0.0
        %1375 = vmatpush1.msra.mxu0 0.0
        %1376 = vmatprep.subr.mxu0 0.0
        %1377 = vmatpush1.msra.mxu0 0.0
        %1378 = vmatprep.subr.mxu0 0.0
        %1379 = vmatpush1.msra.mxu0 0.0
        %1380 = vmatprep.subr.mxu0 0.0
        %1381 = vmatpush1.msra.mxu0 0.0
        %1382 = vmatprep.subr.mxu0 0.0
        %1383 = vmatpush1.msra.mxu0 0.0
        %1384 = vmatprep.subr.mxu0 0.0
        %1385 = vmatpush1.msra.mxu0 0.0
        %1386 = vmatprep.subr.mxu0 0.0
        %1387 = vmatpush1.msra.mxu0 0.0
        %1388 = vmatprep.subr.mxu0 0.0
        %1389 = vmatpush1.msra.mxu0 0.0
        %1390 = vmatprep.subr.mxu0 0.0
        %1391 = vmatpush1.msra.mxu0 0.0
        %1392 = vmatprep.subr.mxu0 0.0
        %1393 = vmatpush1.msra.mxu0 0.0
        %1394 = vmatprep.subr.mxu0 0.0
        %1395 = vmatpush1.msra.mxu0 0.0
        %1396 = vmatprep.subr.mxu0 0.0
        %1397 = vmatpush1.msra.mxu0 0.0
        %1398 = vmatprep.mubr.f32.mxu0 0.0
        %1399 = vmatmul.mubr.f32.gmra.mrb[0].mxu0 %v1287
        %v1400 = vpop.f32.mrb[0].mxu0
        %v1401 = vadd.f32 %v1208, %v1400
        %v1402 = vpop.f32.mrb[0].mxu0
        %1403 = vmatprep.mubr.f32.mxu0 0.0
        %1404 = vmatmul.mubr.f32.gmra.mrb[0].mxu0 %v1290
        %v1405 = vpop.f32.mrb[0].mxu0
        %v1406 = vadd.f32 %v1213, %v1405
        %v1407 = vpop.f32.mrb[0].mxu0
        %1408 = vmatprep.mubr.f32.mxu0 0.0
        %1409 = vmatmul.mubr.f32.gmra.mrb[0].mxu0 %v1293
        %v1410 = vpop.f32.mrb[0].mxu0
        %v1411 = vadd.f32 %v1218, %v1410
        %v1412 = vpop.f32.mrb[0].mxu0
        %1413 = vmatprep.mubr.f32.mxu0 0.0
        %1414 = vmatmul.mubr.f32.gmra.mrb[0].mxu0 %v1296
        %v1415 = vpop.f32.mrb[0].mxu0
        %v1416 = vadd.f32 %v1223, %v1415
        %v1417 = vpop.f32.mrb[0].mxu0
        %1418 = vmatprep.mubr.f32.mxu0 0.0
        %1419 = vmatmul.mubr.f32.gmra.mrb[0].mxu0 %v1299
        %v1420 = vpop.f32.mrb[0].mxu0
        %v1421 = vadd.f32 %v1228, %v1420
        %v1422 = vpop.f32.mrb[0].mxu0
        %1423 = vmatprep.mubr.f32.mxu0 0.0
        %1424 = vmatmul.mubr.f32.gmra.mrb[0].mxu0 %v1302
        %v1425 = vpop.f32.mrb[0].mxu0
        %v1426 = vadd.f32 %v1233, %v1425
        %v1427 = vpop.f32.mrb[0].mxu0
        %1428 = vmatprep.mubr.f32.mxu0 0.0
        %1429 = vmatmul.mubr.f32.gmra.mrb[0].mxu0 %v1305
        %v1430 = vpop.f32.mrb[0].mxu0
        %v1431 = vadd.f32 %v1238, %v1430
        %v1432 = vpop.f32.mrb[0].mxu0
        %1433 = vmatprep.mubr.f32.mxu0 0.0
        %1434 = vmatmul.mubr.f32.gmra.mrb[0].mxu0 %v1308
        %v1435 = vpop.f32.mrb[0].mxu0
        %v1436 = vadd.f32 %v1243, %v1435
        %v1437 = vpop.f32.mrb[0].mxu0
        %1438 = vmatprep.mubr.f32.mxu0 0.0
        %1439 = vmatmul.mubr.f32.gmra.mrb[0].mxu0 %v1311
        %v1440 = vpop.f32.mrb[0].mxu0
        %v1441 = vadd.f32 %v1248, %v1440
        %v1442 = vpop.f32.mrb[0].mxu0
        %1443 = vmatprep.mubr.f32.mxu0 0.0
        %1444 = vmatmul.mubr.f32.gmra.mrb[0].mxu0 %v1314
        %v1445 = vpop.f32.mrb[0].mxu0
        %v1446 = vadd.f32 %v1253, %v1445
        %v1447 = vpop.f32.mrb[0].mxu0
        %1448 = vmatprep.mubr.f32.mxu0 0.0
        %1449 = vmatmul.mubr.f32.gmra.mrb[0].mxu0 %v1317
        %v1450 = vpop.f32.mrb[0].mxu0
        %v1451 = vadd.f32 %v1258, %v1450
        %v1452 = vpop.f32.mrb[0].mxu0
        %1453 = vmatprep.mubr.f32.mxu0 0.0
        %1454 = vmatmul.mubr.f32.gmra.mrb[0].mxu0 %v1320
        %v1455 = vpop.f32.mrb[0].mxu0
        %v1456 = vadd.f32 %v1263, %v1455
        %v1457 = vpop.f32.mrb[0].mxu0
        %1458 = vmatprep.mubr.f32.mxu0 0.0
        %1459 = vmatmul.mubr.f32.gmra.mrb[0].mxu0 %v1323
        %v1460 = vpop.f32.mrb[0].mxu0
        %v1461 = vadd.f32 %v1268, %v1460
        %v1462 = vpop.f32.mrb[0].mxu0
        %1463 = vmatprep.mubr.f32.mxu0 0.0
        %1464 = vmatmul.mubr.f32.gmra.mrb[0].mxu0 %v1326
        %v1465 = vpop.f32.mrb[0].mxu0
        %v1466 = vadd.f32 %v1273, %v1465
        %v1467 = vpop.f32.mrb[0].mxu0
        %1468 = vmatprep.mubr.f32.mxu0 0.0
        %1469 = vmatmul.mubr.f32.gmra.mrb[0].mxu0 %v1329
        %v1470 = vpop.f32.mrb[0].mxu0
        %v1471 = vadd.f32 %v1278, %v1470
        %v1472 = vpop.f32.mrb[0].mxu0
        %1473 = vmatprep.mubr.f32.mxu0 0.0
        %1474 = vmatmul.mubr.f32.gmra.mrb[0].mxu0 %v1332
        %v1475 = vpop.f32.mrb[0].mxu0
        %v1476 = vadd.f32 %v1283, %v1475
        %v1477 = vpop.f32.mrb[0].mxu0
        %1478 = vdwg.mxu0
        %s1479 = scalar_lea.vmem %s4, 1
        %v1480 = vld [vmem:[%s1479] sm:$0x1]
        %v1482 = vlaneseq
        %v1483 = vshrl.u32 %v1482, 7
        %v1484 = vsub.s32 0, %v1483
        %v1485 = vrot.slane %v1480, %v1484
        %v1487 = vadd.f32 %v1401, %v1485
        %v1488 = vadd.f32 %v1406, %v1485
        %v1489 = vadd.f32 %v1411, %v1485
        %v1490 = vadd.f32 %v1416, %v1485
        %v1491 = vadd.f32 %v1421, %v1485
        %v1492 = vadd.f32 %v1426, %v1485
        %v1493 = vadd.f32 %v1431, %v1485
        %v1494 = vadd.f32 %v1436, %v1485
        %v1495 = vadd.f32 %v1441, %v1485
        %v1496 = vadd.f32 %v1446, %v1485
        %v1497 = vadd.f32 %v1451, %v1485
        %v1498 = vadd.f32 %v1456, %v1485
        %v1499 = vadd.f32 %v1461, %v1485
        %v1500 = vadd.f32 %v1466, %v1485
        %v1501 = vadd.f32 %v1471, %v1485
        %v1502 = vadd.f32 %v1476, %v1485
        %s1503 = scalar_lea.vmem %s552, 128 [#allocation3]
        %1504 = vst.msk [vmem:[%s1503] sm:$0xff] %vm797, %v1487
        %1505 = vst.msk [vmem:[%s1503 + $0x8] sm:$0xff] %vm797, %v1488
        %1506 = vst.msk [vmem:[%s1503 + $0x10] sm:$0xff] %vm797, %v1489
        %1507 = vst.msk [vmem:[%s1503 + $0x18] sm:$0xff] %vm797, %v1490
        %1508 = vst.msk [vmem:[%s1503 + $0x20] sm:$0xff] %vm797, %v1491
        %1509 = vst.msk [vmem:[%s1503 + $0x28] sm:$0xff] %vm797, %v1492
        %1510 = vst.msk [vmem:[%s1503 + $0x30] sm:$0xff] %vm797, %v1493
        %1511 = vst.msk [vmem:[%s1503 + $0x38] sm:$0xff] %vm797, %v1494
        %1512 = vst.msk [vmem:[%s1503 + $0x40] sm:$0xff] %vm797, %v1495
        %1513 = vst.msk [vmem:[%s1503 + $0x48] sm:$0xff] %vm797, %v1496
        %1514 = vst.msk [vmem:[%s1503 + $0x50] sm:$0xff] %vm797, %v1497
        %1515 = vst.msk [vmem:[%s1503 + $0x58] sm:$0xff] %vm797, %v1498
        %1516 = vst.msk [vmem:[%s1503 + $0x60] sm:$0xff] %vm797, %v1499
        %1517 = vst.msk [vmem:[%s1503 + $0x68] sm:$0xff] %vm797, %v1500
        %1518 = vst.msk [vmem:[%s1503 + $0x70] sm:$0xff] %vm797, %v1501
        %1519 = vst.msk [vmem:[%s1503 + $0x78] sm:$0xff] %vm797, %v1502
        %v1520 = vsel %vm797, %v1487, 0.0
        %v1521 = vsel %vm797, %v1488, 0.0
        %v1522 = vadd.f32 %v1520, %v1521
        %v1523 = vsel %vm797, %v1489, 0.0
        %v1524 = vadd.f32 %v1522, %v1523
        %v1525 = vsel %vm797, %v1490, 0.0
        %v1526 = vadd.f32 %v1524, %v1525
        %v1527 = vsel %vm797, %v1491, 0.0
        %v1528 = vadd.f32 %v1526, %v1527
        %v1529 = vsel %vm797, %v1492, 0.0
        %v1530 = vadd.f32 %v1528, %v1529
        %v1531 = vsel %vm797, %v1493, 0.0
        %v1532 = vadd.f32 %v1530, %v1531
        %v1533 = vsel %vm797, %v1494, 0.0
        %v1534 = vadd.f32 %v1532, %v1533
        %v1535 = vsel %vm797, %v1495, 0.0
        %v1536 = vadd.f32 %v1534, %v1535
        %v1537 = vsel %vm797, %v1496, 0.0
        %v1538 = vadd.f32 %v1536, %v1537
        %v1539 = vsel %vm797, %v1497, 0.0
        %v1540 = vadd.f32 %v1538, %v1539
        %v1541 = vsel %vm797, %v1498, 0.0
        %v1542 = vadd.f32 %v1540, %v1541
        %v1543 = vsel %vm797, %v1499, 0.0
        %v1544 = vadd.f32 %v1542, %v1543
        %v1545 = vsel %vm797, %v1500, 0.0
        %v1546 = vadd.f32 %v1544, %v1545
        %v1547 = vsel %vm797, %v1501, 0.0
        %v1548 = vadd.f32 %v1546, %v1547
        %v1549 = vsel %vm797, %v1502, 0.0
        %v1550 = vadd.f32 %v1548, %v1549
        %v1551 = vrot.slane %v1550, 4
        %v1552 = vadd.f32 %v1550, %v1551
        %v1553 = vrot.slane %v1552, 2
        %v1554 = vadd.f32 %v1552, %v1553
        %v1555 = vrot.slane %v1554, 1
        %v1556 = vadd.f32 %v1554, %v1555
        %v1557 = vadd.f32 %v1067, %v1556
        %v1558 = vmul.f32 %v1487, %v1487
        %v1559 = vmul.f32 %v1488, %v1488
        %v1560 = vmul.f32 %v1489, %v1489
        %v1561 = vmul.f32 %v1490, %v1490
        %v1562 = vmul.f32 %v1491, %v1491
        %v1563 = vmul.f32 %v1492, %v1492
        %v1564 = vmul.f32 %v1493, %v1493
        %v1565 = vmul.f32 %v1494, %v1494
        %v1566 = vmul.f32 %v1495, %v1495
        %v1567 = vmul.f32 %v1496, %v1496
        %v1568 = vmul.f32 %v1497, %v1497
        %v1569 = vmul.f32 %v1498, %v1498
        %v1570 = vmul.f32 %v1499, %v1499
        %v1571 = vmul.f32 %v1500, %v1500
        %v1572 = vmul.f32 %v1501, %v1501
        %v1573 = vmul.f32 %v1502, %v1502
        %v1574 = vsel %vm797, %v1558, 0.0
        %v1575 = vsel %vm797, %v1559, 0.0
        %v1576 = vadd.f32 %v1574, %v1575
        %v1577 = vsel %vm797, %v1560, 0.0
        %v1578 = vadd.f32 %v1576, %v1577
        %v1579 = vsel %vm797, %v1561, 0.0
        %v1580 = vadd.f32 %v1578, %v1579
        %v1581 = vsel %vm797, %v1562, 0.0
        %v1582 = vadd.f32 %v1580, %v1581
        %v1583 = vsel %vm797, %v1563, 0.0
        %v1584 = vadd.f32 %v1582, %v1583
        %v1585 = vsel %vm797, %v1564, 0.0
        %v1586 = vadd.f32 %v1584, %v1585
        %v1587 = vsel %vm797, %v1565, 0.0
        %v1588 = vadd.f32 %v1586, %v1587
        %v1589 = vsel %vm797, %v1566, 0.0
        %v1590 = vadd.f32 %v1588, %v1589
        %v1591 = vsel %vm797, %v1567, 0.0
        %v1592 = vadd.f32 %v1590, %v1591
        %v1593 = vsel %vm797, %v1568, 0.0
        %v1594 = vadd.f32 %v1592, %v1593
        %v1595 = vsel %vm797, %v1569, 0.0
        %v1596 = vadd.f32 %v1594, %v1595
        %v1597 = vsel %vm797, %v1570, 0.0
        %v1598 = vadd.f32 %v1596, %v1597
        %v1599 = vsel %vm797, %v1571, 0.0
        %v1600 = vadd.f32 %v1598, %v1599
        %v1601 = vsel %vm797, %v1572, 0.0
        %v1602 = vadd.f32 %v1600, %v1601
        %v1603 = vsel %vm797, %v1573, 0.0
        %v1604 = vadd.f32 %v1602, %v1603
        %v1605 = vrot.slane %v1604, 4
        %v1606 = vadd.f32 %v1604, %v1605
        %v1607 = vrot.slane %v1606, 2
        %v1608 = vadd.f32 %v1606, %v1607
        %v1609 = vrot.slane %v1608, 1
        %v1610 = vadd.f32 %v1608, %v1609
        %v1611 = vadd.f32 %v1121, %v1610
        %s1612 = scalar_lea.vmem %s524, 256 [#allocation2]
        %v1613 = vld [vmem:[%s1612] sm:$0xff]
        %v1614 = vld [vmem:[%s1612 + $0x8] sm:$0xff]
        %v1615 = vld [vmem:[%s1612 + $0x10] sm:$0xff]
        %v1616 = vld [vmem:[%s1612 + $0x18] sm:$0xff]
        %v1617 = vld [vmem:[%s1612 + $0x20] sm:$0xff]
        %v1618 = vld [vmem:[%s1612 + $0x28] sm:$0xff]
        %v1619 = vld [vmem:[%s1612 + $0x30] sm:$0xff]
        %v1620 = vld [vmem:[%s1612 + $0x38] sm:$0xff]
        %v1621 = vld [vmem:[%s1612 + $0x40] sm:$0xff]
        %v1622 = vld [vmem:[%s1612 + $0x48] sm:$0xff]
        %v1623 = vld [vmem:[%s1612 + $0x50] sm:$0xff]
        %v1624 = vld [vmem:[%s1612 + $0x58] sm:$0xff]
        %v1625 = vld [vmem:[%s1612 + $0x60] sm:$0xff]
        %v1626 = vld [vmem:[%s1612 + $0x68] sm:$0xff]
        %v1627 = vld [vmem:[%s1612 + $0x70] sm:$0xff]
        %v1628 = vld [vmem:[%s1612 + $0x78] sm:$0xff]
        %s1629 = scalar_lea.vmem %s2, 16
        %v1630 = vld [vmem:[%s1629] sm:$0xff]
        %1631 = vmatprep.subr.mxu0 0.0
        %1632 = vmatpush1.msra.mxu0 %v1630
        %1633 = vmatprep.subr.mxu0 0.0
        %1634 = vmatpush1.msra.mxu0 0.0
        %1635 = vmatprep.subr.mxu0 0.0
        %1636 = vmatpush1.msra.mxu0 0.0
        %1637 = vmatprep.subr.mxu0 0.0
        %1638 = vmatpush1.msra.mxu0 0.0
        %1639 = vmatprep.subr.mxu0 0.0
        %1640 = vmatpush1.msra.mxu0 0.0
        %1641 = vmatprep.subr.mxu0 0.0
        %1642 = vmatpush1.msra.mxu0 0.0
        %1643 = vmatprep.subr.mxu0 0.0
        %1644 = vmatpush1.msra.mxu0 0.0
        %1645 = vmatprep.subr.mxu0 0.0
        %1646 = vmatpush1.msra.mxu0 0.0
        %1647 = vmatprep.subr.mxu0 0.0
        %1648 = vmatpush1.msra.mxu0 0.0
        %1649 = vmatprep.subr.mxu0 0.0
        %1650 = vmatpush1.msra.mxu0 0.0
        %1651 = vmatprep.subr.mxu0 0.0
        %1652 = vmatpush1.msra.mxu0 0.0
        %1653 = vmatprep.subr.mxu0 0.0
        %1654 = vmatpush1.msra.mxu0 0.0
        %1655 = vmatprep.subr.mxu0 0.0
        %1656 = vmatpush1.msra.mxu0 0.0
        %1657 = vmatprep.subr.mxu0 0.0
        %1658 = vmatpush1.msra.mxu0 0.0
        %1659 = vmatprep.subr.mxu0 0.0
        %1660 = vmatpush1.msra.mxu0 0.0
        %1661 = vmatprep.subr.mxu0 0.0
        %1662 = vmatpush1.msra.mxu0 0.0
        %1663 = vmatprep.subr.mxu0 0.0
        %1664 = vmatpush1.msra.mxu0 0.0
        %1665 = vmatprep.subr.mxu0 0.0
        %1666 = vmatpush1.msra.mxu0 0.0
        %1667 = vmatprep.subr.mxu0 0.0
        %1668 = vmatpush1.msra.mxu0 0.0
        %1669 = vmatprep.subr.mxu0 0.0
        %1670 = vmatpush1.msra.mxu0 0.0
        %1671 = vmatprep.subr.mxu0 0.0
        %1672 = vmatpush1.msra.mxu0 0.0
        %1673 = vmatprep.subr.mxu0 0.0
        %1674 = vmatpush1.msra.mxu0 0.0
        %1675 = vmatprep.subr.mxu0 0.0
        %1676 = vmatpush1.msra.mxu0 0.0
        %1677 = vmatprep.subr.mxu0 0.0
        %1678 = vmatpush1.msra.mxu0 0.0
        %1679 = vmatprep.subr.mxu0 0.0
        %1680 = vmatpush1.msra.mxu0 0.0
        %1681 = vmatprep.subr.mxu0 0.0
        %1682 = vmatpush1.msra.mxu0 0.0
        %1683 = vmatprep.subr.mxu0 0.0
        %1684 = vmatpush1.msra.mxu0 0.0
        %1685 = vmatprep.subr.mxu0 0.0
        %1686 = vmatpush1.msra.mxu0 0.0
        %1687 = vmatprep.subr.mxu0 0.0
        %1688 = vmatpush1.msra.mxu0 0.0
        %1689 = vmatprep.subr.mxu0 0.0
        %1690 = vmatpush1.msra.mxu0 0.0
        %1691 = vmatprep.subr.mxu0 0.0
        %1692 = vmatpush1.msra.mxu0 0.0
        %1693 = vmatprep.subr.mxu0 0.0
        %1694 = vmatpush1.msra.mxu0 0.0
        %1695 = vmatprep.mubr.f32.mxu0 0.0
        %1696 = vmatmul.mubr.f32.gmra.mrb[0].mxu0 %v605
        %v1697 = vpop.f32.mrb[0].mxu0
        %v1698 = vadd.f32 0.0, %v1697
        %v1699 = vpop.f32.mrb[0].mxu0
        %1700 = vmatprep.mubr.f32.mxu0 0.0
        %1701 = vmatmul.mubr.f32.gmra.mrb[0].mxu0 %v608
        %v1702 = vpop.f32.mrb[0].mxu0
        %v1703 = vadd.f32 0.0, %v1702
        %v1704 = vpop.f32.mrb[0].mxu0
        %1705 = vmatprep.mubr.f32.mxu0 0.0
        %1706 = vmatmul.mubr.f32.gmra.mrb[0].mxu0 %v611
        %v1707 = vpop.f32.mrb[0].mxu0
        %v1708 = vadd.f32 0.0, %v1707
        %v1709 = vpop.f32.mrb[0].mxu0
        %1710 = vmatprep.mubr.f32.mxu0 0.0
        %1711 = vmatmul.mubr.f32.gmra.mrb[0].mxu0 %v614
        %v1712 = vpop.f32.mrb[0].mxu0
        %v1713 = vadd.f32 0.0, %v1712
        %v1714 = vpop.f32.mrb[0].mxu0
        %1715 = vmatprep.mubr.f32.mxu0 0.0
        %1716 = vmatmul.mubr.f32.gmra.mrb[0].mxu0 %v617
        %v1717 = vpop.f32.mrb[0].mxu0
        %v1718 = vadd.f32 0.0, %v1717
        %v1719 = vpop.f32.mrb[0].mxu0
        %1720 = vmatprep.mubr.f32.mxu0 0.0
        %1721 = vmatmul.mubr.f32.gmra.mrb[0].mxu0 %v620
        %v1722 = vpop.f32.mrb[0].mxu0
        %v1723 = vadd.f32 0.0, %v1722
        %v1724 = vpop.f32.mrb[0].mxu0
        %1725 = vmatprep.mubr.f32.mxu0 0.0
        %1726 = vmatmul.mubr.f32.gmra.mrb[0].mxu0 %v623
        %v1727 = vpop.f32.mrb[0].mxu0
        %v1728 = vadd.f32 0.0, %v1727
        %v1729 = vpop.f32.mrb[0].mxu0
        %1730 = vmatprep.mubr.f32.mxu0 0.0
        %1731 = vmatmul.mubr.f32.gmra.mrb[0].mxu0 %v626
        %v1732 = vpop.f32.mrb[0].mxu0
        %v1733 = vadd.f32 0.0, %v1732
        %v1734 = vpop.f32.mrb[0].mxu0
        %1735 = vmatprep.mubr.f32.mxu0 0.0
        %1736 = vmatmul.mubr.f32.gmra.mrb[0].mxu0 %v629
        %v1737 = vpop.f32.mrb[0].mxu0
        %v1738 = vadd.f32 0.0, %v1737
        %v1739 = vpop.f32.mrb[0].mxu0
        %1740 = vmatprep.mubr.f32.mxu0 0.0
        %1741 = vmatmul.mubr.f32.gmra.mrb[0].mxu0 %v632
        %v1742 = vpop.f32.mrb[0].mxu0
        %v1743 = vadd.f32 0.0, %v1742
        %v1744 = vpop.f32.mrb[0].mxu0
        %1745 = vmatprep.mubr.f32.mxu0 0.0
        %1746 = vmatmul.mubr.f32.gmra.mrb[0].mxu0 %v635
        %v1747 = vpop.f32.mrb[0].mxu0
        %v1748 = vadd.f32 0.0, %v1747
        %v1749 = vpop.f32.mrb[0].mxu0
        %1750 = vmatprep.mubr.f32.mxu0 0.0
        %1751 = vmatmul.mubr.f32.gmra.mrb[0].mxu0 %v638
        %v1752 = vpop.f32.mrb[0].mxu0
        %v1753 = vadd.f32 0.0, %v1752
        %v1754 = vpop.f32.mrb[0].mxu0
        %1755 = vmatprep.mubr.f32.mxu0 0.0
        %1756 = vmatmul.mubr.f32.gmra.mrb[0].mxu0 %v641
        %v1757 = vpop.f32.mrb[0].mxu0
        %v1758 = vadd.f32 0.0, %v1757
        %v1759 = vpop.f32.mrb[0].mxu0
        %1760 = vmatprep.mubr.f32.mxu0 0.0
        %1761 = vmatmul.mubr.f32.gmra.mrb[0].mxu0 %v644
        %v1762 = vpop.f32.mrb[0].mxu0
        %v1763 = vadd.f32 0.0, %v1762
        %v1764 = vpop.f32.mrb[0].mxu0
        %1765 = vmatprep.mubr.f32.mxu0 0.0
        %1766 = vmatmul.mubr.f32.gmra.mrb[0].mxu0 %v647
        %v1767 = vpop.f32.mrb[0].mxu0
        %v1768 = vadd.f32 0.0, %v1767
        %v1769 = vpop.f32.mrb[0].mxu0
        %1770 = vmatprep.mubr.f32.mxu0 0.0
        %1771 = vmatmul.mubr.f32.gmra.mrb[0].mxu0 %v650
        %v1772 = vpop.f32.mrb[0].mxu0
        %v1773 = vadd.f32 0.0, %v1772
        %v1774 = vpop.f32.mrb[0].mxu0
        %1775 = vdwg.mxu0
        %v1777 = vsel %vm797, %v1613, 0
        %v1780 = vsel %vm797, %v1614, 0
        %v1783 = vsel %vm797, %v1615, 0
        %v1786 = vsel %vm797, %v1616, 0
        %v1789 = vsel %vm797, %v1617, 0
        %v1792 = vsel %vm797, %v1618, 0
        %v1795 = vsel %vm797, %v1619, 0
        %v1798 = vsel %vm797, %v1620, 0
        %v1801 = vsel %vm797, %v1621, 0
        %v1804 = vsel %vm797, %v1622, 0
        %v1807 = vsel %vm797, %v1623, 0
        %v1810 = vsel %vm797, %v1624, 0
        %v1813 = vsel %vm797, %v1625, 0
        %v1816 = vsel %vm797, %v1626, 0
        %v1819 = vsel %vm797, %v1627, 0
        %v1822 = vsel %vm797, %v1628, 0
        %1824 = vmatprep.subr.mxu0 0.0
        %1825 = vmatpush1.msra.mxu0 %v584
        %1826 = vmatprep.subr.mxu0 0.0
        %1827 = vmatpush1.msra.mxu0 %v585
        %1828 = vmatprep.subr.mxu0 0.0
        %1829 = vmatpush1.msra.mxu0 0.0
        %1830 = vmatprep.subr.mxu0 0.0
        %1831 = vmatpush1.msra.mxu0 0.0
        %1832 = vmatprep.subr.mxu0 0.0
        %1833 = vmatpush1.msra.mxu0 0.0
        %1834 = vmatprep.subr.mxu0 0.0
        %1835 = vmatpush1.msra.mxu0 0.0
        %1836 = vmatprep.subr.mxu0 0.0
        %1837 = vmatpush1.msra.mxu0 0.0
        %1838 = vmatprep.subr.mxu0 0.0
        %1839 = vmatpush1.msra.mxu0 0.0
        %1840 = vmatprep.subr.mxu0 0.0
        %1841 = vmatpush1.msra.mxu0 0.0
        %1842 = vmatprep.subr.mxu0 0.0
        %1843 = vmatpush1.msra.mxu0 0.0
        %1844 = vmatprep.subr.mxu0 0.0
        %1845 = vmatpush1.msra.mxu0 0.0
        %1846 = vmatprep.subr.mxu0 0.0
        %1847 = vmatpush1.msra.mxu0 0.0
        %1848 = vmatprep.subr.mxu0 0.0
        %1849 = vmatpush1.msra.mxu0 0.0
        %1850 = vmatprep.subr.mxu0 0.0
        %1851 = vmatpush1.msra.mxu0 0.0
        %1852 = vmatprep.subr.mxu0 0.0
        %1853 = vmatpush1.msra.mxu0 0.0
        %1854 = vmatprep.subr.mxu0 0.0
        %1855 = vmatpush1.msra.mxu0 0.0
        %1856 = vmatprep.subr.mxu0 0.0
        %1857 = vmatpush1.msra.mxu0 0.0
        %1858 = vmatprep.subr.mxu0 0.0
        %1859 = vmatpush1.msra.mxu0 0.0
        %1860 = vmatprep.subr.mxu0 0.0
        %1861 = vmatpush1.msra.mxu0 0.0
        %1862 = vmatprep.subr.mxu0 0.0
        %1863 = vmatpush1.msra.mxu0 0.0
        %1864 = vmatprep.subr.mxu0 0.0
        %1865 = vmatpush1.msra.mxu0 0.0
        %1866 = vmatprep.subr.mxu0 0.0
        %1867 = vmatpush1.msra.mxu0 0.0
        %1868 = vmatprep.subr.mxu0 0.0
        %1869 = vmatpush1.msra.mxu0 0.0
        %1870 = vmatprep.subr.mxu0 0.0
        %1871 = vmatpush1.msra.mxu0 0.0
        %1872 = vmatprep.subr.mxu0 0.0
        %1873 = vmatpush1.msra.mxu0 0.0
        %1874 = vmatprep.subr.mxu0 0.0
        %1875 = vmatpush1.msra.mxu0 0.0
        %1876 = vmatprep.subr.mxu0 0.0
        %1877 = vmatpush1.msra.mxu0 0.0
        %1878 = vmatprep.subr.mxu0 0.0
        %1879 = vmatpush1.msra.mxu0 0.0
        %1880 = vmatprep.subr.mxu0 0.0
        %1881 = vmatpush1.msra.mxu0 0.0
        %1882 = vmatprep.subr.mxu0 0.0
        %1883 = vmatpush1.msra.mxu0 0.0
        %1884 = vmatprep.subr.mxu0 0.0
        %1885 = vmatpush1.msra.mxu0 0.0
        %1886 = vmatprep.subr.mxu0 0.0
        %1887 = vmatpush1.msra.mxu0 0.0
        %1888 = vmatprep.mubr.f32.mxu0 0.0
        %1889 = vmatmul.mubr.f32.gmra.mrb[0].mxu0 %v1777
        %v1890 = vpop.f32.mrb[0].mxu0
        %v1891 = vadd.f32 %v1698, %v1890
        %v1892 = vpop.f32.mrb[0].mxu0
        %1893 = vmatprep.mubr.f32.mxu0 0.0
        %1894 = vmatmul.mubr.f32.gmra.mrb[0].mxu0 %v1780
        %v1895 = vpop.f32.mrb[0].mxu0
        %v1896 = vadd.f32 %v1703, %v1895
        %v1897 = vpop.f32.mrb[0].mxu0
        %1898 = vmatprep.mubr.f32.mxu0 0.0
        %1899 = vmatmul.mubr.f32.gmra.mrb[0].mxu0 %v1783
        %v1900 = vpop.f32.mrb[0].mxu0
        %v1901 = vadd.f32 %v1708, %v1900
        %v1902 = vpop.f32.mrb[0].mxu0
        %1903 = vmatprep.mubr.f32.mxu0 0.0
        %1904 = vmatmul.mubr.f32.gmra.mrb[0].mxu0 %v1786
        %v1905 = vpop.f32.mrb[0].mxu0
        %v1906 = vadd.f32 %v1713, %v1905
        %v1907 = vpop.f32.mrb[0].mxu0
        %1908 = vmatprep.mubr.f32.mxu0 0.0
        %1909 = vmatmul.mubr.f32.gmra.mrb[0].mxu0 %v1789
        %v1910 = vpop.f32.mrb[0].mxu0
        %v1911 = vadd.f32 %v1718, %v1910
        %v1912 = vpop.f32.mrb[0].mxu0
        %1913 = vmatprep.mubr.f32.mxu0 0.0
        %1914 = vmatmul.mubr.f32.gmra.mrb[0].mxu0 %v1792
        %v1915 = vpop.f32.mrb[0].mxu0
        %v1916 = vadd.f32 %v1723, %v1915
        %v1917 = vpop.f32.mrb[0].mxu0
        %1918 = vmatprep.mubr.f32.mxu0 0.0
        %1919 = vmatmul.mubr.f32.gmra.mrb[0].mxu0 %v1795
        %v1920 = vpop.f32.mrb[0].mxu0
        %v1921 = vadd.f32 %v1728, %v1920
        %v1922 = vpop.f32.mrb[0].mxu0
        %1923 = vmatprep.mubr.f32.mxu0 0.0
        %1924 = vmatmul.mubr.f32.gmra.mrb[0].mxu0 %v1798
        %v1925 = vpop.f32.mrb[0].mxu0
        %v1926 = vadd.f32 %v1733, %v1925
        %v1927 = vpop.f32.mrb[0].mxu0
        %1928 = vmatprep.mubr.f32.mxu0 0.0
        %1929 = vmatmul.mubr.f32.gmra.mrb[0].mxu0 %v1801
        %v1930 = vpop.f32.mrb[0].mxu0
        %v1931 = vadd.f32 %v1738, %v1930
        %v1932 = vpop.f32.mrb[0].mxu0
        %1933 = vmatprep.mubr.f32.mxu0 0.0
        %1934 = vmatmul.mubr.f32.gmra.mrb[0].mxu0 %v1804
        %v1935 = vpop.f32.mrb[0].mxu0
        %v1936 = vadd.f32 %v1743, %v1935
        %v1937 = vpop.f32.mrb[0].mxu0
        %1938 = vmatprep.mubr.f32.mxu0 0.0
        %1939 = vmatmul.mubr.f32.gmra.mrb[0].mxu0 %v1807
        %v1940 = vpop.f32.mrb[0].mxu0
        %v1941 = vadd.f32 %v1748, %v1940
        %v1942 = vpop.f32.mrb[0].mxu0
        %1943 = vmatprep.mubr.f32.mxu0 0.0
        %1944 = vmatmul.mubr.f32.gmra.mrb[0].mxu0 %v1810
        %v1945 = vpop.f32.mrb[0].mxu0
        %v1946 = vadd.f32 %v1753, %v1945
        %v1947 = vpop.f32.mrb[0].mxu0
        %1948 = vmatprep.mubr.f32.mxu0 0.0
        %1949 = vmatmul.mubr.f32.gmra.mrb[0].mxu0 %v1813
        %v1950 = vpop.f32.mrb[0].mxu0
        %v1951 = vadd.f32 %v1758, %v1950
        %v1952 = vpop.f32.mrb[0].mxu0
        %1953 = vmatprep.mubr.f32.mxu0 0.0
        %1954 = vmatmul.mubr.f32.gmra.mrb[0].mxu0 %v1816
        %v1955 = vpop.f32.mrb[0].mxu0
        %v1956 = vadd.f32 %v1763, %v1955
        %v1957 = vpop.f32.mrb[0].mxu0
        %1958 = vmatprep.mubr.f32.mxu0 0.0
        %1959 = vmatmul.mubr.f32.gmra.mrb[0].mxu0 %v1819
        %v1960 = vpop.f32.mrb[0].mxu0
        %v1961 = vadd.f32 %v1768, %v1960
        %v1962 = vpop.f32.mrb[0].mxu0
        %1963 = vmatprep.mubr.f32.mxu0 0.0
        %1964 = vmatmul.mubr.f32.gmra.mrb[0].mxu0 %v1822
        %v1965 = vpop.f32.mrb[0].mxu0
        %v1966 = vadd.f32 %v1773, %v1965
        %v1967 = vpop.f32.mrb[0].mxu0
        %1968 = vdwg.mxu0
        %s1969 = scalar_lea.vmem %s4, 2
        %v1970 = vld [vmem:[%s1969] sm:$0x1]
        %v1972 = vlaneseq
        %v1973 = vshrl.u32 %v1972, 7
        %v1974 = vsub.s32 0, %v1973
        %v1975 = vrot.slane %v1970, %v1974
        %v1977 = vadd.f32 %v1891, %v1975
        %v1978 = vadd.f32 %v1896, %v1975
        %v1979 = vadd.f32 %v1901, %v1975
        %v1980 = vadd.f32 %v1906, %v1975
        %v1981 = vadd.f32 %v1911, %v1975
        %v1982 = vadd.f32 %v1916, %v1975
        %v1983 = vadd.f32 %v1921, %v1975
        %v1984 = vadd.f32 %v1926, %v1975
        %v1985 = vadd.f32 %v1931, %v1975
        %v1986 = vadd.f32 %v1936, %v1975
        %v1987 = vadd.f32 %v1941, %v1975
        %v1988 = vadd.f32 %v1946, %v1975
        %v1989 = vadd.f32 %v1951, %v1975
        %v1990 = vadd.f32 %v1956, %v1975
        %v1991 = vadd.f32 %v1961, %v1975
        %v1992 = vadd.f32 %v1966, %v1975
        %s1993 = scalar_lea.vmem %s552, 256 [#allocation3]
        %1994 = vst.msk [vmem:[%s1993] sm:$0xff] %vm797, %v1977
        %1995 = vst.msk [vmem:[%s1993 + $0x8] sm:$0xff] %vm797, %v1978
        %1996 = vst.msk [vmem:[%s1993 + $0x10] sm:$0xff] %vm797, %v1979
        %1997 = vst.msk [vmem:[%s1993 + $0x18] sm:$0xff] %vm797, %v1980
        %1998 = vst.msk [vmem:[%s1993 + $0x20] sm:$0xff] %vm797, %v1981
        %1999 = vst.msk [vmem:[%s1993 + $0x28] sm:$0xff] %vm797, %v1982
        %2000 = vst.msk [vmem:[%s1993 + $0x30] sm:$0xff] %vm797, %v1983
        %2001 = vst.msk [vmem:[%s1993 + $0x38] sm:$0xff] %vm797, %v1984
        %2002 = vst.msk [vmem:[%s1993 + $0x40] sm:$0xff] %vm797, %v1985
        %2003 = vst.msk [vmem:[%s1993 + $0x48] sm:$0xff] %vm797, %v1986
        %2004 = vst.msk [vmem:[%s1993 + $0x50] sm:$0xff] %vm797, %v1987
        %2005 = vst.msk [vmem:[%s1993 + $0x58] sm:$0xff] %vm797, %v1988
        %2006 = vst.msk [vmem:[%s1993 + $0x60] sm:$0xff] %vm797, %v1989
        %2007 = vst.msk [vmem:[%s1993 + $0x68] sm:$0xff] %vm797, %v1990
        %2008 = vst.msk [vmem:[%s1993 + $0x70] sm:$0xff] %vm797, %v1991
        %2009 = vst.msk [vmem:[%s1993 + $0x78] sm:$0xff] %vm797, %v1992
        %v2010 = vsel %vm797, %v1977, 0.0
        %v2011 = vsel %vm797, %v1978, 0.0
        %v2012 = vadd.f32 %v2010, %v2011
        %v2013 = vsel %vm797, %v1979, 0.0
        %v2014 = vadd.f32 %v2012, %v2013
        %v2015 = vsel %vm797, %v1980, 0.0
        %v2016 = vadd.f32 %v2014, %v2015
        %v2017 = vsel %vm797, %v1981, 0.0
        %v2018 = vadd.f32 %v2016, %v2017
        %v2019 = vsel %vm797, %v1982, 0.0
        %v2020 = vadd.f32 %v2018, %v2019
        %v2021 = vsel %vm797, %v1983, 0.0
        %v2022 = vadd.f32 %v2020, %v2021
        %v2023 = vsel %vm797, %v1984, 0.0
        %v2024 = vadd.f32 %v2022, %v2023
        %v2025 = vsel %vm797, %v1985, 0.0
        %v2026 = vadd.f32 %v2024, %v2025
        %v2027 = vsel %vm797, %v1986, 0.0
        %v2028 = vadd.f32 %v2026, %v2027
        %v2029 = vsel %vm797, %v1987, 0.0
        %v2030 = vadd.f32 %v2028, %v2029
        %v2031 = vsel %vm797, %v1988, 0.0
        %v2032 = vadd.f32 %v2030, %v2031
        %v2033 = vsel %vm797, %v1989, 0.0
        %v2034 = vadd.f32 %v2032, %v2033
        %v2035 = vsel %vm797, %v1990, 0.0
        %v2036 = vadd.f32 %v2034, %v2035
        %v2037 = vsel %vm797, %v1991, 0.0
        %v2038 = vadd.f32 %v2036, %v2037
        %v2039 = vsel %vm797, %v1992, 0.0
        %v2040 = vadd.f32 %v2038, %v2039
        %v2041 = vrot.slane %v2040, 4
        %v2042 = vadd.f32 %v2040, %v2041
        %v2043 = vrot.slane %v2042, 2
        %v2044 = vadd.f32 %v2042, %v2043
        %v2045 = vrot.slane %v2044, 1
        %v2046 = vadd.f32 %v2044, %v2045
        %v2047 = vadd.f32 %v1557, %v2046
        %v2048 = vmul.f32 %v1977, %v1977
        %v2049 = vmul.f32 %v1978, %v1978
        %v2050 = vmul.f32 %v1979, %v1979
        %v2051 = vmul.f32 %v1980, %v1980
        %v2052 = vmul.f32 %v1981, %v1981
        %v2053 = vmul.f32 %v1982, %v1982
        %v2054 = vmul.f32 %v1983, %v1983
        %v2055 = vmul.f32 %v1984, %v1984
        %v2056 = vmul.f32 %v1985, %v1985
        %v2057 = vmul.f32 %v1986, %v1986
        %v2058 = vmul.f32 %v1987, %v1987
        %v2059 = vmul.f32 %v1988, %v1988
        %v2060 = vmul.f32 %v1989, %v1989
        %v2061 = vmul.f32 %v1990, %v1990
        %v2062 = vmul.f32 %v1991, %v1991
        %v2063 = vmul.f32 %v1992, %v1992
        %v2064 = vsel %vm797, %v2048, 0.0
        %v2065 = vsel %vm797, %v2049, 0.0
        %v2066 = vadd.f32 %v2064, %v2065
        %v2067 = vsel %vm797, %v2050, 0.0
        %v2068 = vadd.f32 %v2066, %v2067
        %v2069 = vsel %vm797, %v2051, 0.0
        %v2070 = vadd.f32 %v2068, %v2069
        %v2071 = vsel %vm797, %v2052, 0.0
        %v2072 = vadd.f32 %v2070, %v2071
        %v2073 = vsel %vm797, %v2053, 0.0
        %v2074 = vadd.f32 %v2072, %v2073
        %v2075 = vsel %vm797, %v2054, 0.0
        %v2076 = vadd.f32 %v2074, %v2075
        %v2077 = vsel %vm797, %v2055, 0.0
        %v2078 = vadd.f32 %v2076, %v2077
        %v2079 = vsel %vm797, %v2056, 0.0
        %v2080 = vadd.f32 %v2078, %v2079
        %v2081 = vsel %vm797, %v2057, 0.0
        %v2082 = vadd.f32 %v2080, %v2081
        %v2083 = vsel %vm797, %v2058, 0.0
        %v2084 = vadd.f32 %v2082, %v2083
        %v2085 = vsel %vm797, %v2059, 0.0
        %v2086 = vadd.f32 %v2084, %v2085
        %v2087 = vsel %vm797, %v2060, 0.0
        %v2088 = vadd.f32 %v2086, %v2087
        %v2089 = vsel %vm797, %v2061, 0.0
        %v2090 = vadd.f32 %v2088, %v2089
        %v2091 = vsel %vm797, %v2062, 0.0
        %v2092 = vadd.f32 %v2090, %v2091
        %v2093 = vsel %vm797, %v2063, 0.0
        %v2094 = vadd.f32 %v2092, %v2093
        %v2095 = vrot.slane %v2094, 4
        %v2096 = vadd.f32 %v2094, %v2095
        %v2097 = vrot.slane %v2096, 2
        %v2098 = vadd.f32 %v2096, %v2097
        %v2099 = vrot.slane %v2098, 1
        %v2100 = vadd.f32 %v2098, %v2099
        %v2101 = vadd.f32 %v1611, %v2100
        %s2102 = scalar_lea.vmem %s524, 384 [#allocation2]
        %v2103 = vld [vmem:[%s2102] sm:$0xff]
        %v2104 = vld [vmem:[%s2102 + $0x8] sm:$0xff]
        %v2105 = vld [vmem:[%s2102 + $0x10] sm:$0xff]
        %v2106 = vld [vmem:[%s2102 + $0x18] sm:$0xff]
        %v2107 = vld [vmem:[%s2102 + $0x20] sm:$0xff]
        %v2108 = vld [vmem:[%s2102 + $0x28] sm:$0xff]
        %v2109 = vld [vmem:[%s2102 + $0x30] sm:$0xff]
        %v2110 = vld [vmem:[%s2102 + $0x38] sm:$0xff]
        %v2111 = vld [vmem:[%s2102 + $0x40] sm:$0xff]
        %v2112 = vld [vmem:[%s2102 + $0x48] sm:$0xff]
        %v2113 = vld [vmem:[%s2102 + $0x50] sm:$0xff]
        %v2114 = vld [vmem:[%s2102 + $0x58] sm:$0xff]
        %v2115 = vld [vmem:[%s2102 + $0x60] sm:$0xff]
        %v2116 = vld [vmem:[%s2102 + $0x68] sm:$0xff]
        %v2117 = vld [vmem:[%s2102 + $0x70] sm:$0xff]
        %v2118 = vld [vmem:[%s2102 + $0x78] sm:$0xff]
        %s2119 = scalar_lea.vmem %s2, 24
        %v2120 = vld [vmem:[%s2119] sm:$0xff]
        %2121 = vmatprep.subr.mxu0 0.0
        %2122 = vmatpush1.msra.mxu0 %v2120
        %2123 = vmatprep.subr.mxu0 0.0
        %2124 = vmatpush1.msra.mxu0 0.0
        %2125 = vmatprep.subr.mxu0 0.0
        %2126 = vmatpush1.msra.mxu0 0.0
        %2127 = vmatprep.subr.mxu0 0.0
        %2128 = vmatpush1.msra.mxu0 0.0
        %2129 = vmatprep.subr.mxu0 0.0
        %2130 = vmatpush1.msra.mxu0 0.0
        %2131 = vmatprep.subr.mxu0 0.0
        %2132 = vmatpush1.msra.mxu0 0.0
        %2133 = vmatprep.subr.mxu0 0.0
        %2134 = vmatpush1.msra.mxu0 0.0
        %2135 = vmatprep.subr.mxu0 0.0
        %2136 = vmatpush1.msra.mxu0 0.0
        %2137 = vmatprep.subr.mxu0 0.0
        %2138 = vmatpush1.msra.mxu0 0.0
        %2139 = vmatprep.subr.mxu0 0.0
        %2140 = vmatpush1.msra.mxu0 0.0
        %2141 = vmatprep.subr.mxu0 0.0
        %2142 = vmatpush1.msra.mxu0 0.0
        %2143 = vmatprep.subr.mxu0 0.0
        %2144 = vmatpush1.msra.mxu0 0.0
        %2145 = vmatprep.subr.mxu0 0.0
        %2146 = vmatpush1.msra.mxu0 0.0
        %2147 = vmatprep.subr.mxu0 0.0
        %2148 = vmatpush1.msra.mxu0 0.0
        %2149 = vmatprep.subr.mxu0 0.0
        %2150 = vmatpush1.msra.mxu0 0.0
        %2151 = vmatprep.subr.mxu0 0.0
        %2152 = vmatpush1.msra.mxu0 0.0
        %2153 = vmatprep.subr.mxu0 0.0
        %2154 = vmatpush1.msra.mxu0 0.0
        %2155 = vmatprep.subr.mxu0 0.0
        %2156 = vmatpush1.msra.mxu0 0.0
        %2157 = vmatprep.subr.mxu0 0.0
        %2158 = vmatpush1.msra.mxu0 0.0
        %2159 = vmatprep.subr.mxu0 0.0
        %2160 = vmatpush1.msra.mxu0 0.0
        %2161 = vmatprep.subr.mxu0 0.0
        %2162 = vmatpush1.msra.mxu0 0.0
        %2163 = vmatprep.subr.mxu0 0.0
        %2164 = vmatpush1.msra.mxu0 0.0
        %2165 = vmatprep.subr.mxu0 0.0
        %2166 = vmatpush1.msra.mxu0 0.0
        %2167 = vmatprep.subr.mxu0 0.0
        %2168 = vmatpush1.msra.mxu0 0.0
        %2169 = vmatprep.subr.mxu0 0.0
        %2170 = vmatpush1.msra.mxu0 0.0
        %2171 = vmatprep.subr.mxu0 0.0
        %2172 = vmatpush1.msra.mxu0 0.0
        %2173 = vmatprep.subr.mxu0 0.0
        %2174 = vmatpush1.msra.mxu0 0.0
        %2175 = vmatprep.subr.mxu0 0.0
        %2176 = vmatpush1.msra.mxu0 0.0
        %2177 = vmatprep.subr.mxu0 0.0
        %2178 = vmatpush1.msra.mxu0 0.0
        %2179 = vmatprep.subr.mxu0 0.0
        %2180 = vmatpush1.msra.mxu0 0.0
        %2181 = vmatprep.subr.mxu0 0.0
        %2182 = vmatpush1.msra.mxu0 0.0
        %2183 = vmatprep.subr.mxu0 0.0
        %2184 = vmatpush1.msra.mxu0 0.0
        %2185 = vmatprep.mubr.f32.mxu0 0.0
        %2186 = vmatmul.mubr.f32.gmra.mrb[0].mxu0 %v605
        %v2187 = vpop.f32.mrb[0].mxu0
        %v2188 = vadd.f32 0.0, %v2187
        %v2189 = vpop.f32.mrb[0].mxu0
        %2190 = vmatprep.mubr.f32.mxu0 0.0
        %2191 = vmatmul.mubr.f32.gmra.mrb[0].mxu0 %v608
        %v2192 = vpop.f32.mrb[0].mxu0
        %v2193 = vadd.f32 0.0, %v2192
        %v2194 = vpop.f32.mrb[0].mxu0
        %2195 = vmatprep.mubr.f32.mxu0 0.0
        %2196 = vmatmul.mubr.f32.gmra.mrb[0].mxu0 %v611
        %v2197 = vpop.f32.mrb[0].mxu0
        %v2198 = vadd.f32 0.0, %v2197
        %v2199 = vpop.f32.mrb[0].mxu0
        %2200 = vmatprep.mubr.f32.mxu0 0.0
        %2201 = vmatmul.mubr.f32.gmra.mrb[0].mxu0 %v614
        %v2202 = vpop.f32.mrb[0].mxu0
        %v2203 = vadd.f32 0.0, %v2202
        %v2204 = vpop.f32.mrb[0].mxu0
        %2205 = vmatprep.mubr.f32.mxu0 0.0
        %2206 = vmatmul.mubr.f32.gmra.mrb[0].mxu0 %v617
        %v2207 = vpop.f32.mrb[0].mxu0
        %v2208 = vadd.f32 0.0, %v2207
        %v2209 = vpop.f32.mrb[0].mxu0
        %2210 = vmatprep.mubr.f32.mxu0 0.0
        %2211 = vmatmul.mubr.f32.gmra.mrb[0].mxu0 %v620
        %v2212 = vpop.f32.mrb[0].mxu0
        %v2213 = vadd.f32 0.0, %v2212
        %v2214 = vpop.f32.mrb[0].mxu0
        %2215 = vmatprep.mubr.f32.mxu0 0.0
        %2216 = vmatmul.mubr.f32.gmra.mrb[0].mxu0 %v623
        %v2217 = vpop.f32.mrb[0].mxu0
        %v2218 = vadd.f32 0.0, %v2217
        %v2219 = vpop.f32.mrb[0].mxu0
        %2220 = vmatprep.mubr.f32.mxu0 0.0
        %2221 = vmatmul.mubr.f32.gmra.mrb[0].mxu0 %v626
        %v2222 = vpop.f32.mrb[0].mxu0
        %v2223 = vadd.f32 0.0, %v2222
        %v2224 = vpop.f32.mrb[0].mxu0
        %2225 = vmatprep.mubr.f32.mxu0 0.0
        %2226 = vmatmul.mubr.f32.gmra.mrb[0].mxu0 %v629
        %v2227 = vpop.f32.mrb[0].mxu0
        %v2228 = vadd.f32 0.0, %v2227
        %v2229 = vpop.f32.mrb[0].mxu0
        %2230 = vmatprep.mubr.f32.mxu0 0.0
        %2231 = vmatmul.mubr.f32.gmra.mrb[0].mxu0 %v632
        %v2232 = vpop.f32.mrb[0].mxu0
        %v2233 = vadd.f32 0.0, %v2232
        %v2234 = vpop.f32.mrb[0].mxu0
        %2235 = vmatprep.mubr.f32.mxu0 0.0
        %2236 = vmatmul.mubr.f32.gmra.mrb[0].mxu0 %v635
        %v2237 = vpop.f32.mrb[0].mxu0
        %v2238 = vadd.f32 0.0, %v2237
        %v2239 = vpop.f32.mrb[0].mxu0
        %2240 = vmatprep.mubr.f32.mxu0 0.0
        %2241 = vmatmul.mubr.f32.gmra.mrb[0].mxu0 %v638
        %v2242 = vpop.f32.mrb[0].mxu0
        %v2243 = vadd.f32 0.0, %v2242
        %v2244 = vpop.f32.mrb[0].mxu0
        %2245 = vmatprep.mubr.f32.mxu0 0.0
        %2246 = vmatmul.mubr.f32.gmra.mrb[0].mxu0 %v641
        %v2247 = vpop.f32.mrb[0].mxu0
        %v2248 = vadd.f32 0.0, %v2247
        %v2249 = vpop.f32.mrb[0].mxu0
        %2250 = vmatprep.mubr.f32.mxu0 0.0
        %2251 = vmatmul.mubr.f32.gmra.mrb[0].mxu0 %v644
        %v2252 = vpop.f32.mrb[0].mxu0
        %v2253 = vadd.f32 0.0, %v2252
        %v2254 = vpop.f32.mrb[0].mxu0
        %2255 = vmatprep.mubr.f32.mxu0 0.0
        %2256 = vmatmul.mubr.f32.gmra.mrb[0].mxu0 %v647
        %v2257 = vpop.f32.mrb[0].mxu0
        %v2258 = vadd.f32 0.0, %v2257
        %v2259 = vpop.f32.mrb[0].mxu0
        %2260 = vmatprep.mubr.f32.mxu0 0.0
        %2261 = vmatmul.mubr.f32.gmra.mrb[0].mxu0 %v650
        %v2262 = vpop.f32.mrb[0].mxu0
        %v2263 = vadd.f32 0.0, %v2262
        %v2264 = vpop.f32.mrb[0].mxu0
        %2265 = vdwg.mxu0
        %v2267 = vsel %vm797, %v2103, 0
        %v2270 = vsel %vm797, %v2104, 0
        %v2273 = vsel %vm797, %v2105, 0
        %v2276 = vsel %vm797, %v2106, 0
        %v2279 = vsel %vm797, %v2107, 0
        %v2282 = vsel %vm797, %v2108, 0
        %v2285 = vsel %vm797, %v2109, 0
        %v2288 = vsel %vm797, %v2110, 0
        %v2291 = vsel %vm797, %v2111, 0
        %v2294 = vsel %vm797, %v2112, 0
        %v2297 = vsel %vm797, %v2113, 0
        %v2300 = vsel %vm797, %v2114, 0
        %v2303 = vsel %vm797, %v2115, 0
        %v2306 = vsel %vm797, %v2116, 0
        %v2309 = vsel %vm797, %v2117, 0
        %v2312 = vsel %vm797, %v2118, 0
        %2314 = vmatprep.subr.mxu0 0.0
        %2315 = vmatpush1.msra.mxu0 %v584
        %2316 = vmatprep.subr.mxu0 0.0
        %2317 = vmatpush1.msra.mxu0 %v585
        %2318 = vmatprep.subr.mxu0 0.0
        %2319 = vmatpush1.msra.mxu0 0.0
        %2320 = vmatprep.subr.mxu0 0.0
        %2321 = vmatpush1.msra.mxu0 0.0
        %2322 = vmatprep.subr.mxu0 0.0
        %2323 = vmatpush1.msra.mxu0 0.0
        %2324 = vmatprep.subr.mxu0 0.0
        %2325 = vmatpush1.msra.mxu0 0.0
        %2326 = vmatprep.subr.mxu0 0.0
        %2327 = vmatpush1.msra.mxu0 0.0
        %2328 = vmatprep.subr.mxu0 0.0
        %2329 = vmatpush1.msra.mxu0 0.0
        %2330 = vmatprep.subr.mxu0 0.0
        %2331 = vmatpush1.msra.mxu0 0.0
        %2332 = vmatprep.subr.mxu0 0.0
        %2333 = vmatpush1.msra.mxu0 0.0
        %2334 = vmatprep.subr.mxu0 0.0
        %2335 = vmatpush1.msra.mxu0 0.0
        %2336 = vmatprep.subr.mxu0 0.0
        %2337 = vmatpush1.msra.mxu0 0.0
        %2338 = vmatprep.subr.mxu0 0.0
        %2339 = vmatpush1.msra.mxu0 0.0
        %2340 = vmatprep.subr.mxu0 0.0
        %2341 = vmatpush1.msra.mxu0 0.0
        %2342 = vmatprep.subr.mxu0 0.0
        %2343 = vmatpush1.msra.mxu0 0.0
        %2344 = vmatprep.subr.mxu0 0.0
        %2345 = vmatpush1.msra.mxu0 0.0
        %2346 = vmatprep.subr.mxu0 0.0
        %2347 = vmatpush1.msra.mxu0 0.0
        %2348 = vmatprep.subr.mxu0 0.0
        %2349 = vmatpush1.msra.mxu0 0.0
        %2350 = vmatprep.subr.mxu0 0.0
        %2351 = vmatpush1.msra.mxu0 0.0
        %2352 = vmatprep.subr.mxu0 0.0
        %2353 = vmatpush1.msra.mxu0 0.0
        %2354 = vmatprep.subr.mxu0 0.0
        %2355 = vmatpush1.msra.mxu0 0.0
        %2356 = vmatprep.subr.mxu0 0.0
        %2357 = vmatpush1.msra.mxu0 0.0
        %2358 = vmatprep.subr.mxu0 0.0
        %2359 = vmatpush1.msra.mxu0 0.0
        %2360 = vmatprep.subr.mxu0 0.0
        %2361 = vmatpush1.msra.mxu0 0.0
        %2362 = vmatprep.subr.mxu0 0.0
        %2363 = vmatpush1.msra.mxu0 0.0
        %2364 = vmatprep.subr.mxu0 0.0
        %2365 = vmatpush1.msra.mxu0 0.0
        %2366 = vmatprep.subr.mxu0 0.0
        %2367 = vmatpush1.msra.mxu0 0.0
        %2368 = vmatprep.subr.mxu0 0.0
        %2369 = vmatpush1.msra.mxu0 0.0
        %2370 = vmatprep.subr.mxu0 0.0
        %2371 = vmatpush1.msra.mxu0 0.0
        %2372 = vmatprep.subr.mxu0 0.0
        %2373 = vmatpush1.msra.mxu0 0.0
        %2374 = vmatprep.subr.mxu0 0.0
        %2375 = vmatpush1.msra.mxu0 0.0
        %2376 = vmatprep.subr.mxu0 0.0
        %2377 = vmatpush1.msra.mxu0 0.0
        %2378 = vmatprep.mubr.f32.mxu0 0.0
        %2379 = vmatmul.mubr.f32.gmra.mrb[0].mxu0 %v2267
        %v2380 = vpop.f32.mrb[0].mxu0
        %v2381 = vadd.f32 %v2188, %v2380
        %v2382 = vpop.f32.mrb[0].mxu0
        %2383 = vmatprep.mubr.f32.mxu0 0.0
        %2384 = vmatmul.mubr.f32.gmra.mrb[0].mxu0 %v2270
        %v2385 = vpop.f32.mrb[0].mxu0
        %v2386 = vadd.f32 %v2193, %v2385
        %v2387 = vpop.f32.mrb[0].mxu0
        %2388 = vmatprep.mubr.f32.mxu0 0.0
        %2389 = vmatmul.mubr.f32.gmra.mrb[0].mxu0 %v2273
        %v2390 = vpop.f32.mrb[0].mxu0
        %v2391 = vadd.f32 %v2198, %v2390
        %v2392 = vpop.f32.mrb[0].mxu0
        %2393 = vmatprep.mubr.f32.mxu0 0.0
        %2394 = vmatmul.mubr.f32.gmra.mrb[0].mxu0 %v2276
        %v2395 = vpop.f32.mrb[0].mxu0
        %v2396 = vadd.f32 %v2203, %v2395
        %v2397 = vpop.f32.mrb[0].mxu0
        %2398 = vmatprep.mubr.f32.mxu0 0.0
        %2399 = vmatmul.mubr.f32.gmra.mrb[0].mxu0 %v2279
        %v2400 = vpop.f32.mrb[0].mxu0
        %v2401 = vadd.f32 %v2208, %v2400
        %v2402 = vpop.f32.mrb[0].mxu0
        %2403 = vmatprep.mubr.f32.mxu0 0.0
        %2404 = vmatmul.mubr.f32.gmra.mrb[0].mxu0 %v2282
        %v2405 = vpop.f32.mrb[0].mxu0
        %v2406 = vadd.f32 %v2213, %v2405
        %v2407 = vpop.f32.mrb[0].mxu0
        %2408 = vmatprep.mubr.f32.mxu0 0.0
        %2409 = vmatmul.mubr.f32.gmra.mrb[0].mxu0 %v2285
        %v2410 = vpop.f32.mrb[0].mxu0
        %v2411 = vadd.f32 %v2218, %v2410
        %v2412 = vpop.f32.mrb[0].mxu0
        %2413 = vmatprep.mubr.f32.mxu0 0.0
        %2414 = vmatmul.mubr.f32.gmra.mrb[0].mxu0 %v2288
        %v2415 = vpop.f32.mrb[0].mxu0
        %v2416 = vadd.f32 %v2223, %v2415
        %v2417 = vpop.f32.mrb[0].mxu0
        %2418 = vmatprep.mubr.f32.mxu0 0.0
        %2419 = vmatmul.mubr.f32.gmra.mrb[0].mxu0 %v2291
        %v2420 = vpop.f32.mrb[0].mxu0
        %v2421 = vadd.f32 %v2228, %v2420
        %v2422 = vpop.f32.mrb[0].mxu0
        %2423 = vmatprep.mubr.f32.mxu0 0.0
        %2424 = vmatmul.mubr.f32.gmra.mrb[0].mxu0 %v2294
        %v2425 = vpop.f32.mrb[0].mxu0
        %v2426 = vadd.f32 %v2233, %v2425
        %v2427 = vpop.f32.mrb[0].mxu0
        %2428 = vmatprep.mubr.f32.mxu0 0.0
        %2429 = vmatmul.mubr.f32.gmra.mrb[0].mxu0 %v2297
        %v2430 = vpop.f32.mrb[0].mxu0
        %v2431 = vadd.f32 %v2238, %v2430
        %v2432 = vpop.f32.mrb[0].mxu0
        %2433 = vmatprep.mubr.f32.mxu0 0.0
        %2434 = vmatmul.mubr.f32.gmra.mrb[0].mxu0 %v2300
        %v2435 = vpop.f32.mrb[0].mxu0
        %v2436 = vadd.f32 %v2243, %v2435
        %v2437 = vpop.f32.mrb[0].mxu0
        %2438 = vmatprep.mubr.f32.mxu0 0.0
        %2439 = vmatmul.mubr.f32.gmra.mrb[0].mxu0 %v2303
        %v2440 = vpop.f32.mrb[0].mxu0
        %v2441 = vadd.f32 %v2248, %v2440
        %v2442 = vpop.f32.mrb[0].mxu0
        %2443 = vmatprep.mubr.f32.mxu0 0.0
        %2444 = vmatmul.mubr.f32.gmra.mrb[0].mxu0 %v2306
        %v2445 = vpop.f32.mrb[0].mxu0
        %v2446 = vadd.f32 %v2253, %v2445
        %v2447 = vpop.f32.mrb[0].mxu0
        %2448 = vmatprep.mubr.f32.mxu0 0.0
        %2449 = vmatmul.mubr.f32.gmra.mrb[0].mxu0 %v2309
        %v2450 = vpop.f32.mrb[0].mxu0
        %v2451 = vadd.f32 %v2258, %v2450
        %v2452 = vpop.f32.mrb[0].mxu0
        %2453 = vmatprep.mubr.f32.mxu0 0.0
        %2454 = vmatmul.mubr.f32.gmra.mrb[0].mxu0 %v2312
        %v2455 = vpop.f32.mrb[0].mxu0
        %v2456 = vadd.f32 %v2263, %v2455
        %v2457 = vpop.f32.mrb[0].mxu0
        %2458 = vdwg.mxu0
        %s2459 = scalar_lea.vmem %s4, 3
        %v2460 = vld [vmem:[%s2459] sm:$0x1]
        %v2462 = vlaneseq
        %v2463 = vshrl.u32 %v2462, 7
        %v2464 = vsub.s32 0, %v2463
        %v2465 = vrot.slane %v2460, %v2464
        %v2467 = vadd.f32 %v2381, %v2465
        %v2468 = vadd.f32 %v2386, %v2465
        %v2469 = vadd.f32 %v2391, %v2465
        %v2470 = vadd.f32 %v2396, %v2465
        %v2471 = vadd.f32 %v2401, %v2465
        %v2472 = vadd.f32 %v2406, %v2465
        %v2473 = vadd.f32 %v2411, %v2465
        %v2474 = vadd.f32 %v2416, %v2465
        %v2475 = vadd.f32 %v2421, %v2465
        %v2476 = vadd.f32 %v2426, %v2465
        %v2477 = vadd.f32 %v2431, %v2465
        %v2478 = vadd.f32 %v2436, %v2465
        %v2479 = vadd.f32 %v2441, %v2465
        %v2480 = vadd.f32 %v2446, %v2465
        %v2481 = vadd.f32 %v2451, %v2465
        %v2482 = vadd.f32 %v2456, %v2465
        %s2483 = scalar_lea.vmem %s552, 384 [#allocation3]
        %2484 = vst.msk [vmem:[%s2483] sm:$0xff] %vm797, %v2467
        %2485 = vst.msk [vmem:[%s2483 + $0x8] sm:$0xff] %vm797, %v2468
        %2486 = vst.msk [vmem:[%s2483 + $0x10] sm:$0xff] %vm797, %v2469
        %2487 = vst.msk [vmem:[%s2483 + $0x18] sm:$0xff] %vm797, %v2470
        %2488 = vst.msk [vmem:[%s2483 + $0x20] sm:$0xff] %vm797, %v2471
        %2489 = vst.msk [vmem:[%s2483 + $0x28] sm:$0xff] %vm797, %v2472
        %2490 = vst.msk [vmem:[%s2483 + $0x30] sm:$0xff] %vm797, %v2473
        %2491 = vst.msk [vmem:[%s2483 + $0x38] sm:$0xff] %vm797, %v2474
        %2492 = vst.msk [vmem:[%s2483 + $0x40] sm:$0xff] %vm797, %v2475
        %2493 = vst.msk [vmem:[%s2483 + $0x48] sm:$0xff] %vm797, %v2476
        %2494 = vst.msk [vmem:[%s2483 + $0x50] sm:$0xff] %vm797, %v2477
        %2495 = vst.msk [vmem:[%s2483 + $0x58] sm:$0xff] %vm797, %v2478
        %2496 = vst.msk [vmem:[%s2483 + $0x60] sm:$0xff] %vm797, %v2479
        %2497 = vst.msk [vmem:[%s2483 + $0x68] sm:$0xff] %vm797, %v2480
        %2498 = vst.msk [vmem:[%s2483 + $0x70] sm:$0xff] %vm797, %v2481
        %2499 = vst.msk [vmem:[%s2483 + $0x78] sm:$0xff] %vm797, %v2482
        %v2500 = vsel %vm797, %v2467, 0.0
        %v2501 = vsel %vm797, %v2468, 0.0
        %v2502 = vadd.f32 %v2500, %v2501
        %v2503 = vsel %vm797, %v2469, 0.0
        %v2504 = vadd.f32 %v2502, %v2503
        %v2505 = vsel %vm797, %v2470, 0.0
        %v2506 = vadd.f32 %v2504, %v2505
        %v2507 = vsel %vm797, %v2471, 0.0
        %v2508 = vadd.f32 %v2506, %v2507
        %v2509 = vsel %vm797, %v2472, 0.0
        %v2510 = vadd.f32 %v2508, %v2509
        %v2511 = vsel %vm797, %v2473, 0.0
        %v2512 = vadd.f32 %v2510, %v2511
        %v2513 = vsel %vm797, %v2474, 0.0
        %v2514 = vadd.f32 %v2512, %v2513
        %v2515 = vsel %vm797, %v2475, 0.0
        %v2516 = vadd.f32 %v2514, %v2515
        %v2517 = vsel %vm797, %v2476, 0.0
        %v2518 = vadd.f32 %v2516, %v2517
        %v2519 = vsel %vm797, %v2477, 0.0
        %v2520 = vadd.f32 %v2518, %v2519
        %v2521 = vsel %vm797, %v2478, 0.0
        %v2522 = vadd.f32 %v2520, %v2521
        %v2523 = vsel %vm797, %v2479, 0.0
        %v2524 = vadd.f32 %v2522, %v2523
        %v2525 = vsel %vm797, %v2480, 0.0
        %v2526 = vadd.f32 %v2524, %v2525
        %v2527 = vsel %vm797, %v2481, 0.0
        %v2528 = vadd.f32 %v2526, %v2527
        %v2529 = vsel %vm797, %v2482, 0.0
        %v2530 = vadd.f32 %v2528, %v2529
        %v2531 = vrot.slane %v2530, 4
        %v2532 = vadd.f32 %v2530, %v2531
        %v2533 = vrot.slane %v2532, 2
        %v2534 = vadd.f32 %v2532, %v2533
        %v2535 = vrot.slane %v2534, 1
        %v2536 = vadd.f32 %v2534, %v2535
        %v2537 = vadd.f32 %v2047, %v2536
        %v2538 = vmul.f32 %v2467, %v2467
        %v2539 = vmul.f32 %v2468, %v2468
        %v2540 = vmul.f32 %v2469, %v2469
        %v2541 = vmul.f32 %v2470, %v2470
        %v2542 = vmul.f32 %v2471, %v2471
        %v2543 = vmul.f32 %v2472, %v2472
        %v2544 = vmul.f32 %v2473, %v2473
        %v2545 = vmul.f32 %v2474, %v2474
        %v2546 = vmul.f32 %v2475, %v2475
        %v2547 = vmul.f32 %v2476, %v2476
        %v2548 = vmul.f32 %v2477, %v2477
        %v2549 = vmul.f32 %v2478, %v2478
        %v2550 = vmul.f32 %v2479, %v2479
        %v2551 = vmul.f32 %v2480, %v2480
        %v2552 = vmul.f32 %v2481, %v2481
        %v2553 = vmul.f32 %v2482, %v2482
        %v2554 = vsel %vm797, %v2538, 0.0
        %v2555 = vsel %vm797, %v2539, 0.0
        %v2556 = vadd.f32 %v2554, %v2555
        %v2557 = vsel %vm797, %v2540, 0.0
        %v2558 = vadd.f32 %v2556, %v2557
        %v2559 = vsel %vm797, %v2541, 0.0
        %v2560 = vadd.f32 %v2558, %v2559
        %v2561 = vsel %vm797, %v2542, 0.0
        %v2562 = vadd.f32 %v2560, %v2561
        %v2563 = vsel %vm797, %v2543, 0.0
        %v2564 = vadd.f32 %v2562, %v2563
        %v2565 = vsel %vm797, %v2544, 0.0
        %v2566 = vadd.f32 %v2564, %v2565
        %v2567 = vsel %vm797, %v2545, 0.0
        %v2568 = vadd.f32 %v2566, %v2567
        %v2569 = vsel %vm797, %v2546, 0.0
        %v2570 = vadd.f32 %v2568, %v2569
        %v2571 = vsel %vm797, %v2547, 0.0
        %v2572 = vadd.f32 %v2570, %v2571
        %v2573 = vsel %vm797, %v2548, 0.0
        %v2574 = vadd.f32 %v2572, %v2573
        %v2575 = vsel %vm797, %v2549, 0.0
        %v2576 = vadd.f32 %v2574, %v2575
        %v2577 = vsel %vm797, %v2550, 0.0
        %v2578 = vadd.f32 %v2576, %v2577
        %v2579 = vsel %vm797, %v2551, 0.0
        %v2580 = vadd.f32 %v2578, %v2579
        %v2581 = vsel %vm797, %v2552, 0.0
        %v2582 = vadd.f32 %v2580, %v2581
        %v2583 = vsel %vm797, %v2553, 0.0
        %v2584 = vadd.f32 %v2582, %v2583
        %v2585 = vrot.slane %v2584, 4
        %v2586 = vadd.f32 %v2584, %v2585
        %v2587 = vrot.slane %v2586, 2
        %v2588 = vadd.f32 %v2586, %v2587
        %v2589 = vrot.slane %v2588, 1
        %v2590 = vadd.f32 %v2588, %v2589
        %v2591 = vadd.f32 %v2101, %v2590
        %vm2592 = vcmask 1040384
        %v2593 = vsel %vm2592, %v2537, %v2591
        %vm2594 = vcmask 123904
        %2595 = vst.msk [vmem:[%s559] sm:$0x3] %vm2594, %v2593
        %s2596 = sand.u32 %s144, 1
        %s2597 = sand.u32 %s144, 1
        %s2598 = smul.addr %s2597, 512
        %s2599 = scalar_lea.vmem [#allocation3], %s2598
        %s2600 = sand.u32 %s170, 1
        %s2601 = scalar_lea.sflag [#allocation5], %s2600
        %s2602 = sand.u32 %s170, 1
        %s2603 = smul.addr %s2602, 2
        %s2604 = scalar_lea.vmem [#allocation4], %s2603
        // Predicated region
        $region79: #{tpu_custom_call.1} parent=73 // pred_check
          %p2605 = pneg %p154
        $region80: #{tpu_custom_call.1} parent=73 // pred_check_branch
          %2607 = sbr.rel (%p2605) target = $region82
        $region81: #{tpu_custom_call.1} parent=73 // pred_region
          %s2608 = smul.u32 16, %s21
          %s2609 = smul.addr %s2608, 8
          %s2610 = scalar_lea.vmem %s5, %s2609
          // Predicated region
          $region83: #{tpu_custom_call.1} parent=81 // pred_check
            _
          $region84: #{tpu_custom_call.1} parent=81 // pred_check_branch
            %2612 = sbr.rel (0) target = $region86
          $region85: #{tpu_custom_call.1} parent=81 // pred_region
            // Predicated region
            $region87: #{tpu_custom_call.1} parent=85 // pred_check
              _
            $region88: #{tpu_custom_call.1} parent=85 // pred_check_branch
              %2614 = sbr.rel (0) target = $region90
            $region89: #{tpu_custom_call.1} parent=85 // pred_region
              // Predicated region
              $region102: #{tpu_custom_call.1} parent=89 // pred_check
                _
              $region103: #{tpu_custom_call.1} parent=89 // pred_check_branch
                %2755 = sbr.rel (0) target = $region105
              $region104: #{tpu_custom_call.1} parent=89 // pred_region
                loop: start=0, step=1, limit=1
                $region106: #{tpu_custom_call.1} parent=104 // loop_pre_header
                  _
                $region107: #{tpu_custom_call.1} parent=104 // loop_header
                  %s2757 = sphi 0, %s2761
                  %p2758 = scmp.ge.s32.totalorder %s2757, 1
                  %s2762 = sphi %s2599, %s2599
                  %s2763 = sphi %s2610, %s2610
                $region108: #{tpu_custom_call.1} parent=104 // loop_header_branch
                  %2760 = sbr.rel (%p2758) target = $region112
                $region109: #{tpu_custom_call.1} parent=104 // loop_body
                  %v2764 = vld [vmem:[%s2762] sm:$0xff]
                  %2765 = vst [vmem:[%s2763] sm:$0xff] %v2764
                  %v2766 = vld [vmem:[%s2762 + $0x8] sm:$0xff]
                  %2767 = vst [vmem:[%s2763 + $0x8] sm:$0xff] %v2766
                  %v2768 = vld [vmem:[%s2762 + $0x10] sm:$0xff]
                  %2769 = vst [vmem:[%s2763 + $0x10] sm:$0xff] %v2768
                  %v2770 = vld [vmem:[%s2762 + $0x18] sm:$0xff]
                  %2771 = vst [vmem:[%s2763 + $0x18] sm:$0xff] %v2770
                  %v2772 = vld [vmem:[%s2762 + $0x20] sm:$0xff]
                  %2773 = vst [vmem:[%s2763 + $0x20] sm:$0xff] %v2772
                  %v2774 = vld [vmem:[%s2762 + $0x28] sm:$0xff]
                  %2775 = vst [vmem:[%s2763 + $0x28] sm:$0xff] %v2774
                  %v2776 = vld [vmem:[%s2762 + $0x30] sm:$0xff]
                  %2777 = vst [vmem:[%s2763 + $0x30] sm:$0xff] %v2776
                  %v2778 = vld [vmem:[%s2762 + $0x38] sm:$0xff]
                  %2779 = vst [vmem:[%s2763 + $0x38] sm:$0xff] %v2778
                  %v2780 = vld [vmem:[%s2762 + $0x40] sm:$0xff]
                  %2781 = vst [vmem:[%s2763 + $0x40] sm:$0xff] %v2780
                  %v2782 = vld [vmem:[%s2762 + $0x48] sm:$0xff]
                  %2783 = vst [vmem:[%s2763 + $0x48] sm:$0xff] %v2782
                  %v2784 = vld [vmem:[%s2762 + $0x50] sm:$0xff]
                  %2785 = vst [vmem:[%s2763 + $0x50] sm:$0xff] %v2784
                  %v2786 = vld [vmem:[%s2762 + $0x58] sm:$0xff]
                  %2787 = vst [vmem:[%s2763 + $0x58] sm:$0xff] %v2786
                  %v2788 = vld [vmem:[%s2762 + $0x60] sm:$0xff]
                  %2789 = vst [vmem:[%s2763 + $0x60] sm:$0xff] %v2788
                  %v2790 = vld [vmem:[%s2762 + $0x68] sm:$0xff]
                  %2791 = vst [vmem:[%s2763 + $0x68] sm:$0xff] %v2790
                  %v2792 = vld [vmem:[%s2762 + $0x70] sm:$0xff]
                  %2793 = vst [vmem:[%s2763 + $0x70] sm:$0xff] %v2792
                  %v2794 = vld [vmem:[%s2762 + $0x78] sm:$0xff]
                  %2795 = vst [vmem:[%s2763 + $0x78] sm:$0xff] %v2794
                  %v2796 = vld [vmem:[%s2762 + $0x80] sm:$0xff]
                  %2797 = vst [vmem:[%s2763 + $0x200] sm:$0xff] %v2796
                  %v2798 = vld [vmem:[%s2762 + $0x88] sm:$0xff]
                  %2799 = vst [vmem:[%s2763 + $0x208] sm:$0xff] %v2798
                  %v2800 = vld [vmem:[%s2762 + $0x90] sm:$0xff]
                  %2801 = vst [vmem:[%s2763 + $0x210] sm:$0xff] %v2800
                  %v2802 = vld [vmem:[%s2762 + $0x98] sm:$0xff]
                  %2803 = vst [vmem:[%s2763 + $0x218] sm:$0xff] %v2802
                  %v2804 = vld [vmem:[%s2762 + $0xa0] sm:$0xff]
                  %2805 = vst [vmem:[%s2763 + $0x220] sm:$0xff] %v2804
                  %v2806 = vld [vmem:[%s2762 + $0xa8] sm:$0xff]
                  %2807 = vst [vmem:[%s2763 + $0x228] sm:$0xff] %v2806
                  %v2808 = vld [vmem:[%s2762 + $0xb0] sm:$0xff]
                  %2809 = vst [vmem:[%s2763 + $0x230] sm:$0xff] %v2808
                  %v2810 = vld [vmem:[%s2762 + $0xb8] sm:$0xff]
                  %2811 = vst [vmem:[%s2763 + $0x238] sm:$0xff] %v2810
                  %v2812 = vld [vmem:[%s2762 + $0xc0] sm:$0xff]
                  %2813 = vst [vmem:[%s2763 + $0x240] sm:$0xff] %v2812
                  %v2814 = vld [vmem:[%s2762 + $0xc8] sm:$0xff]
                  %2815 = vst [vmem:[%s2763 + $0x248] sm:$0xff] %v2814
                  %v2816 = vld [vmem:[%s2762 + $0xd0] sm:$0xff]
                  %2817 = vst [vmem:[%s2763 + $0x250] sm:$0xff] %v2816
                  %v2818 = vld [vmem:[%s2762 + $0xd8] sm:$0xff]
                  %2819 = vst [vmem:[%s2763 + $0x258] sm:$0xff] %v2818
                  %v2820 = vld [vmem:[%s2762 + $0xe0] sm:$0xff]
                  %2821 = vst [vmem:[%s2763 + $0x260] sm:$0xff] %v2820
                  %v2822 = vld [vmem:[%s2762 + $0xe8] sm:$0xff]
                  %2823 = vst [vmem:[%s2763 + $0x268] sm:$0xff] %v2822
                  %v2824 = vld [vmem:[%s2762 + $0xf0] sm:$0xff]
                  %2825 = vst [vmem:[%s2763 + $0x270] sm:$0xff] %v2824
                  %v2826 = vld [vmem:[%s2762 + $0xf8] sm:$0xff]
                  %2827 = vst [vmem:[%s2763 + $0x278] sm:$0xff] %v2826
                  %v2828 = vld [vmem:[%s2762 + $0x100] sm:$0xff]
                  %2829 = vst [vmem:[%s2763 + $0x400] sm:$0xff] %v2828
                  %v2830 = vld [vmem:[%s2762 + $0x108] sm:$0xff]
                  %2831 = vst [vmem:[%s2763 + $0x408] sm:$0xff] %v2830
                  %v2832 = vld [vmem:[%s2762 + $0x110] sm:$0xff]
                  %2833 = vst [vmem:[%s2763 + $0x410] sm:$0xff] %v2832
                  %v2834 = vld [vmem:[%s2762 + $0x118] sm:$0xff]
                  %2835 = vst [vmem:[%s2763 + $0x418] sm:$0xff] %v2834
                  %v2836 = vld [vmem:[%s2762 + $0x120] sm:$0xff]
                  %2837 = vst [vmem:[%s2763 + $0x420] sm:$0xff] %v2836
                  %v2838 = vld [vmem:[%s2762 + $0x128] sm:$0xff]
                  %2839 = vst [vmem:[%s2763 + $0x428] sm:$0xff] %v2838
                  %v2840 = vld [vmem:[%s2762 + $0x130] sm:$0xff]
                  %2841 = vst [vmem:[%s2763 + $0x430] sm:$0xff] %v2840
                  %v2842 = vld [vmem:[%s2762 + $0x138] sm:$0xff]
                  %2843 = vst [vmem:[%s2763 + $0x438] sm:$0xff] %v2842
                  %v2844 = vld [vmem:[%s2762 + $0x140] sm:$0xff]
                  %2845 = vst [vmem:[%s2763 + $0x440] sm:$0xff] %v2844
                  %v2846 = vld [vmem:[%s2762 + $0x148] sm:$0xff]
                  %2847 = vst [vmem:[%s2763 + $0x448] sm:$0xff] %v2846
                  %v2848 = vld [vmem:[%s2762 + $0x150] sm:$0xff]
                  %2849 = vst [vmem:[%s2763 + $0x450] sm:$0xff] %v2848
                  %v2850 = vld [vmem:[%s2762 + $0x158] sm:$0xff]
                  %2851 = vst [vmem:[%s2763 + $0x458] sm:$0xff] %v2850
                  %v2852 = vld [vmem:[%s2762 + $0x160] sm:$0xff]
                  %2853 = vst [vmem:[%s2763 + $0x460] sm:$0xff] %v2852
                  %v2854 = vld [vmem:[%s2762 + $0x168] sm:$0xff]
                  %2855 = vst [vmem:[%s2763 + $0x468] sm:$0xff] %v2854
                  %v2856 = vld [vmem:[%s2762 + $0x170] sm:$0xff]
                  %2857 = vst [vmem:[%s2763 + $0x470] sm:$0xff] %v2856
                  %v2858 = vld [vmem:[%s2762 + $0x178] sm:$0xff]
                  %2859 = vst [vmem:[%s2763 + $0x478] sm:$0xff] %v2858
                  %v2860 = vld [vmem:[%s2762 + $0x180] sm:$0xff]
                  %2861 = vst [vmem:[%s2763 + $0x600] sm:$0xff] %v2860
                  %v2862 = vld [vmem:[%s2762 + $0x188] sm:$0xff]
                  %2863 = vst [vmem:[%s2763 + $0x608] sm:$0xff] %v2862
                  %v2864 = vld [vmem:[%s2762 + $0x190] sm:$0xff]
                  %2865 = vst [vmem:[%s2763 + $0x610] sm:$0xff] %v2864
                  %v2866 = vld [vmem:[%s2762 + $0x198] sm:$0xff]
                  %2867 = vst [vmem:[%s2763 + $0x618] sm:$0xff] %v2866
                  %v2868 = vld [vmem:[%s2762 + $0x1a0] sm:$0xff]
                  %2869 = vst [vmem:[%s2763 + $0x620] sm:$0xff] %v2868
                  %v2870 = vld [vmem:[%s2762 + $0x1a8] sm:$0xff]
                  %2871 = vst [vmem:[%s2763 + $0x628] sm:$0xff] %v2870
                  %v2872 = vld [vmem:[%s2762 + $0x1b0] sm:$0xff]
                  %2873 = vst [vmem:[%s2763 + $0x630] sm:$0xff] %v2872
                  %v2874 = vld [vmem:[%s2762 + $0x1b8] sm:$0xff]
                  %2875 = vst [vmem:[%s2763 + $0x638] sm:$0xff] %v2874
                  %v2876 = vld [vmem:[%s2762 + $0x1c0] sm:$0xff]
                  %2877 = vst [vmem:[%s2763 + $0x640] sm:$0xff] %v2876
                  %v2878 = vld [vmem:[%s2762 + $0x1c8] sm:$0xff]
                  %2879 = vst [vmem:[%s2763 + $0x648] sm:$0xff] %v2878
                  %v2880 = vld [vmem:[%s2762 + $0x1d0] sm:$0xff]
                  %2881 = vst [vmem:[%s2763 + $0x650] sm:$0xff] %v2880
                  %v2882 = vld [vmem:[%s2762 + $0x1d8] sm:$0xff]
                  %2883 = vst [vmem:[%s2763 + $0x658] sm:$0xff] %v2882
                  %v2884 = vld [vmem:[%s2762 + $0x1e0] sm:$0xff]
                  %2885 = vst [vmem:[%s2763 + $0x660] sm:$0xff] %v2884
                  %v2886 = vld [vmem:[%s2762 + $0x1e8] sm:$0xff]
                  %2887 = vst [vmem:[%s2763 + $0x668] sm:$0xff] %v2886
                  %v2888 = vld [vmem:[%s2762 + $0x1f0] sm:$0xff]
                  %2889 = vst [vmem:[%s2763 + $0x670] sm:$0xff] %v2888
                  %v2890 = vld [vmem:[%s2762 + $0x1f8] sm:$0xff]
                  %2891 = vst [vmem:[%s2763 + $0x678] sm:$0xff] %v2890
                $region110: #{tpu_custom_call.1} parent=104 // loop_footer
                  %s2761 = sadd.s32 1, %s2757
                $region111: #{tpu_custom_call.1} parent=104 // loop_footer_branch
                  %2756 = sbr.rel target = $region107
                $region112: #{tpu_custom_call.1} parent=104 // loop_exit
                  _
              $region105: #{tpu_custom_call.1} parent=89 // pred_fallthru
                _
              // Predicated region
              $region113: #{tpu_custom_call.1} parent=89 // pred_check
                _
              $region114: #{tpu_custom_call.1} parent=89 // pred_check_branch
                %2893 = sbr.rel target = $region116
              $region115: #{tpu_custom_call.1} parent=89 // pred_region
                _
              $region116: #{tpu_custom_call.1} parent=89 // pred_fallthru
                _
            $region90: #{tpu_custom_call.1} parent=85 // pred_fallthru
              _
            // Predicated region
            $region91: #{tpu_custom_call.1} parent=85 // pred_check
              _
            $region92: #{tpu_custom_call.1} parent=85 // pred_check_branch
              %2616 = sbr.rel target = $region94
            $region93: #{tpu_custom_call.1} parent=85 // pred_region
              loop: start=0, step=1, limit=1
              $region95: #{tpu_custom_call.1} parent=93 // loop_pre_header
                _
              $region96: #{tpu_custom_call.1} parent=93 // loop_header
                %s2619 = sphi 0, %s2623
                %p2620 = scmp.ge.s32.totalorder %s2619, 1
                %s2624 = sphi %s2599, %s2599
                %s2625 = sphi %s2610, %s2610
              $region97: #{tpu_custom_call.1} parent=93 // loop_header_branch
                %2622 = sbr.rel (%p2620) target = $region101
              $region98: #{tpu_custom_call.1} parent=93 // loop_body
                %v2626 = vld [vmem:[%s2624] sm:$0xff]
                %2627 = vst [vmem:[%s2625] sm:$0xff] %v2626
                %v2628 = vld [vmem:[%s2624 + $0x8] sm:$0xff]
                %2629 = vst [vmem:[%s2625 + $0x8] sm:$0xff] %v2628
                %v2630 = vld [vmem:[%s2624 + $0x10] sm:$0xff]
                %2631 = vst [vmem:[%s2625 + $0x10] sm:$0xff] %v2630
                %v2632 = vld [vmem:[%s2624 + $0x18] sm:$0xff]
                %2633 = vst [vmem:[%s2625 + $0x18] sm:$0xff] %v2632
                %v2634 = vld [vmem:[%s2624 + $0x20] sm:$0xff]
                %2635 = vst [vmem:[%s2625 + $0x20] sm:$0xff] %v2634
                %v2636 = vld [vmem:[%s2624 + $0x28] sm:$0xff]
                %2637 = vst [vmem:[%s2625 + $0x28] sm:$0xff] %v2636
                %v2638 = vld [vmem:[%s2624 + $0x30] sm:$0xff]
                %2639 = vst [vmem:[%s2625 + $0x30] sm:$0xff] %v2638
                %v2640 = vld [vmem:[%s2624 + $0x38] sm:$0xff]
                %2641 = vst [vmem:[%s2625 + $0x38] sm:$0xff] %v2640
                %v2642 = vld [vmem:[%s2624 + $0x40] sm:$0xff]
                %2643 = vst [vmem:[%s2625 + $0x40] sm:$0xff] %v2642
                %v2644 = vld [vmem:[%s2624 + $0x48] sm:$0xff]
                %2645 = vst [vmem:[%s2625 + $0x48] sm:$0xff] %v2644
                %v2646 = vld [vmem:[%s2624 + $0x50] sm:$0xff]
                %2647 = vst [vmem:[%s2625 + $0x50] sm:$0xff] %v2646
                %v2648 = vld [vmem:[%s2624 + $0x58] sm:$0xff]
                %2649 = vst [vmem:[%s2625 + $0x58] sm:$0xff] %v2648
                %v2650 = vld [vmem:[%s2624 + $0x60] sm:$0xff]
                %2651 = vst [vmem:[%s2625 + $0x60] sm:$0xff] %v2650
                %v2652 = vld [vmem:[%s2624 + $0x68] sm:$0xff]
                %2653 = vst [vmem:[%s2625 + $0x68] sm:$0xff] %v2652
                %v2654 = vld [vmem:[%s2624 + $0x70] sm:$0xff]
                %2655 = vst [vmem:[%s2625 + $0x70] sm:$0xff] %v2654
                %v2656 = vld [vmem:[%s2624 + $0x78] sm:$0xff]
                %2657 = vst [vmem:[%s2625 + $0x78] sm:$0xff] %v2656
                %v2658 = vld [vmem:[%s2624 + $0x80] sm:$0xff]
                %2659 = vst [vmem:[%s2625 + $0x200] sm:$0xff] %v2658
                %v2660 = vld [vmem:[%s2624 + $0x88] sm:$0xff]
                %2661 = vst [vmem:[%s2625 + $0x208] sm:$0xff] %v2660
                %v2662 = vld [vmem:[%s2624 + $0x90] sm:$0xff]
                %2663 = vst [vmem:[%s2625 + $0x210] sm:$0xff] %v2662
                %v2664 = vld [vmem:[%s2624 + $0x98] sm:$0xff]
                %2665 = vst [vmem:[%s2625 + $0x218] sm:$0xff] %v2664
                %v2666 = vld [vmem:[%s2624 + $0xa0] sm:$0xff]
                %2667 = vst [vmem:[%s2625 + $0x220] sm:$0xff] %v2666
                %v2668 = vld [vmem:[%s2624 + $0xa8] sm:$0xff]
                %2669 = vst [vmem:[%s2625 + $0x228] sm:$0xff] %v2668
                %v2670 = vld [vmem:[%s2624 + $0xb0] sm:$0xff]
                %2671 = vst [vmem:[%s2625 + $0x230] sm:$0xff] %v2670
                %v2672 = vld [vmem:[%s2624 + $0xb8] sm:$0xff]
                %2673 = vst [vmem:[%s2625 + $0x238] sm:$0xff] %v2672
                %v2674 = vld [vmem:[%s2624 + $0xc0] sm:$0xff]
                %2675 = vst [vmem:[%s2625 + $0x240] sm:$0xff] %v2674
                %v2676 = vld [vmem:[%s2624 + $0xc8] sm:$0xff]
                %2677 = vst [vmem:[%s2625 + $0x248] sm:$0xff] %v2676
                %v2678 = vld [vmem:[%s2624 + $0xd0] sm:$0xff]
                %2679 = vst [vmem:[%s2625 + $0x250] sm:$0xff] %v2678
                %v2680 = vld [vmem:[%s2624 + $0xd8] sm:$0xff]
                %2681 = vst [vmem:[%s2625 + $0x258] sm:$0xff] %v2680
                %v2682 = vld [vmem:[%s2624 + $0xe0] sm:$0xff]
                %2683 = vst [vmem:[%s2625 + $0x260] sm:$0xff] %v2682
                %v2684 = vld [vmem:[%s2624 + $0xe8] sm:$0xff]
                %2685 = vst [vmem:[%s2625 + $0x268] sm:$0xff] %v2684
                %v2686 = vld [vmem:[%s2624 + $0xf0] sm:$0xff]
                %2687 = vst [vmem:[%s2625 + $0x270] sm:$0xff] %v2686
                %v2688 = vld [vmem:[%s2624 + $0xf8] sm:$0xff]
                %2689 = vst [vmem:[%s2625 + $0x278] sm:$0xff] %v2688
                %v2690 = vld [vmem:[%s2624 + $0x100] sm:$0xff]
                %2691 = vst [vmem:[%s2625 + $0x400] sm:$0xff] %v2690
                %v2692 = vld [vmem:[%s2624 + $0x108] sm:$0xff]
                %2693 = vst [vmem:[%s2625 + $0x408] sm:$0xff] %v2692
                %v2694 = vld [vmem:[%s2624 + $0x110] sm:$0xff]
                %2695 = vst [vmem:[%s2625 + $0x410] sm:$0xff] %v2694
                %v2696 = vld [vmem:[%s2624 + $0x118] sm:$0xff]
                %2697 = vst [vmem:[%s2625 + $0x418] sm:$0xff] %v2696
                %v2698 = vld [vmem:[%s2624 + $0x120] sm:$0xff]
                %2699 = vst [vmem:[%s2625 + $0x420] sm:$0xff] %v2698
                %v2700 = vld [vmem:[%s2624 + $0x128] sm:$0xff]
                %2701 = vst [vmem:[%s2625 + $0x428] sm:$0xff] %v2700
                %v2702 = vld [vmem:[%s2624 + $0x130] sm:$0xff]
                %2703 = vst [vmem:[%s2625 + $0x430] sm:$0xff] %v2702
                %v2704 = vld [vmem:[%s2624 + $0x138] sm:$0xff]
                %2705 = vst [vmem:[%s2625 + $0x438] sm:$0xff] %v2704
                %v2706 = vld [vmem:[%s2624 + $0x140] sm:$0xff]
                %2707 = vst [vmem:[%s2625 + $0x440] sm:$0xff] %v2706
                %v2708 = vld [vmem:[%s2624 + $0x148] sm:$0xff]
                %2709 = vst [vmem:[%s2625 + $0x448] sm:$0xff] %v2708
                %v2710 = vld [vmem:[%s2624 + $0x150] sm:$0xff]
                %2711 = vst [vmem:[%s2625 + $0x450] sm:$0xff] %v2710
                %v2712 = vld [vmem:[%s2624 + $0x158] sm:$0xff]
                %2713 = vst [vmem:[%s2625 + $0x458] sm:$0xff] %v2712
                %v2714 = vld [vmem:[%s2624 + $0x160] sm:$0xff]
                %2715 = vst [vmem:[%s2625 + $0x460] sm:$0xff] %v2714
                %v2716 = vld [vmem:[%s2624 + $0x168] sm:$0xff]
                %2717 = vst [vmem:[%s2625 + $0x468] sm:$0xff] %v2716
                %v2718 = vld [vmem:[%s2624 + $0x170] sm:$0xff]
                %2719 = vst [vmem:[%s2625 + $0x470] sm:$0xff] %v2718
                %v2720 = vld [vmem:[%s2624 + $0x178] sm:$0xff]
                %2721 = vst [vmem:[%s2625 + $0x478] sm:$0xff] %v2720
                %v2722 = vld [vmem:[%s2624 + $0x180] sm:$0xff]
                %2723 = vst [vmem:[%s2625 + $0x600] sm:$0xff] %v2722
                %v2724 = vld [vmem:[%s2624 + $0x188] sm:$0xff]
                %2725 = vst [vmem:[%s2625 + $0x608] sm:$0xff] %v2724
                %v2726 = vld [vmem:[%s2624 + $0x190] sm:$0xff]
                %2727 = vst [vmem:[%s2625 + $0x610] sm:$0xff] %v2726
                %v2728 = vld [vmem:[%s2624 + $0x198] sm:$0xff]
                %2729 = vst [vmem:[%s2625 + $0x618] sm:$0xff] %v2728
                %v2730 = vld [vmem:[%s2624 + $0x1a0] sm:$0xff]
                %2731 = vst [vmem:[%s2625 + $0x620] sm:$0xff] %v2730
                %v2732 = vld [vmem:[%s2624 + $0x1a8] sm:$0xff]
                %2733 = vst [vmem:[%s2625 + $0x628] sm:$0xff] %v2732
                %v2734 = vld [vmem:[%s2624 + $0x1b0] sm:$0xff]
                %2735 = vst [vmem:[%s2625 + $0x630] sm:$0xff] %v2734
                %v2736 = vld [vmem:[%s2624 + $0x1b8] sm:$0xff]
                %2737 = vst [vmem:[%s2625 + $0x638] sm:$0xff] %v2736
                %v2738 = vld [vmem:[%s2624 + $0x1c0] sm:$0xff]
                %2739 = vst [vmem:[%s2625 + $0x640] sm:$0xff] %v2738
                %v2740 = vld [vmem:[%s2624 + $0x1c8] sm:$0xff]
                %2741 = vst [vmem:[%s2625 + $0x648] sm:$0xff] %v2740
                %v2742 = vld [vmem:[%s2624 + $0x1d0] sm:$0xff]
                %2743 = vst [vmem:[%s2625 + $0x650] sm:$0xff] %v2742
                %v2744 = vld [vmem:[%s2624 + $0x1d8] sm:$0xff]
                %2745 = vst [vmem:[%s2625 + $0x658] sm:$0xff] %v2744
                %v2746 = vld [vmem:[%s2624 + $0x1e0] sm:$0xff]
                %2747 = vst [vmem:[%s2625 + $0x660] sm:$0xff] %v2746
                %v2748 = vld [vmem:[%s2624 + $0x1e8] sm:$0xff]
                %2749 = vst [vmem:[%s2625 + $0x668] sm:$0xff] %v2748
                %v2750 = vld [vmem:[%s2624 + $0x1f0] sm:$0xff]
                %2751 = vst [vmem:[%s2625 + $0x670] sm:$0xff] %v2750
                %v2752 = vld [vmem:[%s2624 + $0x1f8] sm:$0xff]
                %2753 = vst [vmem:[%s2625 + $0x678] sm:$0xff] %v2752
              $region99: #{tpu_custom_call.1} parent=93 // loop_footer
                %s2623 = sadd.s32 1, %s2619
              $region100: #{tpu_custom_call.1} parent=93 // loop_footer_branch
                %2618 = sbr.rel target = $region96
              $region101: #{tpu_custom_call.1} parent=93 // loop_exit
                _
            $region94: #{tpu_custom_call.1} parent=85 // pred_fallthru
              _
          $region86: #{tpu_custom_call.1} parent=81 // pred_fallthru
            _
          %2894 = vnop
        $region82: #{tpu_custom_call.1} parent=73 // pred_fallthru
          _
        // Predicated region
        $region117: #{tpu_custom_call.1} parent=73 // pred_check
          %p2895 = pneg %p180
        $region118: #{tpu_custom_call.1} parent=73 // pred_check_branch
          %2897 = sbr.rel (%p2895) target = $region120
        $region119: #{tpu_custom_call.1} parent=73 // pred_region
          %s2899 = ssub.s32 32, 32
          %2900 = vsyncadd %s2601, %s2899
          %s2901 = smul.addr %s21, 32
          %s2902 = scalar_lea.hbm %s6, %s2901
          %s2904 = sshll.u32 %s2604, 4
          %s2905 = int_to_ptr.vmem [resolvable:$true] %s2904
          %2907 = dma.vmem_to_hbm [thread:$0]  %s2905, 32, %s2902, %s2601
        $region120: #{tpu_custom_call.1} parent=73 // pred_fallthru
          _
      $region74: #{tpu_custom_call.1} parent=5 // pred_fallthru
        _
      %p2908 = scmp.le.s32.totalorder 2, %s16
      // Predicated region
      $region121: #{tpu_custom_call.1} parent=5 // pred_check
        %p2909 = pneg %p2908
      $region122: #{tpu_custom_call.1} parent=5 // pred_check_branch
        %2911 = sbr.rel (%p2909) target = $region124
      $region123: #{tpu_custom_call.1} parent=5 // pred_region
        %s2912 = ssub.s32 %s16, 2
        // Predicated region
        $region125: #{tpu_custom_call.1} parent=123 // pred_check
          %p2913 = pneg %p160
        $region126: #{tpu_custom_call.1} parent=123 // pred_check_branch
          %2915 = sbr.rel (%p2913) target = $region128
        $region127: #{tpu_custom_call.1} parent=123 // pred_region
          %s2916 = sand.u32 %s145, 1
          %s2917 = sand.u32 %s145, 1
          %s2918 = smul.addr %s2917, 512
          %s2919 = scalar_lea.vmem [#allocation3], %s2918
        $region128: #{tpu_custom_call.1} parent=123 // pred_fallthru
          _
        // Predicated region
        $region129: #{tpu_custom_call.1} parent=123 // pred_check
          %p2920 = pneg %p186
        $region130: #{tpu_custom_call.1} parent=123 // pred_check_branch
          %2922 = sbr.rel (%p2920) target = $region132
        $region131: #{tpu_custom_call.1} parent=123 // pred_region
          %s2923 = sand.u32 %s171, 1
          %s2924 = scalar_lea.sflag [#allocation5], %s2923
          %s2925 = sand.u32 %s171, 1
          %s2926 = smul.addr %s2925, 2
          %s2927 = scalar_lea.vmem [#allocation4], %s2926
          %2928 = dma.done %s2924, 32
        $region132: #{tpu_custom_call.1} parent=123 // pred_fallthru
          _
      $region124: #{tpu_custom_call.1} parent=5 // pred_fallthru
        _
    $region6: #{tpu_custom_call.1} parent=1 // loop_footer
      %s20 = sadd.s32 1, %s16
    $region7: #{tpu_custom_call.1} parent=1 // loop_footer_branch
      %15 = sbr.rel target = $region3
    $region8: #{tpu_custom_call.1} parent=1 // loop_exit
      _
    %2929 = vsyncpa [#allocation5], 1
    %s2930 = scalar_lea.sflag [#allocation5], 1
    %2931 = vsyncpa %s2930, 1

</llo_original>
